<compile_context>
chip_gen: v6e
topology: v6e:2x2x1
jax: 0.10.0
libtpu: 0.0.40
codegen_flags: <defaults>
</compile_context>

<pallas_src>
import string

import jax
import jax.numpy as jnp
from jax.experimental import pallas as pl
from jax.experimental.pallas import tpu as pltpu

all_letters = string.ascii_letters + " .,;'"
N_LETTERS = len(all_letters)   # 57 (module's input_size)
HIDDEN = 50                    # module's hidden_size
OUTPUT = 18                    # module has len(all_categories)==0 (degenerate); use a small nonzero class count
BATCH = 8                      # fills vreg sublanes; design scales to larger batches unchanged
SEQ = 16                       # example sequence length (T*B = 128 fills MXU M for the hoisted matmuls)

IN_PAD = 64                    # input features padded 57 -> 64 (aligned K for the x matmul)
HID_PAD = 128                  # each gate padded to one full 128-lane tile
GATES = 4 * HID_PAD            # fused gate width: [i | f | o | g] = 512
OUT_PAD = 128                  # lane-dense output slab width
NEG_BIG = jnp.float32(-1e30)   # bias for padded output lanes (kills them in log_softmax)


def make_lstm_kernel(T, B):
    """Build a kernel for a fixed (static) T timesteps and batch B."""

    def kernel(x2d_ref, h0_ref, c0_ref,
               wx_ref, wh_ref, b_ref,
               wout_ref, bout_ref,
               logp_ref, h_out_ref, c_out_ref,
               xp_sc, hs_sc):
        # x2d_ref : (T*B, IN_PAD)      all timesteps, flattened, zero-padded features
        # h0/c0   : (B, HID_PAD)       initial state (pad lanes zero)
        # wx_ref  : (IN_PAD, GATES)    fused gate weights, x block
        # wh_ref  : (HID_PAD, GATES)   fused gate weights, h block
        # b_ref   : (1, GATES)         fused gate bias
        # wout    : (HID_PAD, OUT_PAD) output projection (pad rows/cols zero)
        # bout    : (1, OUT_PAD)       output bias (pad lanes = -1e30)
        # logp    : (T*B, OUT_PAD)     log-probs for every timestep (lane-dense)
        # h_out/c_out : (B, HID_PAD)   final states
        # xp_sc   : (T*B, GATES)       hoisted x-projection slab (scratch)
        # hs_sc   : (T*B, HID_PAD)     per-step hidden states slab (scratch)

        # ---- prologue: x projection for all timesteps in one big matmul --------------
        xp_sc[...] = (jnp.dot(x2d_ref[...], wx_ref[...],
                              preferred_element_type=jnp.float32) + b_ref[...])

        # ---- serial recurrence: only h @ Wh stays on the critical path ---------------
        h = h0_ref[...]
        c = c0_ref[...]
        # Statically unrolled (T is small). TODO(synk): chunk the time axis / use
        # lax.fori_loop for very long sequences.
        for t in range(T):
            r0, r1 = t * B, (t + 1) * B
            gates = xp_sc[r0:r1, :] + jnp.dot(h, wh_ref[...],
                                              preferred_element_type=jnp.float32)  # (B, 512)
            sig = jax.nn.sigmoid(gates[:, :3 * HID_PAD])
            g_gate = jnp.tanh(gates[:, 3 * HID_PAD:])
            i_gate = sig[:, 0 * HID_PAD:1 * HID_PAD]
            f_gate = sig[:, 1 * HID_PAD:2 * HID_PAD]
            o_gate = sig[:, 2 * HID_PAD:3 * HID_PAD]
            c = f_gate * c + i_gate * g_gate
            h = o_gate * jnp.tanh(c)
            hs_sc[r0:r1, :] = h

        # ---- epilogue: output head + log_softmax over the whole (T*B, 128) slab ------
        logits = (jnp.dot(hs_sc[...], wout_ref[...],
                          preferred_element_type=jnp.float32) + bout_ref[...])
        m = jnp.max(logits, axis=1, keepdims=True)
        z = logits - m
        lse = jnp.log(jnp.sum(jnp.exp(z), axis=1, keepdims=True))
        logp_ref[...] = z - lse

        h_out_ref[...] = h
        c_out_ref[...] = c

    return kernel


def lstm_forward_seq(x_seq, h0, c0, packed):
    """Run the whole sequence in one pallas_call.

    x_seq: (T, B, N_LETTERS); h0, c0: (B, HIDDEN).
    Returns (logp_seq (T,B,OUTPUT), h_T (B,HIDDEN), c_T (B,HIDDEN)).
    """
    T, B, F = x_seq.shape
    x2d = jnp.pad(x_seq.reshape(T * B, F), ((0, 0), (0, IN_PAD - F)))
    h0p = jnp.pad(h0, ((0, 0), (0, HID_PAD - HIDDEN)))
    c0p = jnp.pad(c0, ((0, 0), (0, HID_PAD - HIDDEN)))

    out_shapes = (
        jax.ShapeDtypeStruct((T * B, OUT_PAD), jnp.float32),
        jax.ShapeDtypeStruct((B, HID_PAD), jnp.float32),
        jax.ShapeDtypeStruct((B, HID_PAD), jnp.float32),
    )

    logp2d, h_pad, c_pad = pl.pallas_call(
        make_lstm_kernel(T, B),
        out_shape=out_shapes,
        # No grid: everything is VMEM resident for the single kernel invocation.
        scratch_shapes=[
            pltpu.VMEM((T * B, GATES), jnp.float32),    # hoisted x-projection slab
            pltpu.VMEM((T * B, HID_PAD), jnp.float32),  # per-step hidden state slab
        ],
    )(x2d, h0p, c0p,
      packed["wx"], packed["wh"], packed["b"],
      packed["wout"], packed["bout"])

    logp = logp2d.reshape(T, B, OUT_PAD)[:, :, :OUTPUT]
    return logp, h_pad[:, :HIDDEN], c_pad[:, :HIDDEN]


def lstm_forward(x, h, c, packed):
    """Single-step forward, same semantics as LSTM.forward(x, h, c)."""
    logp, h1, c1 = lstm_forward_seq(x[None], h, c, packed)
    return logp[0], h1, c1


def init_params(key):
    """Unpadded torch-Linear-style params (U(-k, k), k = 1/sqrt(fan_in))."""
    in_gate = N_LETTERS + HIDDEN
    keys = jax.random.split(key, 10)

    def linear(kw, kb, fan_in, fan_out):
        bound = 1.0 / jnp.sqrt(float(fan_in))
        w = jax.random.uniform(kw, (fan_in, fan_out), jnp.float32, -bound, bound)
        b = jax.random.uniform(kb, (1, fan_out), jnp.float32, -bound, bound)
        return w, b

    wi, bi = linear(keys[0], keys[1], in_gate, HIDDEN)
    wf, bf = linear(keys[2], keys[3], in_gate, HIDDEN)
    wo, bo = linear(keys[4], keys[5], in_gate, HIDDEN)
    wg, bg = linear(keys[6], keys[7], in_gate, HIDDEN)
    wout, bout = linear(keys[8], keys[9], HIDDEN, OUTPUT)
    return dict(wi=wi, bi=bi, wf=wf, bf=bf, wo=wo, bo=bo,
                wg=wg, bg=bg, wout=wout, bout=bout)


def pack_params(p):
    """Fuse the 4 gate Linears and pad everything to the kernel layout."""
    def pad_gate(w):  # (.., HIDDEN) -> (.., HID_PAD), pad lanes zero
        return jnp.pad(w, ((0, 0), (0, HID_PAD - HIDDEN)))

    # gate order i, f, o, g  (sigmoid on the first 3 tiles, tanh on the 4th)
    w_fused = jnp.concatenate(
        [pad_gate(p[k]) for k in ("wi", "wf", "wo", "wg")], axis=1)   # (57+50, 512)
    wx = jnp.pad(w_fused[:N_LETTERS],
                 ((0, IN_PAD - N_LETTERS), (0, 0)))                   # (64, 512)
    wh = jnp.pad(w_fused[N_LETTERS:],
                 ((0, HID_PAD - HIDDEN), (0, 0)))                     # (128, 512)
    b_fused = jnp.concatenate(
        [pad_gate(p[k]) for k in ("bi", "bf", "bo", "bg")], axis=1)   # (1, 512)

    wout = jnp.pad(p["wout"],
                   ((0, HID_PAD - HIDDEN), (0, OUT_PAD - OUTPUT)))    # (128, 128)
    bout = jnp.pad(p["bout"], ((0, 0), (0, OUT_PAD - OUTPUT)),
                   constant_values=NEG_BIG)                           # (1, 128)
    return dict(wx=wx, wh=wh, b=b_fused, wout=wout, bout=bout)


def lstm_step_ref(params, h, c, x_t):
    """Pure-JAX reference for one step (matches the torch module)."""
    s = jnp.concatenate([x_t, h], axis=1)
    i = jax.nn.sigmoid(s @ params["wi"] + params["bi"])
    f = jax.nn.sigmoid(s @ params["wf"] + params["bf"])
    o = jax.nn.sigmoid(s @ params["wo"] + params["bo"])
    g = jnp.tanh(s @ params["wg"] + params["bg"])
    c_new = f * c + i * g
    h_new = o * jnp.tanh(c_new)
    logits = h_new @ params["wout"] + params["bout"]
    return jax.nn.log_softmax(logits, axis=1), h_new, c_new


if __name__ == "__main__":
    key = jax.random.PRNGKey(0)
    k_param, k_x = jax.random.split(key)

    params = init_params(k_param)
    packed = pack_params(params)

    x_seq = jax.random.normal(k_x, (SEQ, BATCH, N_LETTERS), jnp.float32)
    h0 = jnp.zeros((BATCH, HIDDEN), jnp.float32)
    c0 = jnp.zeros((BATCH, HIDDEN), jnp.float32)

    # Pallas: full sequence in one grid-less kernel call.
    logp_seq, h_T, c_T = lstm_forward_seq(x_seq, h0, c0, packed)
    jax.block_until_ready((logp_seq, h_T, c_T))

    # Pure-JAX reference (sequential loop over timesteps).
    def scan_step(carry, x_t):
        h, c = carry
        logp, h, c = lstm_step_ref(params, h, c, x_t)
        return (h, c), logp

    (h_ref, c_ref), logp_ref = jax.lax.scan(scan_step, (h0, c0), x_seq)

    assert jnp.allclose(logp_seq, logp_ref, atol=1e-3, rtol=1e-3), "log_softmax sequence mismatch"
    assert jnp.allclose(h_T, h_ref, atol=1e-3, rtol=1e-3), "final hidden state mismatch"
    assert jnp.allclose(c_T, c_ref, atol=1e-3, rtol=1e-3), "final cell state mismatch"

    # Single-step semantics (LSTM.forward) via the same kernel with T=1.
    logp1, h1, c1 = lstm_forward(x_seq[0], h0, c0, packed)
    logp1_ref, h1_ref, c1_ref = lstm_step_ref(params, h0, c0, x_seq[0])
    assert jnp.allclose(logp1, logp1_ref, atol=1e-3, rtol=1e-3), "single-step logp mismatch"
    assert jnp.allclose(h1, h1_ref, atol=1e-3, rtol=1e-3), "single-step h mismatch"
    assert jnp.allclose(c1, c1_ref, atol=1e-3, rtol=1e-3), "single-step c mismatch"

    print("KERNEL_OK")
</pallas_src>

<mosaic_0001>
module attributes {stable_mosaic.version = 11 : i64} {
  func.func @kernel(%arg0: memref<128x64xf32, #tpu.memory_space<vmem>>, %arg1: memref<8x128xf32, #tpu.memory_space<vmem>>, %arg2: memref<8x128xf32, #tpu.memory_space<vmem>>, %arg3: memref<64x512xf32, #tpu.memory_space<vmem>>, %arg4: memref<128x512xf32, #tpu.memory_space<vmem>>, %arg5: memref<1x512xf32, #tpu.memory_space<vmem>>, %arg6: memref<128x128xf32, #tpu.memory_space<vmem>>, %arg7: memref<1x128xf32, #tpu.memory_space<vmem>>, %arg8: memref<128x128xf32, #tpu.memory_space<vmem>>, %arg9: memref<8x128xf32, #tpu.memory_space<vmem>>, %arg10: memref<8x128xf32, #tpu.memory_space<vmem>>, %arg11: memref<128x512xf32, #tpu.memory_space<vmem>>, %arg12: memref<128x128xf32, #tpu.memory_space<vmem>>) attributes {dimension_semantics = [], scalar_prefetch = 0 : i64, scratch_operands = 2 : i64, tpu.core_type = #tpu.core_type<tc>} {
    %c0 = arith.constant 0 : index
    %c0_0 = arith.constant 0 : index
    %0 = vector.load %arg0[%c0, %c0_0] : memref<128x64xf32, #tpu.memory_space<vmem>>, vector<128x64xf32>
    %c0_1 = arith.constant 0 : index
    %c0_2 = arith.constant 0 : index
    %1 = vector.load %arg3[%c0_1, %c0_2] : memref<64x512xf32, #tpu.memory_space<vmem>>, vector<64x512xf32>
    %cst = arith.constant dense<0.000000e+00> : vector<128x512xf32>
    %2 = tpu.matmul %0, %1, %cst {dimension_numbers = #tpu.dot_dimension_numbers<[1], [0], [0], [1], [0, 0, 1, 1], [], []>} : vector<128x64xf32>, vector<64x512xf32>, vector<128x512xf32> -> vector<128x512xf32>
    %c0_3 = arith.constant 0 : index
    %c0_4 = arith.constant 0 : index
    %3 = vector.load %arg5[%c0_3, %c0_4] : memref<1x512xf32, #tpu.memory_space<vmem>>, vector<1x512xf32>
    %4 = vector.broadcast %3 : vector<1x512xf32> to vector<128x512xf32>
    %5 = arith.addf %2, %4 : vector<128x512xf32>
    %c0_5 = arith.constant 0 : index
    %c0_6 = arith.constant 0 : index
    %6 = vector.load %arg11[%c0_5, %c0_6] : memref<128x512xf32, #tpu.memory_space<vmem>>, vector<128x512xf32>
    tpu.vector_store %arg11[%c0_5, %c0_6], %5 {strides = array<i32>} : memref<128x512xf32, #tpu.memory_space<vmem>>, vector<128x512xf32>,
    %c0_7 = arith.constant 0 : index
    %c0_8 = arith.constant 0 : index
    %7 = vector.load %arg1[%c0_7, %c0_8] : memref<8x128xf32, #tpu.memory_space<vmem>>, vector<8x128xf32>
    %c0_9 = arith.constant 0 : index
    %c0_10 = arith.constant 0 : index
    %8 = vector.load %arg2[%c0_9, %c0_10] : memref<8x128xf32, #tpu.memory_space<vmem>>, vector<8x128xf32>
    %c0_11 = arith.constant 0 : index
    %c0_12 = arith.constant 0 : index
    %9 = vector.load %arg11[%c0_11, %c0_12] : memref<128x512xf32, #tpu.memory_space<vmem>>, vector<8x512xf32>
    %c0_13 = arith.constant 0 : index
    %c0_14 = arith.constant 0 : index
    %10 = vector.load %arg4[%c0_13, %c0_14] : memref<128x512xf32, #tpu.memory_space<vmem>>, vector<128x512xf32>
    %cst_15 = arith.constant dense<0.000000e+00> : vector<8x512xf32>
    %11 = tpu.matmul %7, %10, %cst_15 {dimension_numbers = #tpu.dot_dimension_numbers<[1], [0], [0], [1], [0, 0, 1, 1], [], []>} : vector<8x128xf32>, vector<128x512xf32>, vector<8x512xf32> -> vector<8x512xf32>
    %12 = arith.addf %9, %11 : vector<8x512xf32>
    %13 = vector.extract_strided_slice %12 {offsets = [0, 0], sizes = [8, 384], strides = [1, 1]} : vector<8x512xf32> to vector<8x384xf32>
    %14 = arith.negf %13 : vector<8x384xf32>
    %15 = math.exp %14 : vector<8x384xf32>
    %cst_16 = arith.constant 1.000000e+00 : f32
    %16 = vector.broadcast %cst_16 : f32 to vector<8x384xf32>
    %17 = arith.addf %16, %15 : vector<8x384xf32>
    %18 = arith.divf %16, %17 : vector<8x384xf32>
    %19 = vector.extract_strided_slice %12 {offsets = [0, 384], sizes = [8, 128], strides = [1, 1]} : vector<8x512xf32> to vector<8x128xf32>
    %20 = math.tanh %19 : vector<8x128xf32>
    %21 = vector.extract_strided_slice %18 {offsets = [0, 0], sizes = [8, 128], strides = [1, 1]} : vector<8x384xf32> to vector<8x128xf32>
    %22 = vector.extract_strided_slice %18 {offsets = [0, 128], sizes = [8, 128], strides = [1, 1]} : vector<8x384xf32> to vector<8x128xf32>
    %23 = vector.extract_strided_slice %18 {offsets = [0, 256], sizes = [8, 128], strides = [1, 1]} : vector<8x384xf32> to vector<8x128xf32>
    %24 = arith.mulf %22, %8 : vector<8x128xf32>
    %25 = arith.mulf %21, %20 : vector<8x128xf32>
    %26 = arith.addf %24, %25 : vector<8x128xf32>
    %27 = math.tanh %26 : vector<8x128xf32>
    %28 = arith.mulf %23, %27 : vector<8x128xf32>
    %c0_17 = arith.constant 0 : index
    %c0_18 = arith.constant 0 : index
    %29 = vector.load %arg12[%c0_17, %c0_18] : memref<128x128xf32, #tpu.memory_space<vmem>>, vector<8x128xf32>
    tpu.vector_store %arg12[%c0_17, %c0_18], %28 {strides = array<i32>} : memref<128x128xf32, #tpu.memory_space<vmem>>, vector<8x128xf32>,
    %c8 = arith.constant 8 : index
    %c0_19 = arith.constant 0 : index
    %30 = vector.load %arg11[%c8, %c0_19] : memref<128x512xf32, #tpu.memory_space<vmem>>, vector<8x512xf32>
    %c0_20 = arith.constant 0 : index
    %c0_21 = arith.constant 0 : index
    %31 = vector.load %arg4[%c0_20, %c0_21] : memref<128x512xf32, #tpu.memory_space<vmem>>, vector<128x512xf32>
    %cst_22 = arith.constant dense<0.000000e+00> : vector<8x512xf32>
    %32 = tpu.matmul %28, %31, %cst_22 {dimension_numbers = #tpu.dot_dimension_numbers<[1], [0], [0], [1], [0, 0, 1, 1], [], []>} : vector<8x128xf32>, vector<128x512xf32>, vector<8x512xf32> -> vector<8x512xf32>
    %33 = arith.addf %30, %32 : vector<8x512xf32>
    %34 = vector.extract_strided_slice %33 {offsets = [0, 0], sizes = [8, 384], strides = [1, 1]} : vector<8x512xf32> to vector<8x384xf32>
    %35 = arith.negf %34 : vector<8x384xf32>
    %36 = math.exp %35 : vector<8x384xf32>
    %cst_23 = arith.constant 1.000000e+00 : f32
    %37 = vector.broadcast %cst_23 : f32 to vector<8x384xf32>
    %38 = arith.addf %37, %36 : vector<8x384xf32>
    %39 = arith.divf %37, %38 : vector<8x384xf32>
    %40 = vector.extract_strided_slice %33 {offsets = [0, 384], sizes = [8, 128], strides = [1, 1]} : vector<8x512xf32> to vector<8x128xf32>
    %41 = math.tanh %40 : vector<8x128xf32>
    %42 = vector.extract_strided_slice %39 {offsets = [0, 0], sizes = [8, 128], strides = [1, 1]} : vector<8x384xf32> to vector<8x128xf32>
    %43 = vector.extract_strided_slice %39 {offsets = [0, 128], sizes = [8, 128], strides = [1, 1]} : vector<8x384xf32> to vector<8x128xf32>
    %44 = vector.extract_strided_slice %39 {offsets = [0, 256], sizes = [8, 128], strides = [1, 1]} : vector<8x384xf32> to vector<8x128xf32>
    %45 = arith.mulf %43, %26 : vector<8x128xf32>
    %46 = arith.mulf %42, %41 : vector<8x128xf32>
    %47 = arith.addf %45, %46 : vector<8x128xf32>
    %48 = math.tanh %47 : vector<8x128xf32>
    %49 = arith.mulf %44, %48 : vector<8x128xf32>
    %c8_24 = arith.constant 8 : index
    %c0_25 = arith.constant 0 : index
    %50 = vector.load %arg12[%c8_24, %c0_25] : memref<128x128xf32, #tpu.memory_space<vmem>>, vector<8x128xf32>
    tpu.vector_store %arg12[%c8_24, %c0_25], %49 {strides = array<i32>} : memref<128x128xf32, #tpu.memory_space<vmem>>, vector<8x128xf32>,
    %c16 = arith.constant 16 : index
    %c0_26 = arith.constant 0 : index
    %51 = vector.load %arg11[%c16, %c0_26] : memref<128x512xf32, #tpu.memory_space<vmem>>, vector<8x512xf32>
    %c0_27 = arith.constant 0 : index
    %c0_28 = arith.constant 0 : index
    %52 = vector.load %arg4[%c0_27, %c0_28] : memref<128x512xf32, #tpu.memory_space<vmem>>, vector<128x512xf32>
    %cst_29 = arith.constant dense<0.000000e+00> : vector<8x512xf32>
    %53 = tpu.matmul %49, %52, %cst_29 {dimension_numbers = #tpu.dot_dimension_numbers<[1], [0], [0], [1], [0, 0, 1, 1], [], []>} : vector<8x128xf32>, vector<128x512xf32>, vector<8x512xf32> -> vector<8x512xf32>
    %54 = arith.addf %51, %53 : vector<8x512xf32>
    %55 = vector.extract_strided_slice %54 {offsets = [0, 0], sizes = [8, 384], strides = [1, 1]} : vector<8x512xf32> to vector<8x384xf32>
    %56 = arith.negf %55 : vector<8x384xf32>
    %57 = math.exp %56 : vector<8x384xf32>
    %cst_30 = arith.constant 1.000000e+00 : f32
    %58 = vector.broadcast %cst_30 : f32 to vector<8x384xf32>
    %59 = arith.addf %58, %57 : vector<8x384xf32>
    %60 = arith.divf %58, %59 : vector<8x384xf32>
    %61 = vector.extract_strided_slice %54 {offsets = [0, 384], sizes = [8, 128], strides = [1, 1]} : vector<8x512xf32> to vector<8x128xf32>
    %62 = math.tanh %61 : vector<8x128xf32>
    %63 = vector.extract_strided_slice %60 {offsets = [0, 0], sizes = [8, 128], strides = [1, 1]} : vector<8x384xf32> to vector<8x128xf32>
    %64 = vector.extract_strided_slice %60 {offsets = [0, 128], sizes = [8, 128], strides = [1, 1]} : vector<8x384xf32> to vector<8x128xf32>
    %65 = vector.extract_strided_slice %60 {offsets = [0, 256], sizes = [8, 128], strides = [1, 1]} : vector<8x384xf32> to vector<8x128xf32>
    %66 = arith.mulf %64, %47 : vector<8x128xf32>
    %67 = arith.mulf %63, %62 : vector<8x128xf32>
    %68 = arith.addf %66, %67 : vector<8x128xf32>
    %69 = math.tanh %68 : vector<8x128xf32>
    %70 = arith.mulf %65, %69 : vector<8x128xf32>
    %c16_31 = arith.constant 16 : index
    %c0_32 = arith.constant 0 : index
    %71 = vector.load %arg12[%c16_31, %c0_32] : memref<128x128xf32, #tpu.memory_space<vmem>>, vector<8x128xf32>
    tpu.vector_store %arg12[%c16_31, %c0_32], %70 {strides = array<i32>} : memref<128x128xf32, #tpu.memory_space<vmem>>, vector<8x128xf32>,
    %c24 = arith.constant 24 : index
    %c0_33 = arith.constant 0 : index
    %72 = vector.load %arg11[%c24, %c0_33] : memref<128x512xf32, #tpu.memory_space<vmem>>, vector<8x512xf32>
    %c0_34 = arith.constant 0 : index
    %c0_35 = arith.constant 0 : index
    %73 = vector.load %arg4[%c0_34, %c0_35] : memref<128x512xf32, #tpu.memory_space<vmem>>, vector<128x512xf32>
    %cst_36 = arith.constant dense<0.000000e+00> : vector<8x512xf32>
    %74 = tpu.matmul %70, %73, %cst_36 {dimension_numbers = #tpu.dot_dimension_numbers<[1], [0], [0], [1], [0, 0, 1, 1], [], []>} : vector<8x128xf32>, vector<128x512xf32>, vector<8x512xf32> -> vector<8x512xf32>
    %75 = arith.addf %72, %74 : vector<8x512xf32>
    %76 = vector.extract_strided_slice %75 {offsets = [0, 0], sizes = [8, 384], strides = [1, 1]} : vector<8x512xf32> to vector<8x384xf32>
    %77 = arith.negf %76 : vector<8x384xf32>
    %78 = math.exp %77 : vector<8x384xf32>
    %cst_37 = arith.constant 1.000000e+00 : f32
    %79 = vector.broadcast %cst_37 : f32 to vector<8x384xf32>
    %80 = arith.addf %79, %78 : vector<8x384xf32>
    %81 = arith.divf %79, %80 : vector<8x384xf32>
    %82 = vector.extract_strided_slice %75 {offsets = [0, 384], sizes = [8, 128], strides = [1, 1]} : vector<8x512xf32> to vector<8x128xf32>
    %83 = math.tanh %82 : vector<8x128xf32>
    %84 = vector.extract_strided_slice %81 {offsets = [0, 0], sizes = [8, 128], strides = [1, 1]} : vector<8x384xf32> to vector<8x128xf32>
    %85 = vector.extract_strided_slice %81 {offsets = [0, 128], sizes = [8, 128], strides = [1, 1]} : vector<8x384xf32> to vector<8x128xf32>
    %86 = vector.extract_strided_slice %81 {offsets = [0, 256], sizes = [8, 128], strides = [1, 1]} : vector<8x384xf32> to vector<8x128xf32>
    %87 = arith.mulf %85, %68 : vector<8x128xf32>
    %88 = arith.mulf %84, %83 : vector<8x128xf32>
    %89 = arith.addf %87, %88 : vector<8x128xf32>
    %90 = math.tanh %89 : vector<8x128xf32>
    %91 = arith.mulf %86, %90 : vector<8x128xf32>
    %c24_38 = arith.constant 24 : index
    %c0_39 = arith.constant 0 : index
    %92 = vector.load %arg12[%c24_38, %c0_39] : memref<128x128xf32, #tpu.memory_space<vmem>>, vector<8x128xf32>
    tpu.vector_store %arg12[%c24_38, %c0_39], %91 {strides = array<i32>} : memref<128x128xf32, #tpu.memory_space<vmem>>, vector<8x128xf32>,
    %c32 = arith.constant 32 : index
    %c0_40 = arith.constant 0 : index
    %93 = vector.load %arg11[%c32, %c0_40] : memref<128x512xf32, #tpu.memory_space<vmem>>, vector<8x512xf32>
    %c0_41 = arith.constant 0 : index
    %c0_42 = arith.constant 0 : index
    %94 = vector.load %arg4[%c0_41, %c0_42] : memref<128x512xf32, #tpu.memory_space<vmem>>, vector<128x512xf32>
    %cst_43 = arith.constant dense<0.000000e+00> : vector<8x512xf32>
    %95 = tpu.matmul %91, %94, %cst_43 {dimension_numbers = #tpu.dot_dimension_numbers<[1], [0], [0], [1], [0, 0, 1, 1], [], []>} : vector<8x128xf32>, vector<128x512xf32>, vector<8x512xf32> -> vector<8x512xf32>
    %96 = arith.addf %93, %95 : vector<8x512xf32>
    %97 = vector.extract_strided_slice %96 {offsets = [0, 0], sizes = [8, 384], strides = [1, 1]} : vector<8x512xf32> to vector<8x384xf32>
    %98 = arith.negf %97 : vector<8x384xf32>
    %99 = math.exp %98 : vector<8x384xf32>
    %cst_44 = arith.constant 1.000000e+00 : f32
    %100 = vector.broadcast %cst_44 : f32 to vector<8x384xf32>
    %101 = arith.addf %100, %99 : vector<8x384xf32>
    %102 = arith.divf %100, %101 : vector<8x384xf32>
    %103 = vector.extract_strided_slice %96 {offsets = [0, 384], sizes = [8, 128], strides = [1, 1]} : vector<8x512xf32> to vector<8x128xf32>
    %104 = math.tanh %103 : vector<8x128xf32>
    %105 = vector.extract_strided_slice %102 {offsets = [0, 0], sizes = [8, 128], strides = [1, 1]} : vector<8x384xf32> to vector<8x128xf32>
    %106 = vector.extract_strided_slice %102 {offsets = [0, 128], sizes = [8, 128], strides = [1, 1]} : vector<8x384xf32> to vector<8x128xf32>
    %107 = vector.extract_strided_slice %102 {offsets = [0, 256], sizes = [8, 128], strides = [1, 1]} : vector<8x384xf32> to vector<8x128xf32>
    %108 = arith.mulf %106, %89 : vector<8x128xf32>
    %109 = arith.mulf %105, %104 : vector<8x128xf32>
    %110 = arith.addf %108, %109 : vector<8x128xf32>
    %111 = math.tanh %110 : vector<8x128xf32>
    %112 = arith.mulf %107, %111 : vector<8x128xf32>
    %c32_45 = arith.constant 32 : index
    %c0_46 = arith.constant 0 : index
    %113 = vector.load %arg12[%c32_45, %c0_46] : memref<128x128xf32, #tpu.memory_space<vmem>>, vector<8x128xf32>
    tpu.vector_store %arg12[%c32_45, %c0_46], %112 {strides = array<i32>} : memref<128x128xf32, #tpu.memory_space<vmem>>, vector<8x128xf32>,
    %c40 = arith.constant 40 : index
    %c0_47 = arith.constant 0 : index
    %114 = vector.load %arg11[%c40, %c0_47] : memref<128x512xf32, #tpu.memory_space<vmem>>, vector<8x512xf32>
    %c0_48 = arith.constant 0 : index
    %c0_49 = arith.constant 0 : index
    %115 = vector.load %arg4[%c0_48, %c0_49] : memref<128x512xf32, #tpu.memory_space<vmem>>, vector<128x512xf32>
    %cst_50 = arith.constant dense<0.000000e+00> : vector<8x512xf32>
    %116 = tpu.matmul %112, %115, %cst_50 {dimension_numbers = #tpu.dot_dimension_numbers<[1], [0], [0], [1], [0, 0, 1, 1], [], []>} : vector<8x128xf32>, vector<128x512xf32>, vector<8x512xf32> -> vector<8x512xf32>
    %117 = arith.addf %114, %116 : vector<8x512xf32>
    %118 = vector.extract_strided_slice %117 {offsets = [0, 0], sizes = [8, 384], strides = [1, 1]} : vector<8x512xf32> to vector<8x384xf32>
    %119 = arith.negf %118 : vector<8x384xf32>
    %120 = math.exp %119 : vector<8x384xf32>
    %cst_51 = arith.constant 1.000000e+00 : f32
    %121 = vector.broadcast %cst_51 : f32 to vector<8x384xf32>
    %122 = arith.addf %121, %120 : vector<8x384xf32>
    %123 = arith.divf %121, %122 : vector<8x384xf32>
    %124 = vector.extract_strided_slice %117 {offsets = [0, 384], sizes = [8, 128], strides = [1, 1]} : vector<8x512xf32> to vector<8x128xf32>
    %125 = math.tanh %124 : vector<8x128xf32>
    %126 = vector.extract_strided_slice %123 {offsets = [0, 0], sizes = [8, 128], strides = [1, 1]} : vector<8x384xf32> to vector<8x128xf32>
    %127 = vector.extract_strided_slice %123 {offsets = [0, 128], sizes = [8, 128], strides = [1, 1]} : vector<8x384xf32> to vector<8x128xf32>
    %128 = vector.extract_strided_slice %123 {offsets = [0, 256], sizes = [8, 128], strides = [1, 1]} : vector<8x384xf32> to vector<8x128xf32>
    %129 = arith.mulf %127, %110 : vector<8x128xf32>
    %130 = arith.mulf %126, %125 : vector<8x128xf32>
    %131 = arith.addf %129, %130 : vector<8x128xf32>
    %132 = math.tanh %131 : vector<8x128xf32>
    %133 = arith.mulf %128, %132 : vector<8x128xf32>
    %c40_52 = arith.constant 40 : index
    %c0_53 = arith.constant 0 : index
    %134 = vector.load %arg12[%c40_52, %c0_53] : memref<128x128xf32, #tpu.memory_space<vmem>>, vector<8x128xf32>
    tpu.vector_store %arg12[%c40_52, %c0_53], %133 {strides = array<i32>} : memref<128x128xf32, #tpu.memory_space<vmem>>, vector<8x128xf32>,
    %c48 = arith.constant 48 : index
    %c0_54 = arith.constant 0 : index
    %135 = vector.load %arg11[%c48, %c0_54] : memref<128x512xf32, #tpu.memory_space<vmem>>, vector<8x512xf32>
    %c0_55 = arith.constant 0 : index
    %c0_56 = arith.constant 0 : index
    %136 = vector.load %arg4[%c0_55, %c0_56] : memref<128x512xf32, #tpu.memory_space<vmem>>, vector<128x512xf32>
    %cst_57 = arith.constant dense<0.000000e+00> : vector<8x512xf32>
    %137 = tpu.matmul %133, %136, %cst_57 {dimension_numbers = #tpu.dot_dimension_numbers<[1], [0], [0], [1], [0, 0, 1, 1], [], []>} : vector<8x128xf32>, vector<128x512xf32>, vector<8x512xf32> -> vector<8x512xf32>
    %138 = arith.addf %135, %137 : vector<8x512xf32>
    %139 = vector.extract_strided_slice %138 {offsets = [0, 0], sizes = [8, 384], strides = [1, 1]} : vector<8x512xf32> to vector<8x384xf32>
    %140 = arith.negf %139 : vector<8x384xf32>
    %141 = math.exp %140 : vector<8x384xf32>
    %cst_58 = arith.constant 1.000000e+00 : f32
    %142 = vector.broadcast %cst_58 : f32 to vector<8x384xf32>
    %143 = arith.addf %142, %141 : vector<8x384xf32>
    %144 = arith.divf %142, %143 : vector<8x384xf32>
    %145 = vector.extract_strided_slice %138 {offsets = [0, 384], sizes = [8, 128], strides = [1, 1]} : vector<8x512xf32> to vector<8x128xf32>
    %146 = math.tanh %145 : vector<8x128xf32>
    %147 = vector.extract_strided_slice %144 {offsets = [0, 0], sizes = [8, 128], strides = [1, 1]} : vector<8x384xf32> to vector<8x128xf32>
    %148 = vector.extract_strided_slice %144 {offsets = [0, 128], sizes = [8, 128], strides = [1, 1]} : vector<8x384xf32> to vector<8x128xf32>
    %149 = vector.extract_strided_slice %144 {offsets = [0, 256], sizes = [8, 128], strides = [1, 1]} : vector<8x384xf32> to vector<8x128xf32>
    %150 = arith.mulf %148, %131 : vector<8x128xf32>
    %151 = arith.mulf %147, %146 : vector<8x128xf32>
    %152 = arith.addf %150, %151 : vector<8x128xf32>
    %153 = math.tanh %152 : vector<8x128xf32>
    %154 = arith.mulf %149, %153 : vector<8x128xf32>
    %c48_59 = arith.constant 48 : index
    %c0_60 = arith.constant 0 : index
    %155 = vector.load %arg12[%c48_59, %c0_60] : memref<128x128xf32, #tpu.memory_space<vmem>>, vector<8x128xf32>
    tpu.vector_store %arg12[%c48_59, %c0_60], %154 {strides = array<i32>} : memref<128x128xf32, #tpu.memory_space<vmem>>, vector<8x128xf32>,
    %c56 = arith.constant 56 : index
    %c0_61 = arith.constant 0 : index
    %156 = vector.load %arg11[%c56, %c0_61] : memref<128x512xf32, #tpu.memory_space<vmem>>, vector<8x512xf32>
    %c0_62 = arith.constant 0 : index
    %c0_63 = arith.constant 0 : index
    %157 = vector.load %arg4[%c0_62, %c0_63] : memref<128x512xf32, #tpu.memory_space<vmem>>, vector<128x512xf32>
    %cst_64 = arith.constant dense<0.000000e+00> : vector<8x512xf32>
    %158 = tpu.matmul %154, %157, %cst_64 {dimension_numbers = #tpu.dot_dimension_numbers<[1], [0], [0], [1], [0, 0, 1, 1], [], []>} : vector<8x128xf32>, vector<128x512xf32>, vector<8x512xf32> -> vector<8x512xf32>
    %159 = arith.addf %156, %158 : vector<8x512xf32>
    %160 = vector.extract_strided_slice %159 {offsets = [0, 0], sizes = [8, 384], strides = [1, 1]} : vector<8x512xf32> to vector<8x384xf32>
    %161 = arith.negf %160 : vector<8x384xf32>
    %162 = math.exp %161 : vector<8x384xf32>
    %cst_65 = arith.constant 1.000000e+00 : f32
    %163 = vector.broadcast %cst_65 : f32 to vector<8x384xf32>
    %164 = arith.addf %163, %162 : vector<8x384xf32>
    %165 = arith.divf %163, %164 : vector<8x384xf32>
    %166 = vector.extract_strided_slice %159 {offsets = [0, 384], sizes = [8, 128], strides = [1, 1]} : vector<8x512xf32> to vector<8x128xf32>
    %167 = math.tanh %166 : vector<8x128xf32>
    %168 = vector.extract_strided_slice %165 {offsets = [0, 0], sizes = [8, 128], strides = [1, 1]} : vector<8x384xf32> to vector<8x128xf32>
    %169 = vector.extract_strided_slice %165 {offsets = [0, 128], sizes = [8, 128], strides = [1, 1]} : vector<8x384xf32> to vector<8x128xf32>
    %170 = vector.extract_strided_slice %165 {offsets = [0, 256], sizes = [8, 128], strides = [1, 1]} : vector<8x384xf32> to vector<8x128xf32>
    %171 = arith.mulf %169, %152 : vector<8x128xf32>
    %172 = arith.mulf %168, %167 : vector<8x128xf32>
    %173 = arith.addf %171, %172 : vector<8x128xf32>
    %174 = math.tanh %173 : vector<8x128xf32>
    %175 = arith.mulf %170, %174 : vector<8x128xf32>
    %c56_66 = arith.constant 56 : index
    %c0_67 = arith.constant 0 : index
    %176 = vector.load %arg12[%c56_66, %c0_67] : memref<128x128xf32, #tpu.memory_space<vmem>>, vector<8x128xf32>
    tpu.vector_store %arg12[%c56_66, %c0_67], %175 {strides = array<i32>} : memref<128x128xf32, #tpu.memory_space<vmem>>, vector<8x128xf32>,
    %c64 = arith.constant 64 : index
    %c0_68 = arith.constant 0 : index
    %177 = vector.load %arg11[%c64, %c0_68] : memref<128x512xf32, #tpu.memory_space<vmem>>, vector<8x512xf32>
    %c0_69 = arith.constant 0 : index
    %c0_70 = arith.constant 0 : index
    %178 = vector.load %arg4[%c0_69, %c0_70] : memref<128x512xf32, #tpu.memory_space<vmem>>, vector<128x512xf32>
    %cst_71 = arith.constant dense<0.000000e+00> : vector<8x512xf32>
    %179 = tpu.matmul %175, %178, %cst_71 {dimension_numbers = #tpu.dot_dimension_numbers<[1], [0], [0], [1], [0, 0, 1, 1], [], []>} : vector<8x128xf32>, vector<128x512xf32>, vector<8x512xf32> -> vector<8x512xf32>
    %180 = arith.addf %177, %179 : vector<8x512xf32>
    %181 = vector.extract_strided_slice %180 {offsets = [0, 0], sizes = [8, 384], strides = [1, 1]} : vector<8x512xf32> to vector<8x384xf32>
    %182 = arith.negf %181 : vector<8x384xf32>
    %183 = math.exp %182 : vector<8x384xf32>
    %cst_72 = arith.constant 1.000000e+00 : f32
    %184 = vector.broadcast %cst_72 : f32 to vector<8x384xf32>
    %185 = arith.addf %184, %183 : vector<8x384xf32>
    %186 = arith.divf %184, %185 : vector<8x384xf32>
    %187 = vector.extract_strided_slice %180 {offsets = [0, 384], sizes = [8, 128], strides = [1, 1]} : vector<8x512xf32> to vector<8x128xf32>
    %188 = math.tanh %187 : vector<8x128xf32>
    %189 = vector.extract_strided_slice %186 {offsets = [0, 0], sizes = [8, 128], strides = [1, 1]} : vector<8x384xf32> to vector<8x128xf32>
    %190 = vector.extract_strided_slice %186 {offsets = [0, 128], sizes = [8, 128], strides = [1, 1]} : vector<8x384xf32> to vector<8x128xf32>
    %191 = vector.extract_strided_slice %186 {offsets = [0, 256], sizes = [8, 128], strides = [1, 1]} : vector<8x384xf32> to vector<8x128xf32>
    %192 = arith.mulf %190, %173 : vector<8x128xf32>
    %193 = arith.mulf %189, %188 : vector<8x128xf32>
    %194 = arith.addf %192, %193 : vector<8x128xf32>
    %195 = math.tanh %194 : vector<8x128xf32>
    %196 = arith.mulf %191, %195 : vector<8x128xf32>
    %c64_73 = arith.constant 64 : index
    %c0_74 = arith.constant 0 : index
    %197 = vector.load %arg12[%c64_73, %c0_74] : memref<128x128xf32, #tpu.memory_space<vmem>>, vector<8x128xf32>
    tpu.vector_store %arg12[%c64_73, %c0_74], %196 {strides = array<i32>} : memref<128x128xf32, #tpu.memory_space<vmem>>, vector<8x128xf32>,
    %c72 = arith.constant 72 : index
    %c0_75 = arith.constant 0 : index
    %198 = vector.load %arg11[%c72, %c0_75] : memref<128x512xf32, #tpu.memory_space<vmem>>, vector<8x512xf32>
    %c0_76 = arith.constant 0 : index
    %c0_77 = arith.constant 0 : index
    %199 = vector.load %arg4[%c0_76, %c0_77] : memref<128x512xf32, #tpu.memory_space<vmem>>, vector<128x512xf32>
    %cst_78 = arith.constant dense<0.000000e+00> : vector<8x512xf32>
    %200 = tpu.matmul %196, %199, %cst_78 {dimension_numbers = #tpu.dot_dimension_numbers<[1], [0], [0], [1], [0, 0, 1, 1], [], []>} : vector<8x128xf32>, vector<128x512xf32>, vector<8x512xf32> -> vector<8x512xf32>
    %201 = arith.addf %198, %200 : vector<8x512xf32>
    %202 = vector.extract_strided_slice %201 {offsets = [0, 0], sizes = [8, 384], strides = [1, 1]} : vector<8x512xf32> to vector<8x384xf32>
    %203 = arith.negf %202 : vector<8x384xf32>
    %204 = math.exp %203 : vector<8x384xf32>
    %cst_79 = arith.constant 1.000000e+00 : f32
    %205 = vector.broadcast %cst_79 : f32 to vector<8x384xf32>
    %206 = arith.addf %205, %204 : vector<8x384xf32>
    %207 = arith.divf %205, %206 : vector<8x384xf32>
    %208 = vector.extract_strided_slice %201 {offsets = [0, 384], sizes = [8, 128], strides = [1, 1]} : vector<8x512xf32> to vector<8x128xf32>
    %209 = math.tanh %208 : vector<8x128xf32>
    %210 = vector.extract_strided_slice %207 {offsets = [0, 0], sizes = [8, 128], strides = [1, 1]} : vector<8x384xf32> to vector<8x128xf32>
    %211 = vector.extract_strided_slice %207 {offsets = [0, 128], sizes = [8, 128], strides = [1, 1]} : vector<8x384xf32> to vector<8x128xf32>
    %212 = vector.extract_strided_slice %207 {offsets = [0, 256], sizes = [8, 128], strides = [1, 1]} : vector<8x384xf32> to vector<8x128xf32>
    %213 = arith.mulf %211, %194 : vector<8x128xf32>
    %214 = arith.mulf %210, %209 : vector<8x128xf32>
    %215 = arith.addf %213, %214 : vector<8x128xf32>
    %216 = math.tanh %215 : vector<8x128xf32>
    %217 = arith.mulf %212, %216 : vector<8x128xf32>
    %c72_80 = arith.constant 72 : index
    %c0_81 = arith.constant 0 : index
    %218 = vector.load %arg12[%c72_80, %c0_81] : memref<128x128xf32, #tpu.memory_space<vmem>>, vector<8x128xf32>
    tpu.vector_store %arg12[%c72_80, %c0_81], %217 {strides = array<i32>} : memref<128x128xf32, #tpu.memory_space<vmem>>, vector<8x128xf32>,
    %c80 = arith.constant 80 : index
    %c0_82 = arith.constant 0 : index
    %219 = vector.load %arg11[%c80, %c0_82] : memref<128x512xf32, #tpu.memory_space<vmem>>, vector<8x512xf32>
    %c0_83 = arith.constant 0 : index
    %c0_84 = arith.constant 0 : index
    %220 = vector.load %arg4[%c0_83, %c0_84] : memref<128x512xf32, #tpu.memory_space<vmem>>, vector<128x512xf32>
    %cst_85 = arith.constant dense<0.000000e+00> : vector<8x512xf32>
    %221 = tpu.matmul %217, %220, %cst_85 {dimension_numbers = #tpu.dot_dimension_numbers<[1], [0], [0], [1], [0, 0, 1, 1], [], []>} : vector<8x128xf32>, vector<128x512xf32>, vector<8x512xf32> -> vector<8x512xf32>
    %222 = arith.addf %219, %221 : vector<8x512xf32>
    %223 = vector.extract_strided_slice %222 {offsets = [0, 0], sizes = [8, 384], strides = [1, 1]} : vector<8x512xf32> to vector<8x384xf32>
    %224 = arith.negf %223 : vector<8x384xf32>
    %225 = math.exp %224 : vector<8x384xf32>
    %cst_86 = arith.constant 1.000000e+00 : f32
    %226 = vector.broadcast %cst_86 : f32 to vector<8x384xf32>
    %227 = arith.addf %226, %225 : vector<8x384xf32>
    %228 = arith.divf %226, %227 : vector<8x384xf32>
    %229 = vector.extract_strided_slice %222 {offsets = [0, 384], sizes = [8, 128], strides = [1, 1]} : vector<8x512xf32> to vector<8x128xf32>
    %230 = math.tanh %229 : vector<8x128xf32>
    %231 = vector.extract_strided_slice %228 {offsets = [0, 0], sizes = [8, 128], strides = [1, 1]} : vector<8x384xf32> to vector<8x128xf32>
    %232 = vector.extract_strided_slice %228 {offsets = [0, 128], sizes = [8, 128], strides = [1, 1]} : vector<8x384xf32> to vector<8x128xf32>
    %233 = vector.extract_strided_slice %228 {offsets = [0, 256], sizes = [8, 128], strides = [1, 1]} : vector<8x384xf32> to vector<8x128xf32>
    %234 = arith.mulf %232, %215 : vector<8x128xf32>
    %235 = arith.mulf %231, %230 : vector<8x128xf32>
    %236 = arith.addf %234, %235 : vector<8x128xf32>
    %237 = math.tanh %236 : vector<8x128xf32>
    %238 = arith.mulf %233, %237 : vector<8x128xf32>
    %c80_87 = arith.constant 80 : index
    %c0_88 = arith.constant 0 : index
    %239 = vector.load %arg12[%c80_87, %c0_88] : memref<128x128xf32, #tpu.memory_space<vmem>>, vector<8x128xf32>
    tpu.vector_store %arg12[%c80_87, %c0_88], %238 {strides = array<i32>} : memref<128x128xf32, #tpu.memory_space<vmem>>, vector<8x128xf32>,
    %c88 = arith.constant 88 : index
    %c0_89 = arith.constant 0 : index
    %240 = vector.load %arg11[%c88, %c0_89] : memref<128x512xf32, #tpu.memory_space<vmem>>, vector<8x512xf32>
    %c0_90 = arith.constant 0 : index
    %c0_91 = arith.constant 0 : index
    %241 = vector.load %arg4[%c0_90, %c0_91] : memref<128x512xf32, #tpu.memory_space<vmem>>, vector<128x512xf32>
    %cst_92 = arith.constant dense<0.000000e+00> : vector<8x512xf32>
    %242 = tpu.matmul %238, %241, %cst_92 {dimension_numbers = #tpu.dot_dimension_numbers<[1], [0], [0], [1], [0, 0, 1, 1], [], []>} : vector<8x128xf32>, vector<128x512xf32>, vector<8x512xf32> -> vector<8x512xf32>
    %243 = arith.addf %240, %242 : vector<8x512xf32>
    %244 = vector.extract_strided_slice %243 {offsets = [0, 0], sizes = [8, 384], strides = [1, 1]} : vector<8x512xf32> to vector<8x384xf32>
    %245 = arith.negf %244 : vector<8x384xf32>
    %246 = math.exp %245 : vector<8x384xf32>
    %cst_93 = arith.constant 1.000000e+00 : f32
    %247 = vector.broadcast %cst_93 : f32 to vector<8x384xf32>
    %248 = arith.addf %247, %246 : vector<8x384xf32>
    %249 = arith.divf %247, %248 : vector<8x384xf32>
    %250 = vector.extract_strided_slice %243 {offsets = [0, 384], sizes = [8, 128], strides = [1, 1]} : vector<8x512xf32> to vector<8x128xf32>
    %251 = math.tanh %250 : vector<8x128xf32>
    %252 = vector.extract_strided_slice %249 {offsets = [0, 0], sizes = [8, 128], strides = [1, 1]} : vector<8x384xf32> to vector<8x128xf32>
    %253 = vector.extract_strided_slice %249 {offsets = [0, 128], sizes = [8, 128], strides = [1, 1]} : vector<8x384xf32> to vector<8x128xf32>
    %254 = vector.extract_strided_slice %249 {offsets = [0, 256], sizes = [8, 128], strides = [1, 1]} : vector<8x384xf32> to vector<8x128xf32>
    %255 = arith.mulf %253, %236 : vector<8x128xf32>
    %256 = arith.mulf %252, %251 : vector<8x128xf32>
    %257 = arith.addf %255, %256 : vector<8x128xf32>
    %258 = math.tanh %257 : vector<8x128xf32>
    %259 = arith.mulf %254, %258 : vector<8x128xf32>
    %c88_94 = arith.constant 88 : index
    %c0_95 = arith.constant 0 : index
    %260 = vector.load %arg12[%c88_94, %c0_95] : memref<128x128xf32, #tpu.memory_space<vmem>>, vector<8x128xf32>
    tpu.vector_store %arg12[%c88_94, %c0_95], %259 {strides = array<i32>} : memref<128x128xf32, #tpu.memory_space<vmem>>, vector<8x128xf32>,
    %c96 = arith.constant 96 : index
    %c0_96 = arith.constant 0 : index
    %261 = vector.load %arg11[%c96, %c0_96] : memref<128x512xf32, #tpu.memory_space<vmem>>, vector<8x512xf32>
    %c0_97 = arith.constant 0 : index
    %c0_98 = arith.constant 0 : index
    %262 = vector.load %arg4[%c0_97, %c0_98] : memref<128x512xf32, #tpu.memory_space<vmem>>, vector<128x512xf32>
    %cst_99 = arith.constant dense<0.000000e+00> : vector<8x512xf32>
    %263 = tpu.matmul %259, %262, %cst_99 {dimension_numbers = #tpu.dot_dimension_numbers<[1], [0], [0], [1], [0, 0, 1, 1], [], []>} : vector<8x128xf32>, vector<128x512xf32>, vector<8x512xf32> -> vector<8x512xf32>
    %264 = arith.addf %261, %263 : vector<8x512xf32>
    %265 = vector.extract_strided_slice %264 {offsets = [0, 0], sizes = [8, 384], strides = [1, 1]} : vector<8x512xf32> to vector<8x384xf32>
    %266 = arith.negf %265 : vector<8x384xf32>
    %267 = math.exp %266 : vector<8x384xf32>
    %cst_100 = arith.constant 1.000000e+00 : f32
    %268 = vector.broadcast %cst_100 : f32 to vector<8x384xf32>
    %269 = arith.addf %268, %267 : vector<8x384xf32>
    %270 = arith.divf %268, %269 : vector<8x384xf32>
    %271 = vector.extract_strided_slice %264 {offsets = [0, 384], sizes = [8, 128], strides = [1, 1]} : vector<8x512xf32> to vector<8x128xf32>
    %272 = math.tanh %271 : vector<8x128xf32>
    %273 = vector.extract_strided_slice %270 {offsets = [0, 0], sizes = [8, 128], strides = [1, 1]} : vector<8x384xf32> to vector<8x128xf32>
    %274 = vector.extract_strided_slice %270 {offsets = [0, 128], sizes = [8, 128], strides = [1, 1]} : vector<8x384xf32> to vector<8x128xf32>
    %275 = vector.extract_strided_slice %270 {offsets = [0, 256], sizes = [8, 128], strides = [1, 1]} : vector<8x384xf32> to vector<8x128xf32>
    %276 = arith.mulf %274, %257 : vector<8x128xf32>
    %277 = arith.mulf %273, %272 : vector<8x128xf32>
    %278 = arith.addf %276, %277 : vector<8x128xf32>
    %279 = math.tanh %278 : vector<8x128xf32>
    %280 = arith.mulf %275, %279 : vector<8x128xf32>
    %c96_101 = arith.constant 96 : index
    %c0_102 = arith.constant 0 : index
    %281 = vector.load %arg12[%c96_101, %c0_102] : memref<128x128xf32, #tpu.memory_space<vmem>>, vector<8x128xf32>
    tpu.vector_store %arg12[%c96_101, %c0_102], %280 {strides = array<i32>} : memref<128x128xf32, #tpu.memory_space<vmem>>, vector<8x128xf32>,
    %c104 = arith.constant 104 : index
    %c0_103 = arith.constant 0 : index
    %282 = vector.load %arg11[%c104, %c0_103] : memref<128x512xf32, #tpu.memory_space<vmem>>, vector<8x512xf32>
    %c0_104 = arith.constant 0 : index
    %c0_105 = arith.constant 0 : index
    %283 = vector.load %arg4[%c0_104, %c0_105] : memref<128x512xf32, #tpu.memory_space<vmem>>, vector<128x512xf32>
    %cst_106 = arith.constant dense<0.000000e+00> : vector<8x512xf32>
    %284 = tpu.matmul %280, %283, %cst_106 {dimension_numbers = #tpu.dot_dimension_numbers<[1], [0], [0], [1], [0, 0, 1, 1], [], []>} : vector<8x128xf32>, vector<128x512xf32>, vector<8x512xf32> -> vector<8x512xf32>
    %285 = arith.addf %282, %284 : vector<8x512xf32>
    %286 = vector.extract_strided_slice %285 {offsets = [0, 0], sizes = [8, 384], strides = [1, 1]} : vector<8x512xf32> to vector<8x384xf32>
    %287 = arith.negf %286 : vector<8x384xf32>
    %288 = math.exp %287 : vector<8x384xf32>
    %cst_107 = arith.constant 1.000000e+00 : f32
    %289 = vector.broadcast %cst_107 : f32 to vector<8x384xf32>
    %290 = arith.addf %289, %288 : vector<8x384xf32>
    %291 = arith.divf %289, %290 : vector<8x384xf32>
    %292 = vector.extract_strided_slice %285 {offsets = [0, 384], sizes = [8, 128], strides = [1, 1]} : vector<8x512xf32> to vector<8x128xf32>
    %293 = math.tanh %292 : vector<8x128xf32>
    %294 = vector.extract_strided_slice %291 {offsets = [0, 0], sizes = [8, 128], strides = [1, 1]} : vector<8x384xf32> to vector<8x128xf32>
    %295 = vector.extract_strided_slice %291 {offsets = [0, 128], sizes = [8, 128], strides = [1, 1]} : vector<8x384xf32> to vector<8x128xf32>
    %296 = vector.extract_strided_slice %291 {offsets = [0, 256], sizes = [8, 128], strides = [1, 1]} : vector<8x384xf32> to vector<8x128xf32>
    %297 = arith.mulf %295, %278 : vector<8x128xf32>
    %298 = arith.mulf %294, %293 : vector<8x128xf32>
    %299 = arith.addf %297, %298 : vector<8x128xf32>
    %300 = math.tanh %299 : vector<8x128xf32>
    %301 = arith.mulf %296, %300 : vector<8x128xf32>
    %c104_108 = arith.constant 104 : index
    %c0_109 = arith.constant 0 : index
    %302 = vector.load %arg12[%c104_108, %c0_109] : memref<128x128xf32, #tpu.memory_space<vmem>>, vector<8x128xf32>
    tpu.vector_store %arg12[%c104_108, %c0_109], %301 {strides = array<i32>} : memref<128x128xf32, #tpu.memory_space<vmem>>, vector<8x128xf32>,
    %c112 = arith.constant 112 : index
    %c0_110 = arith.constant 0 : index
    %303 = vector.load %arg11[%c112, %c0_110] : memref<128x512xf32, #tpu.memory_space<vmem>>, vector<8x512xf32>
    %c0_111 = arith.constant 0 : index
    %c0_112 = arith.constant 0 : index
    %304 = vector.load %arg4[%c0_111, %c0_112] : memref<128x512xf32, #tpu.memory_space<vmem>>, vector<128x512xf32>
    %cst_113 = arith.constant dense<0.000000e+00> : vector<8x512xf32>
    %305 = tpu.matmul %301, %304, %cst_113 {dimension_numbers = #tpu.dot_dimension_numbers<[1], [0], [0], [1], [0, 0, 1, 1], [], []>} : vector<8x128xf32>, vector<128x512xf32>, vector<8x512xf32> -> vector<8x512xf32>
    %306 = arith.addf %303, %305 : vector<8x512xf32>
    %307 = vector.extract_strided_slice %306 {offsets = [0, 0], sizes = [8, 384], strides = [1, 1]} : vector<8x512xf32> to vector<8x384xf32>
    %308 = arith.negf %307 : vector<8x384xf32>
    %309 = math.exp %308 : vector<8x384xf32>
    %cst_114 = arith.constant 1.000000e+00 : f32
    %310 = vector.broadcast %cst_114 : f32 to vector<8x384xf32>
    %311 = arith.addf %310, %309 : vector<8x384xf32>
    %312 = arith.divf %310, %311 : vector<8x384xf32>
    %313 = vector.extract_strided_slice %306 {offsets = [0, 384], sizes = [8, 128], strides = [1, 1]} : vector<8x512xf32> to vector<8x128xf32>
    %314 = math.tanh %313 : vector<8x128xf32>
    %315 = vector.extract_strided_slice %312 {offsets = [0, 0], sizes = [8, 128], strides = [1, 1]} : vector<8x384xf32> to vector<8x128xf32>
    %316 = vector.extract_strided_slice %312 {offsets = [0, 128], sizes = [8, 128], strides = [1, 1]} : vector<8x384xf32> to vector<8x128xf32>
    %317 = vector.extract_strided_slice %312 {offsets = [0, 256], sizes = [8, 128], strides = [1, 1]} : vector<8x384xf32> to vector<8x128xf32>
    %318 = arith.mulf %316, %299 : vector<8x128xf32>
    %319 = arith.mulf %315, %314 : vector<8x128xf32>
    %320 = arith.addf %318, %319 : vector<8x128xf32>
    %321 = math.tanh %320 : vector<8x128xf32>
    %322 = arith.mulf %317, %321 : vector<8x128xf32>
    %c112_115 = arith.constant 112 : index
    %c0_116 = arith.constant 0 : index
    %323 = vector.load %arg12[%c112_115, %c0_116] : memref<128x128xf32, #tpu.memory_space<vmem>>, vector<8x128xf32>
    tpu.vector_store %arg12[%c112_115, %c0_116], %322 {strides = array<i32>} : memref<128x128xf32, #tpu.memory_space<vmem>>, vector<8x128xf32>,
    %c120 = arith.constant 120 : index
    %c0_117 = arith.constant 0 : index
    %324 = vector.load %arg11[%c120, %c0_117] : memref<128x512xf32, #tpu.memory_space<vmem>>, vector<8x512xf32>
    %c0_118 = arith.constant 0 : index
    %c0_119 = arith.constant 0 : index
    %325 = vector.load %arg4[%c0_118, %c0_119] : memref<128x512xf32, #tpu.memory_space<vmem>>, vector<128x512xf32>
    %cst_120 = arith.constant dense<0.000000e+00> : vector<8x512xf32>
    %326 = tpu.matmul %322, %325, %cst_120 {dimension_numbers = #tpu.dot_dimension_numbers<[1], [0], [0], [1], [0, 0, 1, 1], [], []>} : vector<8x128xf32>, vector<128x512xf32>, vector<8x512xf32> -> vector<8x512xf32>
    %327 = arith.addf %324, %326 : vector<8x512xf32>
    %328 = vector.extract_strided_slice %327 {offsets = [0, 0], sizes = [8, 384], strides = [1, 1]} : vector<8x512xf32> to vector<8x384xf32>
    %329 = arith.negf %328 : vector<8x384xf32>
    %330 = math.exp %329 : vector<8x384xf32>
    %cst_121 = arith.constant 1.000000e+00 : f32
    %331 = vector.broadcast %cst_121 : f32 to vector<8x384xf32>
    %332 = arith.addf %331, %330 : vector<8x384xf32>
    %333 = arith.divf %331, %332 : vector<8x384xf32>
    %334 = vector.extract_strided_slice %327 {offsets = [0, 384], sizes = [8, 128], strides = [1, 1]} : vector<8x512xf32> to vector<8x128xf32>
    %335 = math.tanh %334 : vector<8x128xf32>
    %336 = vector.extract_strided_slice %333 {offsets = [0, 0], sizes = [8, 128], strides = [1, 1]} : vector<8x384xf32> to vector<8x128xf32>
    %337 = vector.extract_strided_slice %333 {offsets = [0, 128], sizes = [8, 128], strides = [1, 1]} : vector<8x384xf32> to vector<8x128xf32>
    %338 = vector.extract_strided_slice %333 {offsets = [0, 256], sizes = [8, 128], strides = [1, 1]} : vector<8x384xf32> to vector<8x128xf32>
    %339 = arith.mulf %337, %320 : vector<8x128xf32>
    %340 = arith.mulf %336, %335 : vector<8x128xf32>
    %341 = arith.addf %339, %340 : vector<8x128xf32>
    %342 = math.tanh %341 : vector<8x128xf32>
    %343 = arith.mulf %338, %342 : vector<8x128xf32>
    %c120_122 = arith.constant 120 : index
    %c0_123 = arith.constant 0 : index
    %344 = vector.load %arg12[%c120_122, %c0_123] : memref<128x128xf32, #tpu.memory_space<vmem>>, vector<8x128xf32>
    tpu.vector_store %arg12[%c120_122, %c0_123], %343 {strides = array<i32>} : memref<128x128xf32, #tpu.memory_space<vmem>>, vector<8x128xf32>,
    %c0_124 = arith.constant 0 : index
    %c0_125 = arith.constant 0 : index
    %345 = vector.load %arg12[%c0_124, %c0_125] : memref<128x128xf32, #tpu.memory_space<vmem>>, vector<128x128xf32>
    %c0_126 = arith.constant 0 : index
    %c0_127 = arith.constant 0 : index
    %346 = vector.load %arg6[%c0_126, %c0_127] : memref<128x128xf32, #tpu.memory_space<vmem>>, vector<128x128xf32>
    %cst_128 = arith.constant dense<0.000000e+00> : vector<128x128xf32>
    %347 = tpu.matmul %345, %346, %cst_128 {dimension_numbers = #tpu.dot_dimension_numbers<[1], [0], [0], [1], [0, 0, 1, 1], [], []>} : vector<128x128xf32>, vector<128x128xf32>, vector<128x128xf32> -> vector<128x128xf32>
    %c0_129 = arith.constant 0 : index
    %c0_130 = arith.constant 0 : index
    %348 = vector.load %arg7[%c0_129, %c0_130] : memref<1x128xf32, #tpu.memory_space<vmem>>, vector<1x128xf32>
    %349 = vector.broadcast %348 : vector<1x128xf32> to vector<128x128xf32>
    %350 = arith.addf %347, %349 : vector<128x128xf32>
    %cst_131 = arith.constant dense<0xFF800000> : vector<128xf32>
    %351 = vector.multi_reduction <maximumf>, %350, %cst_131 [1] : vector<128x128xf32> to vector<128xf32>
    %352 = vector.shape_cast %351 : vector<128xf32> to vector<128x1xf32>
    %353 = vector.broadcast %352 : vector<128x1xf32> to vector<128x128xf32>
    %354 = arith.subf %350, %353 : vector<128x128xf32>
    %355 = math.exp %354 : vector<128x128xf32>
    %cst_132 = arith.constant dense<0.000000e+00> : vector<128xf32>
    %356 = vector.multi_reduction <add>, %355, %cst_132 [1] : vector<128x128xf32> to vector<128xf32>
    %357 = vector.shape_cast %356 : vector<128xf32> to vector<128x1xf32>
    %358 = math.log %357 : vector<128x1xf32>
    %359 = vector.broadcast %358 : vector<128x1xf32> to vector<128x128xf32>
    %360 = arith.subf %354, %359 : vector<128x128xf32>
    %c0_133 = arith.constant 0 : index
    %c0_134 = arith.constant 0 : index
    %361 = vector.load %arg8[%c0_133, %c0_134] : memref<128x128xf32, #tpu.memory_space<vmem>>, vector<128x128xf32>
    tpu.vector_store %arg8[%c0_133, %c0_134], %360 {strides = array<i32>} : memref<128x128xf32, #tpu.memory_space<vmem>>, vector<128x128xf32>,
    %c0_135 = arith.constant 0 : index
    %c0_136 = arith.constant 0 : index
    %362 = vector.load %arg9[%c0_135, %c0_136] : memref<8x128xf32, #tpu.memory_space<vmem>>, vector<8x128xf32>
    tpu.vector_store %arg9[%c0_135, %c0_136], %343 {strides = array<i32>} : memref<8x128xf32, #tpu.memory_space<vmem>>, vector<8x128xf32>,
    %c0_137 = arith.constant 0 : index
    %c0_138 = arith.constant 0 : index
    %363 = vector.load %arg10[%c0_137, %c0_138] : memref<8x128xf32, #tpu.memory_space<vmem>>, vector<8x128xf32>
    tpu.vector_store %arg10[%c0_137, %c0_138], %341 {strides = array<i32>} : memref<8x128xf32, #tpu.memory_space<vmem>>, vector<8x128xf32>,
    return
  }
}

</mosaic_0001>

<llo_original>
// kernel: tpu_custom_call.1
$region0: #{tpu_custom_call.1}
  #allocation0 [shape = 'u32[]', space=smem, size = 0x4, offset = 0x4, fixed_abs, tag = 'smem constant byte address 0x4 - core index']
  #allocation1 [shape = 'u32[144,128]{1,0:T(1,128)}', space=vmem, size = 0x12000, scoped, tag = 'internal scratch']
  #allocation2 [shape = 'f32[128,512]{1,0:T(8,128)}', space=vmem, size = 0x40000, scoped, tag = 'scratch operand']
  #allocation3 [shape = 'f32[128,128]{1,0:T(8,128)}', space=vmem, size = 0x10000, scoped, tag = 'scratch operand']
  %s0 = inlined_call_operand.vmem [shape: f32[128,64], index: 0, kind: input, shape index: {}]
  %s1 = inlined_call_operand.vmem [shape: f32[8,128], index: 1, kind: input, shape index: {}]
  %s2 = inlined_call_operand.vmem [shape: f32[8,128], index: 2, kind: input, shape index: {}]
  %s3 = inlined_call_operand.hbm [shape: f32[64,512], index: 3, kind: input, shape index: {}]
  %s4 = inlined_call_operand.hbm [shape: f32[128,512], index: 4, kind: input, shape index: {}]
  %s5 = inlined_call_operand.vmem [shape: f32[1,512], index: 5, kind: input, shape index: {}]
  %s6 = inlined_call_operand.vmem [shape: f32[128,128], index: 6, kind: input, shape index: {}]
  %s7 = inlined_call_operand.vmem [shape: f32[1,128], index: 7, kind: input, shape index: {}]
  %s8 = inlined_call_operand.hbm [shape: f32[128,128], index: 8, kind: output, shape index: {0}]
  %s9 = inlined_call_operand.hbm [shape: f32[8,128], index: 9, kind: output, shape index: {1}]
  %s10 = inlined_call_operand.hbm [shape: f32[8,128], index: 10, kind: output, shape index: {2}]
  %11 = xla_tuple %s8, %s9, %s10
  %s12 = sld [smem:[#allocation0]]
  $region66: #{tpu_custom_call.1} parent=0
    _
  %s14 = ssub.s32 1, %s12
  %s15 = scalar_select 0, %s14, %s12
  $region1: #{tpu_custom_call.1} parent=0
    #allocation4 [shape = 'u8[131072]{0}', space=vmem, size = 0x20000, scoped, tag = 'input window, operand 3, single buffered']
    #allocation5 [shape = 's32[1]{0}', space=sflag, size = 0x4, scoped, tag = 'scoped memory for tpu_custom_call.1']
    #allocation6 [shape = 's32[1]{0}', space=sflag, size = 0x4, scoped, tag = 'scoped memory for tpu_custom_call.1']
    #allocation7 [shape = 'u8[262144]{0}', space=vmem, size = 0x40000, scoped, tag = 'input window, operand 4, single buffered']
    #allocation8 [shape = 's32[1]{0}', space=sflag, size = 0x4, scoped, tag = 'scoped memory for tpu_custom_call.1']
    #allocation9 [shape = 'u8[65536]{0}', space=vmem, size = 0x10000, scoped, tag = 'output window, operand 0, single buffered']
    #allocation10 [shape = 'u8[4096]{0}', space=vmem, size = 0x1000, scoped, tag = 'output window, operand 1, single buffered']
    #allocation11 [shape = 's32[1]{0}', space=sflag, size = 0x4, scoped, tag = 'scoped memory for tpu_custom_call.1']
    #allocation12 [shape = 'u8[4096]{0}', space=vmem, size = 0x1000, scoped, tag = 'output window, operand 2, single buffered']
    %16 = vsyncpa [#allocation5], 0
    %17 = vsyncpa [#allocation8], 0
    %18 = vsyncpa [#allocation6], 0
    %19 = vsyncpa [#allocation11], 0
    // Predicated region
    $region2: #{tpu_custom_call.1} parent=1 // pred_check
      _
    $region3: #{tpu_custom_call.1} parent=1 // pred_check_branch
      %21 = sbr.rel (0) target = $region5
    $region4: #{tpu_custom_call.1} parent=1 // pred_region
      _
    $region5: #{tpu_custom_call.1} parent=1 // pred_fallthru
      _
    // Predicated region
    $region6: #{tpu_custom_call.1} parent=1 // pred_check
      _
    $region7: #{tpu_custom_call.1} parent=1 // pred_check_branch
      %23 = sbr.rel (0) target = $region9
    $region8: #{tpu_custom_call.1} parent=1 // pred_region
      _
    $region9: #{tpu_custom_call.1} parent=1 // pred_fallthru
      _
    // Predicated region
    $region10: #{tpu_custom_call.1} parent=1 // pred_check
      _
    $region11: #{tpu_custom_call.1} parent=1 // pred_check_branch
      %25 = sbr.rel (0) target = $region13
    $region12: #{tpu_custom_call.1} parent=1 // pred_region
      _
    $region13: #{tpu_custom_call.1} parent=1 // pred_fallthru
      _
    // Predicated region
    $region14: #{tpu_custom_call.1} parent=1 // pred_check
      _
    $region15: #{tpu_custom_call.1} parent=1 // pred_check_branch
      %27 = sbr.rel (0) target = $region17
    $region16: #{tpu_custom_call.1} parent=1 // pred_region
      %s29 = ssub.s32 4096, 4096
      %30 = vsyncadd [#allocation5], %s29
      %s31 = sshll.u32 [#allocation4], 4
      %s32 = int_to_ptr.vmem [resolvable:$true] %s31
      %37 = dma.hbm_to_vmem [thread:$0]  %s3, 4096, %s32, [#allocation5], 512, 512, 32
    $region17: #{tpu_custom_call.1} parent=1 // pred_fallthru
      _
    // Predicated region
    $region18: #{tpu_custom_call.1} parent=1 // pred_check
      _
    $region19: #{tpu_custom_call.1} parent=1 // pred_check_branch
      %39 = sbr.rel (0) target = $region21
    $region20: #{tpu_custom_call.1} parent=1 // pred_region
      %s41 = ssub.s32 8192, 8192
      %42 = vsyncadd [#allocation8], %s41
      %s43 = sshll.u32 [#allocation7], 4
      %s44 = int_to_ptr.vmem [resolvable:$true] %s43
      %49 = dma.hbm_to_vmem [thread:$0]  %s4, 8192, %s44, [#allocation8], 512, 512, 32
    $region21: #{tpu_custom_call.1} parent=1 // pred_fallthru
      _
    // Predicated region
    $region22: #{tpu_custom_call.1} parent=1 // pred_check
      _
    $region23: #{tpu_custom_call.1} parent=1 // pred_check_branch
      %51 = sbr.rel (0) target = $region25
    $region24: #{tpu_custom_call.1} parent=1 // pred_region
      _
    $region25: #{tpu_custom_call.1} parent=1 // pred_fallthru
      _
    // Predicated region
    $region26: #{tpu_custom_call.1} parent=1 // pred_check
      _
    $region27: #{tpu_custom_call.1} parent=1 // pred_check_branch
      %53 = sbr.rel (0) target = $region29
    $region28: #{tpu_custom_call.1} parent=1 // pred_region
      _
    $region29: #{tpu_custom_call.1} parent=1 // pred_fallthru
      _
    // Predicated region
    $region30: #{tpu_custom_call.1} parent=1 // pred_check
      _
    $region31: #{tpu_custom_call.1} parent=1 // pred_check_branch
      %55 = sbr.rel (0) target = $region33
    $region32: #{tpu_custom_call.1} parent=1 // pred_region
      _
    $region33: #{tpu_custom_call.1} parent=1 // pred_fallthru
      _
    // Predicated region
    $region34: #{tpu_custom_call.1} parent=1 // pred_check
      _
    $region35: #{tpu_custom_call.1} parent=1 // pred_check_branch
      %57 = sbr.rel (0) target = $region37
    $region36: #{tpu_custom_call.1} parent=1 // pred_region
      %58 = dma.done [#allocation5], 4096
    $region37: #{tpu_custom_call.1} parent=1 // pred_fallthru
      _
    // Predicated region
    $region38: #{tpu_custom_call.1} parent=1 // pred_check
      _
    $region39: #{tpu_custom_call.1} parent=1 // pred_check_branch
      %60 = sbr.rel (0) target = $region41
    $region40: #{tpu_custom_call.1} parent=1 // pred_region
      %61 = dma.done [#allocation8], 8192
    $region41: #{tpu_custom_call.1} parent=1 // pred_fallthru
      _
    %v62 = vld [vmem:[%s0] sm:$0xff]
    %v63 = vld [vmem:[%s0 + $0x8] sm:$0xff]
    %v64 = vld [vmem:[%s0 + $0x10] sm:$0xff]
    %v65 = vld [vmem:[%s0 + $0x18] sm:$0xff]
    %v66 = vld [vmem:[%s0 + $0x20] sm:$0xff]
    %v67 = vld [vmem:[%s0 + $0x28] sm:$0xff]
    %v68 = vld [vmem:[%s0 + $0x30] sm:$0xff]
    %v69 = vld [vmem:[%s0 + $0x38] sm:$0xff]
    %v70 = vld [vmem:[%s0 + $0x40] sm:$0xff]
    %v71 = vld [vmem:[%s0 + $0x48] sm:$0xff]
    %v72 = vld [vmem:[%s0 + $0x50] sm:$0xff]
    %v73 = vld [vmem:[%s0 + $0x58] sm:$0xff]
    %v74 = vld [vmem:[%s0 + $0x60] sm:$0xff]
    %v75 = vld [vmem:[%s0 + $0x68] sm:$0xff]
    %v76 = vld [vmem:[%s0 + $0x70] sm:$0xff]
    %v77 = vld [vmem:[%s0 + $0x78] sm:$0xff]
    %v78 = vld [vmem:[#allocation4] sm:$0xff]
    %v79 = vld [vmem:[#allocation4 + $0x8] sm:$0xff]
    %v80 = vld [vmem:[#allocation4 + $0x10] sm:$0xff]
    %v81 = vld [vmem:[#allocation4 + $0x18] sm:$0xff]
    %v82 = vld [vmem:[#allocation4 + $0x20] sm:$0xff]
    %v83 = vld [vmem:[#allocation4 + $0x28] sm:$0xff]
    %v84 = vld [vmem:[#allocation4 + $0x30] sm:$0xff]
    %v85 = vld [vmem:[#allocation4 + $0x38] sm:$0xff]
    %v86 = vld [vmem:[#allocation4 + $0x40] sm:$0xff]
    %v87 = vld [vmem:[#allocation4 + $0x48] sm:$0xff]
    %v88 = vld [vmem:[#allocation4 + $0x50] sm:$0xff]
    %v89 = vld [vmem:[#allocation4 + $0x58] sm:$0xff]
    %v90 = vld [vmem:[#allocation4 + $0x60] sm:$0xff]
    %v91 = vld [vmem:[#allocation4 + $0x68] sm:$0xff]
    %v92 = vld [vmem:[#allocation4 + $0x70] sm:$0xff]
    %v93 = vld [vmem:[#allocation4 + $0x78] sm:$0xff]
    %v94 = vld [vmem:[#allocation4 + $0x80] sm:$0xff]
    %v95 = vld [vmem:[#allocation4 + $0x88] sm:$0xff]
    %v96 = vld [vmem:[#allocation4 + $0x90] sm:$0xff]
    %v97 = vld [vmem:[#allocation4 + $0x98] sm:$0xff]
    %v98 = vld [vmem:[#allocation4 + $0xa0] sm:$0xff]
    %v99 = vld [vmem:[#allocation4 + $0xa8] sm:$0xff]
    %v100 = vld [vmem:[#allocation4 + $0xb0] sm:$0xff]
    %v101 = vld [vmem:[#allocation4 + $0xb8] sm:$0xff]
    %v102 = vld [vmem:[#allocation4 + $0xc0] sm:$0xff]
    %v103 = vld [vmem:[#allocation4 + $0xc8] sm:$0xff]
    %v104 = vld [vmem:[#allocation4 + $0xd0] sm:$0xff]
    %v105 = vld [vmem:[#allocation4 + $0xd8] sm:$0xff]
    %v106 = vld [vmem:[#allocation4 + $0xe0] sm:$0xff]
    %v107 = vld [vmem:[#allocation4 + $0xe8] sm:$0xff]
    %v108 = vld [vmem:[#allocation4 + $0xf0] sm:$0xff]
    %v109 = vld [vmem:[#allocation4 + $0xf8] sm:$0xff]
    %v110 = vld [vmem:[%s5] sm:$0xf]
    %v112 = vlaneseq
    %v113 = vshrl.u32 %v112, 7
    %v114 = vsub.s32 0, %v113
    %v115 = vrot.slane %v110, %v114
    %v116 = vlaneseq
    %v117 = vshrl.u32 %v116, 7
    %v118 = vsub.s32 1, %v117
    %v119 = vrot.slane %v110, %v118
    %v120 = vlaneseq
    %v121 = vshrl.u32 %v120, 7
    %v122 = vsub.s32 2, %v121
    %v123 = vrot.slane %v110, %v122
    %v124 = vlaneseq
    %v125 = vshrl.u32 %v124, 7
    %v126 = vsub.s32 3, %v125
    %v127 = vrot.slane %v110, %v126
    %vm132 = vcmask 523264
    %v134 = vsel %vm132, %v62, 0
    %v137 = vsel %vm132, %v63, 0
    %v140 = vsel %vm132, %v64, 0
    %v143 = vsel %vm132, %v65, 0
    %v146 = vsel %vm132, %v66, 0
    %v149 = vsel %vm132, %v67, 0
    %v152 = vsel %vm132, %v68, 0
    %v155 = vsel %vm132, %v69, 0
    %v158 = vsel %vm132, %v70, 0
    %v161 = vsel %vm132, %v71, 0
    %v164 = vsel %vm132, %v72, 0
    %v167 = vsel %vm132, %v73, 0
    %v170 = vsel %vm132, %v74, 0
    %v173 = vsel %vm132, %v75, 0
    %v176 = vsel %vm132, %v76, 0
    %v179 = vsel %vm132, %v77, 0
    %181 = vmatprep.subr.mxu0 0.0
    %182 = vmatpush1.msra.mxu0 0.0
    %183 = vmatprep.subr.mxu0 0.0
    %184 = vmatpush1.msra.mxu0 0.0
    %185 = vmatprep.subr.mxu0 0.0
    %186 = vmatpush1.msra.mxu0 0.0
    %187 = vmatprep.subr.mxu0 0.0
    %188 = vmatpush1.msra.mxu0 0.0
    %189 = vmatprep.subr.mxu0 0.0
    %190 = vmatpush1.msra.mxu0 0.0
    %191 = vmatprep.subr.mxu0 0.0
    %192 = vmatpush1.msra.mxu0 0.0
    %193 = vmatprep.subr.mxu0 0.0
    %194 = vmatpush1.msra.mxu0 0.0
    %195 = vmatprep.subr.mxu0 0.0
    %196 = vmatpush1.msra.mxu0 0.0
    %197 = vmatprep.subr.mxu0 %v107
    %198 = vmatpush1.msra.mxu0 %v106
    %199 = vmatprep.subr.mxu0 %v103
    %200 = vmatpush1.msra.mxu0 %v102
    %201 = vmatprep.subr.mxu0 %v99
    %202 = vmatpush1.msra.mxu0 %v98
    %203 = vmatprep.subr.mxu0 %v95
    %204 = vmatpush1.msra.mxu0 %v94
    %205 = vmatprep.subr.mxu0 %v91
    %206 = vmatpush1.msra.mxu0 %v90
    %207 = vmatprep.subr.mxu0 %v87
    %208 = vmatpush1.msra.mxu0 %v86
    %209 = vmatprep.subr.mxu0 %v83
    %210 = vmatpush1.msra.mxu0 %v82
    %211 = vmatprep.subr.mxu0 %v79
    %212 = vmatpush1.msra.mxu0 %v78
    %213 = vmatprep.subr.mxu0 0.0
    %214 = vmatpush2.msra.mxu0 0.0
    %215 = vmatprep.subr.mxu0 0.0
    %216 = vmatpush2.msra.mxu0 0.0
    %217 = vmatprep.subr.mxu0 0.0
    %218 = vmatpush2.msra.mxu0 0.0
    %219 = vmatprep.subr.mxu0 0.0
    %220 = vmatpush2.msra.mxu0 0.0
    %221 = vmatprep.subr.mxu0 0.0
    %222 = vmatpush2.msra.mxu0 0.0
    %223 = vmatprep.subr.mxu0 0.0
    %224 = vmatpush2.msra.mxu0 0.0
    %225 = vmatprep.subr.mxu0 0.0
    %226 = vmatpush2.msra.mxu0 0.0
    %227 = vmatprep.subr.mxu0 0.0
    %228 = vmatpush2.msra.mxu0 0.0
    %229 = vmatprep.subr.mxu0 0.0
    %230 = vmatpush2.msra.mxu0 0.0
    %231 = vmatprep.subr.mxu0 0.0
    %232 = vmatpush2.msra.mxu0 0.0
    %233 = vmatprep.subr.mxu0 0.0
    %234 = vmatpush2.msra.mxu0 0.0
    %235 = vmatprep.subr.mxu0 0.0
    %236 = vmatpush2.msra.mxu0 0.0
    %237 = vmatprep.subr.mxu0 0.0
    %238 = vmatpush2.msra.mxu0 0.0
    %239 = vmatprep.subr.mxu0 0.0
    %240 = vmatpush2.msra.mxu0 0.0
    %241 = vmatprep.subr.mxu0 0.0
    %242 = vmatpush2.msra.mxu0 0.0
    %243 = vmatprep.subr.mxu0 0.0
    %244 = vmatpush2.msra.mxu0 0.0
    %245 = vmatprep.mubr.f32.mxu0 0.0
    %246 = vmatmul.mubr.f32.gmra.mxu0 %v134
    %v247 = vpop.f32.mrf.mxu0
    %v248 = vadd.f32 %v115, %v247
    %v249 = vpop.f32.mrf.mxu0
    %v250 = vadd.f32 %v119, %v249
    %251 = vmatprep.mubr.f32.mxu0 0.0
    %252 = vmatmul.mubr.f32.gmra.mxu0 %v137
    %v253 = vpop.f32.mrf.mxu0
    %v254 = vadd.f32 %v115, %v253
    %v255 = vpop.f32.mrf.mxu0
    %v256 = vadd.f32 %v119, %v255
    %257 = vmatprep.mubr.f32.mxu0 0.0
    %258 = vmatmul.mubr.f32.gmra.mxu0 %v140
    %v259 = vpop.f32.mrf.mxu0
    %v260 = vadd.f32 %v115, %v259
    %v261 = vpop.f32.mrf.mxu0
    %v262 = vadd.f32 %v119, %v261
    %263 = vmatprep.mubr.f32.mxu0 0.0
    %264 = vmatmul.mubr.f32.gmra.mxu0 %v143
    %v265 = vpop.f32.mrf.mxu0
    %v266 = vadd.f32 %v115, %v265
    %v267 = vpop.f32.mrf.mxu0
    %v268 = vadd.f32 %v119, %v267
    %269 = vmatprep.mubr.f32.mxu0 0.0
    %270 = vmatmul.mubr.f32.gmra.mxu0 %v146
    %v271 = vpop.f32.mrf.mxu0
    %v272 = vadd.f32 %v115, %v271
    %v273 = vpop.f32.mrf.mxu0
    %v274 = vadd.f32 %v119, %v273
    %275 = vmatprep.mubr.f32.mxu0 0.0
    %276 = vmatmul.mubr.f32.gmra.mxu0 %v149
    %v277 = vpop.f32.mrf.mxu0
    %v278 = vadd.f32 %v115, %v277
    %v279 = vpop.f32.mrf.mxu0
    %v280 = vadd.f32 %v119, %v279
    %281 = vmatprep.mubr.f32.mxu0 0.0
    %282 = vmatmul.mubr.f32.gmra.mxu0 %v152
    %v283 = vpop.f32.mrf.mxu0
    %v284 = vadd.f32 %v115, %v283
    %v285 = vpop.f32.mrf.mxu0
    %v286 = vadd.f32 %v119, %v285
    %287 = vmatprep.mubr.f32.mxu0 0.0
    %288 = vmatmul.mubr.f32.gmra.mxu0 %v155
    %v289 = vpop.f32.mrf.mxu0
    %v290 = vadd.f32 %v115, %v289
    %v291 = vpop.f32.mrf.mxu0
    %v292 = vadd.f32 %v119, %v291
    %293 = vmatprep.mubr.f32.mxu0 0.0
    %294 = vmatmul.mubr.f32.gmra.mxu0 %v158
    %v295 = vpop.f32.mrf.mxu0
    %v296 = vadd.f32 %v115, %v295
    %v297 = vpop.f32.mrf.mxu0
    %v298 = vadd.f32 %v119, %v297
    %299 = vmatprep.mubr.f32.mxu0 0.0
    %300 = vmatmul.mubr.f32.gmra.mxu0 %v161
    %v301 = vpop.f32.mrf.mxu0
    %v302 = vadd.f32 %v115, %v301
    %v303 = vpop.f32.mrf.mxu0
    %v304 = vadd.f32 %v119, %v303
    %305 = vmatprep.mubr.f32.mxu0 0.0
    %306 = vmatmul.mubr.f32.gmra.mxu0 %v164
    %v307 = vpop.f32.mrf.mxu0
    %v308 = vadd.f32 %v115, %v307
    %v309 = vpop.f32.mrf.mxu0
    %v310 = vadd.f32 %v119, %v309
    %311 = vmatprep.mubr.f32.mxu0 0.0
    %312 = vmatmul.mubr.f32.gmra.mxu0 %v167
    %v313 = vpop.f32.mrf.mxu0
    %v314 = vadd.f32 %v115, %v313
    %v315 = vpop.f32.mrf.mxu0
    %v316 = vadd.f32 %v119, %v315
    %317 = vmatprep.mubr.f32.mxu0 0.0
    %318 = vmatmul.mubr.f32.gmra.mxu0 %v170
    %v319 = vpop.f32.mrf.mxu0
    %v320 = vadd.f32 %v115, %v319
    %v321 = vpop.f32.mrf.mxu0
    %v322 = vadd.f32 %v119, %v321
    %323 = vmatprep.mubr.f32.mxu0 0.0
    %324 = vmatmul.mubr.f32.gmra.mxu0 %v173
    %v325 = vpop.f32.mrf.mxu0
    %v326 = vadd.f32 %v115, %v325
    %v327 = vpop.f32.mrf.mxu0
    %v328 = vadd.f32 %v119, %v327
    %329 = vmatprep.mubr.f32.mxu0 0.0
    %330 = vmatmul.mubr.f32.gmra.mxu0 %v176
    %v331 = vpop.f32.mrf.mxu0
    %v332 = vadd.f32 %v115, %v331
    %v333 = vpop.f32.mrf.mxu0
    %v334 = vadd.f32 %v119, %v333
    %335 = vmatprep.mubr.f32.mxu0 0.0
    %336 = vmatmul.mubr.f32.gmra.mxu0 %v179
    %v337 = vpop.f32.mrf.mxu0
    %v338 = vadd.f32 %v115, %v337
    %v339 = vpop.f32.mrf.mxu0
    %v340 = vadd.f32 %v119, %v339
    %341 = vdwg.mxu0
    %342 = vmatprep.subr.mxu0 0.0
    %343 = vmatpush1.msra.mxu0 0.0
    %344 = vmatprep.subr.mxu0 0.0
    %345 = vmatpush1.msra.mxu0 0.0
    %346 = vmatprep.subr.mxu0 0.0
    %347 = vmatpush1.msra.mxu0 0.0
    %348 = vmatprep.subr.mxu0 0.0
    %349 = vmatpush1.msra.mxu0 0.0
    %350 = vmatprep.subr.mxu0 0.0
    %351 = vmatpush1.msra.mxu0 0.0
    %352 = vmatprep.subr.mxu0 0.0
    %353 = vmatpush1.msra.mxu0 0.0
    %354 = vmatprep.subr.mxu0 0.0
    %355 = vmatpush1.msra.mxu0 0.0
    %356 = vmatprep.subr.mxu0 0.0
    %357 = vmatpush1.msra.mxu0 0.0
    %358 = vmatprep.subr.mxu0 %v109
    %359 = vmatpush1.msra.mxu0 %v108
    %360 = vmatprep.subr.mxu0 %v105
    %361 = vmatpush1.msra.mxu0 %v104
    %362 = vmatprep.subr.mxu0 %v101
    %363 = vmatpush1.msra.mxu0 %v100
    %364 = vmatprep.subr.mxu0 %v97
    %365 = vmatpush1.msra.mxu0 %v96
    %366 = vmatprep.subr.mxu0 %v93
    %367 = vmatpush1.msra.mxu0 %v92
    %368 = vmatprep.subr.mxu0 %v89
    %369 = vmatpush1.msra.mxu0 %v88
    %370 = vmatprep.subr.mxu0 %v85
    %371 = vmatpush1.msra.mxu0 %v84
    %372 = vmatprep.subr.mxu0 %v81
    %373 = vmatpush1.msra.mxu0 %v80
    %374 = vmatprep.subr.mxu0 0.0
    %375 = vmatpush2.msra.mxu0 0.0
    %376 = vmatprep.subr.mxu0 0.0
    %377 = vmatpush2.msra.mxu0 0.0
    %378 = vmatprep.subr.mxu0 0.0
    %379 = vmatpush2.msra.mxu0 0.0
    %380 = vmatprep.subr.mxu0 0.0
    %381 = vmatpush2.msra.mxu0 0.0
    %382 = vmatprep.subr.mxu0 0.0
    %383 = vmatpush2.msra.mxu0 0.0
    %384 = vmatprep.subr.mxu0 0.0
    %385 = vmatpush2.msra.mxu0 0.0
    %386 = vmatprep.subr.mxu0 0.0
    %387 = vmatpush2.msra.mxu0 0.0
    %388 = vmatprep.subr.mxu0 0.0
    %389 = vmatpush2.msra.mxu0 0.0
    %390 = vmatprep.subr.mxu0 0.0
    %391 = vmatpush2.msra.mxu0 0.0
    %392 = vmatprep.subr.mxu0 0.0
    %393 = vmatpush2.msra.mxu0 0.0
    %394 = vmatprep.subr.mxu0 0.0
    %395 = vmatpush2.msra.mxu0 0.0
    %396 = vmatprep.subr.mxu0 0.0
    %397 = vmatpush2.msra.mxu0 0.0
    %398 = vmatprep.subr.mxu0 0.0
    %399 = vmatpush2.msra.mxu0 0.0
    %400 = vmatprep.subr.mxu0 0.0
    %401 = vmatpush2.msra.mxu0 0.0
    %402 = vmatprep.subr.mxu0 0.0
    %403 = vmatpush2.msra.mxu0 0.0
    %404 = vmatprep.subr.mxu0 0.0
    %405 = vmatpush2.msra.mxu0 0.0
    %406 = vmatprep.mubr.f32.mxu0 0.0
    %407 = vmatmul.mubr.f32.gmra.mxu0 %v134
    %v408 = vpop.f32.mrf.mxu0
    %v409 = vadd.f32 %v123, %v408
    %v410 = vpop.f32.mrf.mxu0
    %v411 = vadd.f32 %v127, %v410
    %412 = vmatprep.mubr.f32.mxu0 0.0
    %413 = vmatmul.mubr.f32.gmra.mxu0 %v137
    %v414 = vpop.f32.mrf.mxu0
    %v415 = vadd.f32 %v123, %v414
    %v416 = vpop.f32.mrf.mxu0
    %v417 = vadd.f32 %v127, %v416
    %418 = vmatprep.mubr.f32.mxu0 0.0
    %419 = vmatmul.mubr.f32.gmra.mxu0 %v140
    %v420 = vpop.f32.mrf.mxu0
    %v421 = vadd.f32 %v123, %v420
    %v422 = vpop.f32.mrf.mxu0
    %v423 = vadd.f32 %v127, %v422
    %424 = vmatprep.mubr.f32.mxu0 0.0
    %425 = vmatmul.mubr.f32.gmra.mxu0 %v143
    %v426 = vpop.f32.mrf.mxu0
    %v427 = vadd.f32 %v123, %v426
    %v428 = vpop.f32.mrf.mxu0
    %v429 = vadd.f32 %v127, %v428
    %430 = vmatprep.mubr.f32.mxu0 0.0
    %431 = vmatmul.mubr.f32.gmra.mxu0 %v146
    %v432 = vpop.f32.mrf.mxu0
    %v433 = vadd.f32 %v123, %v432
    %v434 = vpop.f32.mrf.mxu0
    %v435 = vadd.f32 %v127, %v434
    %436 = vmatprep.mubr.f32.mxu0 0.0
    %437 = vmatmul.mubr.f32.gmra.mxu0 %v149
    %v438 = vpop.f32.mrf.mxu0
    %v439 = vadd.f32 %v123, %v438
    %v440 = vpop.f32.mrf.mxu0
    %v441 = vadd.f32 %v127, %v440
    %442 = vmatprep.mubr.f32.mxu0 0.0
    %443 = vmatmul.mubr.f32.gmra.mxu0 %v152
    %v444 = vpop.f32.mrf.mxu0
    %v445 = vadd.f32 %v123, %v444
    %v446 = vpop.f32.mrf.mxu0
    %v447 = vadd.f32 %v127, %v446
    %448 = vmatprep.mubr.f32.mxu0 0.0
    %449 = vmatmul.mubr.f32.gmra.mxu0 %v155
    %v450 = vpop.f32.mrf.mxu0
    %v451 = vadd.f32 %v123, %v450
    %v452 = vpop.f32.mrf.mxu0
    %v453 = vadd.f32 %v127, %v452
    %454 = vmatprep.mubr.f32.mxu0 0.0
    %455 = vmatmul.mubr.f32.gmra.mxu0 %v158
    %v456 = vpop.f32.mrf.mxu0
    %v457 = vadd.f32 %v123, %v456
    %v458 = vpop.f32.mrf.mxu0
    %v459 = vadd.f32 %v127, %v458
    %460 = vmatprep.mubr.f32.mxu0 0.0
    %461 = vmatmul.mubr.f32.gmra.mxu0 %v161
    %v462 = vpop.f32.mrf.mxu0
    %v463 = vadd.f32 %v123, %v462
    %v464 = vpop.f32.mrf.mxu0
    %v465 = vadd.f32 %v127, %v464
    %466 = vmatprep.mubr.f32.mxu0 0.0
    %467 = vmatmul.mubr.f32.gmra.mxu0 %v164
    %v468 = vpop.f32.mrf.mxu0
    %v469 = vadd.f32 %v123, %v468
    %v470 = vpop.f32.mrf.mxu0
    %v471 = vadd.f32 %v127, %v470
    %472 = vmatprep.mubr.f32.mxu0 0.0
    %473 = vmatmul.mubr.f32.gmra.mxu0 %v167
    %v474 = vpop.f32.mrf.mxu0
    %v475 = vadd.f32 %v123, %v474
    %v476 = vpop.f32.mrf.mxu0
    %v477 = vadd.f32 %v127, %v476
    %478 = vmatprep.mubr.f32.mxu0 0.0
    %479 = vmatmul.mubr.f32.gmra.mxu0 %v170
    %v480 = vpop.f32.mrf.mxu0
    %v481 = vadd.f32 %v123, %v480
    %v482 = vpop.f32.mrf.mxu0
    %v483 = vadd.f32 %v127, %v482
    %484 = vmatprep.mubr.f32.mxu0 0.0
    %485 = vmatmul.mubr.f32.gmra.mxu0 %v173
    %v486 = vpop.f32.mrf.mxu0
    %v487 = vadd.f32 %v123, %v486
    %v488 = vpop.f32.mrf.mxu0
    %v489 = vadd.f32 %v127, %v488
    %490 = vmatprep.mubr.f32.mxu0 0.0
    %491 = vmatmul.mubr.f32.gmra.mxu0 %v176
    %v492 = vpop.f32.mrf.mxu0
    %v493 = vadd.f32 %v123, %v492
    %v494 = vpop.f32.mrf.mxu0
    %v495 = vadd.f32 %v127, %v494
    %496 = vmatprep.mubr.f32.mxu0 0.0
    %497 = vmatmul.mubr.f32.gmra.mxu0 %v179
    %v498 = vpop.f32.mrf.mxu0
    %v499 = vadd.f32 %v123, %v498
    %v500 = vpop.f32.mrf.mxu0
    %v501 = vadd.f32 %v127, %v500
    %502 = vdwg.mxu0
    %503 = vst [vmem:[#allocation2] sm:$0xff] %v248
    %504 = vst [vmem:[#allocation2 + $0x8] sm:$0xff] %v250
    %505 = vst [vmem:[#allocation2 + $0x10] sm:$0xff] %v409
    %506 = vst [vmem:[#allocation2 + $0x18] sm:$0xff] %v411
    %507 = vst [vmem:[#allocation2 + $0x20] sm:$0xff] %v254
    %508 = vst [vmem:[#allocation2 + $0x28] sm:$0xff] %v256
    %509 = vst [vmem:[#allocation2 + $0x30] sm:$0xff] %v415
    %510 = vst [vmem:[#allocation2 + $0x38] sm:$0xff] %v417
    %511 = vst [vmem:[#allocation2 + $0x40] sm:$0xff] %v260
    %512 = vst [vmem:[#allocation2 + $0x48] sm:$0xff] %v262
    %513 = vst [vmem:[#allocation2 + $0x50] sm:$0xff] %v421
    %514 = vst [vmem:[#allocation2 + $0x58] sm:$0xff] %v423
    %515 = vst [vmem:[#allocation2 + $0x60] sm:$0xff] %v266
    %516 = vst [vmem:[#allocation2 + $0x68] sm:$0xff] %v268
    %517 = vst [vmem:[#allocation2 + $0x70] sm:$0xff] %v427
    %518 = vst [vmem:[#allocation2 + $0x78] sm:$0xff] %v429
    %519 = vst [vmem:[#allocation2 + $0x80] sm:$0xff] %v272
    %520 = vst [vmem:[#allocation2 + $0x88] sm:$0xff] %v274
    %521 = vst [vmem:[#allocation2 + $0x90] sm:$0xff] %v433
    %522 = vst [vmem:[#allocation2 + $0x98] sm:$0xff] %v435
    %523 = vst [vmem:[#allocation2 + $0xa0] sm:$0xff] %v278
    %524 = vst [vmem:[#allocation2 + $0xa8] sm:$0xff] %v280
    %525 = vst [vmem:[#allocation2 + $0xb0] sm:$0xff] %v439
    %526 = vst [vmem:[#allocation2 + $0xb8] sm:$0xff] %v441
    %527 = vst [vmem:[#allocation2 + $0xc0] sm:$0xff] %v284
    %528 = vst [vmem:[#allocation2 + $0xc8] sm:$0xff] %v286
    %529 = vst [vmem:[#allocation2 + $0xd0] sm:$0xff] %v445
    %530 = vst [vmem:[#allocation2 + $0xd8] sm:$0xff] %v447
    %531 = vst [vmem:[#allocation2 + $0xe0] sm:$0xff] %v290
    %532 = vst [vmem:[#allocation2 + $0xe8] sm:$0xff] %v292
    %533 = vst [vmem:[#allocation2 + $0xf0] sm:$0xff] %v451
    %534 = vst [vmem:[#allocation2 + $0xf8] sm:$0xff] %v453
    %535 = vst [vmem:[#allocation2 + $0x100] sm:$0xff] %v296
    %536 = vst [vmem:[#allocation2 + $0x108] sm:$0xff] %v298
    %537 = vst [vmem:[#allocation2 + $0x110] sm:$0xff] %v457
    %538 = vst [vmem:[#allocation2 + $0x118] sm:$0xff] %v459
    %539 = vst [vmem:[#allocation2 + $0x120] sm:$0xff] %v302
    %540 = vst [vmem:[#allocation2 + $0x128] sm:$0xff] %v304
    %541 = vst [vmem:[#allocation2 + $0x130] sm:$0xff] %v463
    %542 = vst [vmem:[#allocation2 + $0x138] sm:$0xff] %v465
    %543 = vst [vmem:[#allocation2 + $0x140] sm:$0xff] %v308
    %544 = vst [vmem:[#allocation2 + $0x148] sm:$0xff] %v310
    %545 = vst [vmem:[#allocation2 + $0x150] sm:$0xff] %v469
    %546 = vst [vmem:[#allocation2 + $0x158] sm:$0xff] %v471
    %547 = vst [vmem:[#allocation2 + $0x160] sm:$0xff] %v314
    %548 = vst [vmem:[#allocation2 + $0x168] sm:$0xff] %v316
    %549 = vst [vmem:[#allocation2 + $0x170] sm:$0xff] %v475
    %550 = vst [vmem:[#allocation2 + $0x178] sm:$0xff] %v477
    %551 = vst [vmem:[#allocation2 + $0x180] sm:$0xff] %v320
    %552 = vst [vmem:[#allocation2 + $0x188] sm:$0xff] %v322
    %553 = vst [vmem:[#allocation2 + $0x190] sm:$0xff] %v481
    %554 = vst [vmem:[#allocation2 + $0x198] sm:$0xff] %v483
    %555 = vst [vmem:[#allocation2 + $0x1a0] sm:$0xff] %v326
    %556 = vst [vmem:[#allocation2 + $0x1a8] sm:$0xff] %v328
    %557 = vst [vmem:[#allocation2 + $0x1b0] sm:$0xff] %v487
    %558 = vst [vmem:[#allocation2 + $0x1b8] sm:$0xff] %v489
    %559 = vst [vmem:[#allocation2 + $0x1c0] sm:$0xff] %v332
    %560 = vst [vmem:[#allocation2 + $0x1c8] sm:$0xff] %v334
    %561 = vst [vmem:[#allocation2 + $0x1d0] sm:$0xff] %v493
    %562 = vst [vmem:[#allocation2 + $0x1d8] sm:$0xff] %v495
    %563 = vst [vmem:[#allocation2 + $0x1e0] sm:$0xff] %v338
    %564 = vst [vmem:[#allocation2 + $0x1e8] sm:$0xff] %v340
    %565 = vst [vmem:[#allocation2 + $0x1f0] sm:$0xff] %v499
    %566 = vst [vmem:[#allocation2 + $0x1f8] sm:$0xff] %v501
    %v567 = vld [vmem:[%s1] sm:$0xff]
    %v568 = vld [vmem:[%s2] sm:$0xff]
    %v569 = vld [vmem:[#allocation2] sm:$0xff]
    %v570 = vld [vmem:[#allocation2 + $0x8] sm:$0xff]
    %v571 = vld [vmem:[#allocation2 + $0x10] sm:$0xff]
    %v572 = vld [vmem:[#allocation2 + $0x18] sm:$0xff]
    %v573 = vld [vmem:[#allocation7] sm:$0xff]
    %v574 = vld [vmem:[#allocation7 + $0x8] sm:$0xff]
    %v575 = vld [vmem:[#allocation7 + $0x10] sm:$0xff]
    %v576 = vld [vmem:[#allocation7 + $0x18] sm:$0xff]
    %v577 = vld [vmem:[#allocation7 + $0x20] sm:$0xff]
    %v578 = vld [vmem:[#allocation7 + $0x28] sm:$0xff]
    %v579 = vld [vmem:[#allocation7 + $0x30] sm:$0xff]
    %v580 = vld [vmem:[#allocation7 + $0x38] sm:$0xff]
    %v581 = vld [vmem:[#allocation7 + $0x40] sm:$0xff]
    %v582 = vld [vmem:[#allocation7 + $0x48] sm:$0xff]
    %v583 = vld [vmem:[#allocation7 + $0x50] sm:$0xff]
    %v584 = vld [vmem:[#allocation7 + $0x58] sm:$0xff]
    %v585 = vld [vmem:[#allocation7 + $0x60] sm:$0xff]
    %v586 = vld [vmem:[#allocation7 + $0x68] sm:$0xff]
    %v587 = vld [vmem:[#allocation7 + $0x70] sm:$0xff]
    %v588 = vld [vmem:[#allocation7 + $0x78] sm:$0xff]
    %v589 = vld [vmem:[#allocation7 + $0x80] sm:$0xff]
    %v590 = vld [vmem:[#allocation7 + $0x88] sm:$0xff]
    %v591 = vld [vmem:[#allocation7 + $0x90] sm:$0xff]
    %v592 = vld [vmem:[#allocation7 + $0x98] sm:$0xff]
    %v593 = vld [vmem:[#allocation7 + $0xa0] sm:$0xff]
    %v594 = vld [vmem:[#allocation7 + $0xa8] sm:$0xff]
    %v595 = vld [vmem:[#allocation7 + $0xb0] sm:$0xff]
    %v596 = vld [vmem:[#allocation7 + $0xb8] sm:$0xff]
    %v597 = vld [vmem:[#allocation7 + $0xc0] sm:$0xff]
    %v598 = vld [vmem:[#allocation7 + $0xc8] sm:$0xff]
    %v599 = vld [vmem:[#allocation7 + $0xd0] sm:$0xff]
    %v600 = vld [vmem:[#allocation7 + $0xd8] sm:$0xff]
    %v601 = vld [vmem:[#allocation7 + $0xe0] sm:$0xff]
    %v602 = vld [vmem:[#allocation7 + $0xe8] sm:$0xff]
    %v603 = vld [vmem:[#allocation7 + $0xf0] sm:$0xff]
    %v604 = vld [vmem:[#allocation7 + $0xf8] sm:$0xff]
    %v605 = vld [vmem:[#allocation7 + $0x100] sm:$0xff]
    %v606 = vld [vmem:[#allocation7 + $0x108] sm:$0xff]
    %v607 = vld [vmem:[#allocation7 + $0x110] sm:$0xff]
    %v608 = vld [vmem:[#allocation7 + $0x118] sm:$0xff]
    %v609 = vld [vmem:[#allocation7 + $0x120] sm:$0xff]
    %v610 = vld [vmem:[#allocation7 + $0x128] sm:$0xff]
    %v611 = vld [vmem:[#allocation7 + $0x130] sm:$0xff]
    %v612 = vld [vmem:[#allocation7 + $0x138] sm:$0xff]
    %v613 = vld [vmem:[#allocation7 + $0x140] sm:$0xff]
    %v614 = vld [vmem:[#allocation7 + $0x148] sm:$0xff]
    %v615 = vld [vmem:[#allocation7 + $0x150] sm:$0xff]
    %v616 = vld [vmem:[#allocation7 + $0x158] sm:$0xff]
    %v617 = vld [vmem:[#allocation7 + $0x160] sm:$0xff]
    %v618 = vld [vmem:[#allocation7 + $0x168] sm:$0xff]
    %v619 = vld [vmem:[#allocation7 + $0x170] sm:$0xff]
    %v620 = vld [vmem:[#allocation7 + $0x178] sm:$0xff]
    %v621 = vld [vmem:[#allocation7 + $0x180] sm:$0xff]
    %v622 = vld [vmem:[#allocation7 + $0x188] sm:$0xff]
    %v623 = vld [vmem:[#allocation7 + $0x190] sm:$0xff]
    %v624 = vld [vmem:[#allocation7 + $0x198] sm:$0xff]
    %v625 = vld [vmem:[#allocation7 + $0x1a0] sm:$0xff]
    %v626 = vld [vmem:[#allocation7 + $0x1a8] sm:$0xff]
    %v627 = vld [vmem:[#allocation7 + $0x1b0] sm:$0xff]
    %v628 = vld [vmem:[#allocation7 + $0x1b8] sm:$0xff]
    %v629 = vld [vmem:[#allocation7 + $0x1c0] sm:$0xff]
    %v630 = vld [vmem:[#allocation7 + $0x1c8] sm:$0xff]
    %v631 = vld [vmem:[#allocation7 + $0x1d0] sm:$0xff]
    %v632 = vld [vmem:[#allocation7 + $0x1d8] sm:$0xff]
    %v633 = vld [vmem:[#allocation7 + $0x1e0] sm:$0xff]
    %v634 = vld [vmem:[#allocation7 + $0x1e8] sm:$0xff]
    %v635 = vld [vmem:[#allocation7 + $0x1f0] sm:$0xff]
    %v636 = vld [vmem:[#allocation7 + $0x1f8] sm:$0xff]
    %637 = vmatprep.subr.mxu0 %v634
    %638 = vmatpush1.msra.mxu0 %v633
    %639 = vmatprep.subr.mxu0 %v630
    %640 = vmatpush1.msra.mxu0 %v629
    %641 = vmatprep.subr.mxu0 %v626
    %642 = vmatpush1.msra.mxu0 %v625
    %643 = vmatprep.subr.mxu0 %v622
    %644 = vmatpush1.msra.mxu0 %v621
    %645 = vmatprep.subr.mxu0 %v618
    %646 = vmatpush1.msra.mxu0 %v617
    %647 = vmatprep.subr.mxu0 %v614
    %648 = vmatpush1.msra.mxu0 %v613
    %649 = vmatprep.subr.mxu0 %v610
    %650 = vmatpush1.msra.mxu0 %v609
    %651 = vmatprep.subr.mxu0 %v606
    %652 = vmatpush1.msra.mxu0 %v605
    %653 = vmatprep.subr.mxu0 %v602
    %654 = vmatpush1.msra.mxu0 %v601
    %655 = vmatprep.subr.mxu0 %v598
    %656 = vmatpush1.msra.mxu0 %v597
    %657 = vmatprep.subr.mxu0 %v594
    %658 = vmatpush1.msra.mxu0 %v593
    %659 = vmatprep.subr.mxu0 %v590
    %660 = vmatpush1.msra.mxu0 %v589
    %661 = vmatprep.subr.mxu0 %v586
    %662 = vmatpush1.msra.mxu0 %v585
    %663 = vmatprep.subr.mxu0 %v582
    %664 = vmatpush1.msra.mxu0 %v581
    %665 = vmatprep.subr.mxu0 %v578
    %666 = vmatpush1.msra.mxu0 %v577
    %667 = vmatprep.subr.mxu0 %v574
    %668 = vmatpush1.msra.mxu0 %v573
    %669 = vmatprep.subr.mxu0 0.0
    %670 = vmatpush2.msra.mxu0 0.0
    %671 = vmatprep.subr.mxu0 0.0
    %672 = vmatpush2.msra.mxu0 0.0
    %673 = vmatprep.subr.mxu0 0.0
    %674 = vmatpush2.msra.mxu0 0.0
    %675 = vmatprep.subr.mxu0 0.0
    %676 = vmatpush2.msra.mxu0 0.0
    %677 = vmatprep.subr.mxu0 0.0
    %678 = vmatpush2.msra.mxu0 0.0
    %679 = vmatprep.subr.mxu0 0.0
    %680 = vmatpush2.msra.mxu0 0.0
    %681 = vmatprep.subr.mxu0 0.0
    %682 = vmatpush2.msra.mxu0 0.0
    %683 = vmatprep.subr.mxu0 0.0
    %684 = vmatpush2.msra.mxu0 0.0
    %685 = vmatprep.subr.mxu0 0.0
    %686 = vmatpush2.msra.mxu0 0.0
    %687 = vmatprep.subr.mxu0 0.0
    %688 = vmatpush2.msra.mxu0 0.0
    %689 = vmatprep.subr.mxu0 0.0
    %690 = vmatpush2.msra.mxu0 0.0
    %691 = vmatprep.subr.mxu0 0.0
    %692 = vmatpush2.msra.mxu0 0.0
    %693 = vmatprep.subr.mxu0 0.0
    %694 = vmatpush2.msra.mxu0 0.0
    %695 = vmatprep.subr.mxu0 0.0
    %696 = vmatpush2.msra.mxu0 0.0
    %697 = vmatprep.subr.mxu0 0.0
    %698 = vmatpush2.msra.mxu0 0.0
    %699 = vmatprep.subr.mxu0 0.0
    %700 = vmatpush2.msra.mxu0 0.0
    %701 = vmatprep.mubr.f32.mxu0 0.0
    %702 = vmatmul.mubr.f32.gmra.mxu0 %v567
    %v703 = vpop.f32.mrf.mxu0
    %v704 = vadd.f32 0.0, %v703
    %v705 = vpop.f32.mrf.mxu0
    %v706 = vadd.f32 0.0, %v705
    %707 = vdwg.mxu0
    %708 = vmatprep.subr.mxu0 %v636
    %709 = vmatpush1.msra.mxu0 %v635
    %710 = vmatprep.subr.mxu0 %v632
    %711 = vmatpush1.msra.mxu0 %v631
    %712 = vmatprep.subr.mxu0 %v628
    %713 = vmatpush1.msra.mxu0 %v627
    %714 = vmatprep.subr.mxu0 %v624
    %715 = vmatpush1.msra.mxu0 %v623
    %716 = vmatprep.subr.mxu0 %v620
    %717 = vmatpush1.msra.mxu0 %v619
    %718 = vmatprep.subr.mxu0 %v616
    %719 = vmatpush1.msra.mxu0 %v615
    %720 = vmatprep.subr.mxu0 %v612
    %721 = vmatpush1.msra.mxu0 %v611
    %722 = vmatprep.subr.mxu0 %v608
    %723 = vmatpush1.msra.mxu0 %v607
    %724 = vmatprep.subr.mxu0 %v604
    %725 = vmatpush1.msra.mxu0 %v603
    %726 = vmatprep.subr.mxu0 %v600
    %727 = vmatpush1.msra.mxu0 %v599
    %728 = vmatprep.subr.mxu0 %v596
    %729 = vmatpush1.msra.mxu0 %v595
    %730 = vmatprep.subr.mxu0 %v592
    %731 = vmatpush1.msra.mxu0 %v591
    %732 = vmatprep.subr.mxu0 %v588
    %733 = vmatpush1.msra.mxu0 %v587
    %734 = vmatprep.subr.mxu0 %v584
    %735 = vmatpush1.msra.mxu0 %v583
    %736 = vmatprep.subr.mxu0 %v580
    %737 = vmatpush1.msra.mxu0 %v579
    %738 = vmatprep.subr.mxu0 %v576
    %739 = vmatpush1.msra.mxu0 %v575
    %740 = vmatprep.subr.mxu0 0.0
    %741 = vmatpush2.msra.mxu0 0.0
    %742 = vmatprep.subr.mxu0 0.0
    %743 = vmatpush2.msra.mxu0 0.0
    %744 = vmatprep.subr.mxu0 0.0
    %745 = vmatpush2.msra.mxu0 0.0
    %746 = vmatprep.subr.mxu0 0.0
    %747 = vmatpush2.msra.mxu0 0.0
    %748 = vmatprep.subr.mxu0 0.0
    %749 = vmatpush2.msra.mxu0 0.0
    %750 = vmatprep.subr.mxu0 0.0
    %751 = vmatpush2.msra.mxu0 0.0
    %752 = vmatprep.subr.mxu0 0.0
    %753 = vmatpush2.msra.mxu0 0.0
    %754 = vmatprep.subr.mxu0 0.0
    %755 = vmatpush2.msra.mxu0 0.0
    %756 = vmatprep.subr.mxu0 0.0
    %757 = vmatpush2.msra.mxu0 0.0
    %758 = vmatprep.subr.mxu0 0.0
    %759 = vmatpush2.msra.mxu0 0.0
    %760 = vmatprep.subr.mxu0 0.0
    %761 = vmatpush2.msra.mxu0 0.0
    %762 = vmatprep.subr.mxu0 0.0
    %763 = vmatpush2.msra.mxu0 0.0
    %764 = vmatprep.subr.mxu0 0.0
    %765 = vmatpush2.msra.mxu0 0.0
    %766 = vmatprep.subr.mxu0 0.0
    %767 = vmatpush2.msra.mxu0 0.0
    %768 = vmatprep.subr.mxu0 0.0
    %769 = vmatpush2.msra.mxu0 0.0
    %770 = vmatprep.subr.mxu0 0.0
    %771 = vmatpush2.msra.mxu0 0.0
    %772 = vmatprep.mubr.f32.mxu0 0.0
    %773 = vmatmul.mubr.f32.gmra.mxu0 %v567
    %v774 = vpop.f32.mrf.mxu0
    %v775 = vadd.f32 0.0, %v774
    %v776 = vpop.f32.mrf.mxu0
    %v777 = vadd.f32 0.0, %v776
    %778 = vdwg.mxu0
    %v779 = vadd.f32 %v569, %v704
    %v780 = vadd.f32 %v570, %v706
    %v781 = vadd.f32 %v571, %v775
    %v782 = vadd.f32 %v572, %v777
    %v783 = vxor.u32 %v779, 2147483648
    %v784 = vxor.u32 %v780, 2147483648
    %v785 = vxor.u32 %v781, 2147483648
    %v786 = vmul.f32 %v783, 1.442695
    %v787 = vpow.pop %v786
    %v788 = vmul.f32 %v784, 1.442695
    %v789 = vpow.pop %v788
    %v790 = vmul.f32 %v785, 1.442695
    %v791 = vpow.pop %v790
    %v792 = vadd.f32 %v787, 1.0
    %v793 = vadd.f32 %v789, 1.0
    %v794 = vadd.f32 %v791, 1.0
    %v795 = vrcp.pop %v792
    %v796 = vmul.f32 1.0, %v795
    %v797 = vrcp.pop %v793
    %v798 = vmul.f32 1.0, %v797
    %v799 = vrcp.pop %v794
    %v800 = vmul.f32 1.0, %v799
    %v801 = vtanh.pop %v782
    %v802 = vmul.f32 %v798, %v568
    %v803 = vmul.f32 %v796, %v801
    %v804 = vadd.f32 %v802, %v803
    %v805 = vtanh.pop %v804
    %v806 = vmul.f32 %v800, %v805
    %807 = vst [vmem:[#allocation3] sm:$0xff] %v806
    %v808 = vld [vmem:[#allocation2 + $0x20] sm:$0xff]
    %v809 = vld [vmem:[#allocation2 + $0x28] sm:$0xff]
    %v810 = vld [vmem:[#allocation2 + $0x30] sm:$0xff]
    %v811 = vld [vmem:[#allocation2 + $0x38] sm:$0xff]
    %v812 = vld [vmem:[#allocation7] sm:$0xff]
    %v813 = vld [vmem:[#allocation7 + $0x8] sm:$0xff]
    %v814 = vld [vmem:[#allocation7 + $0x10] sm:$0xff]
    %v815 = vld [vmem:[#allocation7 + $0x18] sm:$0xff]
    %v816 = vld [vmem:[#allocation7 + $0x20] sm:$0xff]
    %v817 = vld [vmem:[#allocation7 + $0x28] sm:$0xff]
    %v818 = vld [vmem:[#allocation7 + $0x30] sm:$0xff]
    %v819 = vld [vmem:[#allocation7 + $0x38] sm:$0xff]
    %v820 = vld [vmem:[#allocation7 + $0x40] sm:$0xff]
    %v821 = vld [vmem:[#allocation7 + $0x48] sm:$0xff]
    %v822 = vld [vmem:[#allocation7 + $0x50] sm:$0xff]
    %v823 = vld [vmem:[#allocation7 + $0x58] sm:$0xff]
    %v824 = vld [vmem:[#allocation7 + $0x60] sm:$0xff]
    %v825 = vld [vmem:[#allocation7 + $0x68] sm:$0xff]
    %v826 = vld [vmem:[#allocation7 + $0x70] sm:$0xff]
    %v827 = vld [vmem:[#allocation7 + $0x78] sm:$0xff]
    %v828 = vld [vmem:[#allocation7 + $0x80] sm:$0xff]
    %v829 = vld [vmem:[#allocation7 + $0x88] sm:$0xff]
    %v830 = vld [vmem:[#allocation7 + $0x90] sm:$0xff]
    %v831 = vld [vmem:[#allocation7 + $0x98] sm:$0xff]
    %v832 = vld [vmem:[#allocation7 + $0xa0] sm:$0xff]
    %v833 = vld [vmem:[#allocation7 + $0xa8] sm:$0xff]
    %v834 = vld [vmem:[#allocation7 + $0xb0] sm:$0xff]
    %v835 = vld [vmem:[#allocation7 + $0xb8] sm:$0xff]
    %v836 = vld [vmem:[#allocation7 + $0xc0] sm:$0xff]
    %v837 = vld [vmem:[#allocation7 + $0xc8] sm:$0xff]
    %v838 = vld [vmem:[#allocation7 + $0xd0] sm:$0xff]
    %v839 = vld [vmem:[#allocation7 + $0xd8] sm:$0xff]
    %v840 = vld [vmem:[#allocation7 + $0xe0] sm:$0xff]
    %v841 = vld [vmem:[#allocation7 + $0xe8] sm:$0xff]
    %v842 = vld [vmem:[#allocation7 + $0xf0] sm:$0xff]
    %v843 = vld [vmem:[#allocation7 + $0xf8] sm:$0xff]
    %v844 = vld [vmem:[#allocation7 + $0x100] sm:$0xff]
    %v845 = vld [vmem:[#allocation7 + $0x108] sm:$0xff]
    %v846 = vld [vmem:[#allocation7 + $0x110] sm:$0xff]
    %v847 = vld [vmem:[#allocation7 + $0x118] sm:$0xff]
    %v848 = vld [vmem:[#allocation7 + $0x120] sm:$0xff]
    %v849 = vld [vmem:[#allocation7 + $0x128] sm:$0xff]
    %v850 = vld [vmem:[#allocation7 + $0x130] sm:$0xff]
    %v851 = vld [vmem:[#allocation7 + $0x138] sm:$0xff]
    %v852 = vld [vmem:[#allocation7 + $0x140] sm:$0xff]
    %v853 = vld [vmem:[#allocation7 + $0x148] sm:$0xff]
    %v854 = vld [vmem:[#allocation7 + $0x150] sm:$0xff]
    %v855 = vld [vmem:[#allocation7 + $0x158] sm:$0xff]
    %v856 = vld [vmem:[#allocation7 + $0x160] sm:$0xff]
    %v857 = vld [vmem:[#allocation7 + $0x168] sm:$0xff]
    %v858 = vld [vmem:[#allocation7 + $0x170] sm:$0xff]
    %v859 = vld [vmem:[#allocation7 + $0x178] sm:$0xff]
    %v860 = vld [vmem:[#allocation7 + $0x180] sm:$0xff]
    %v861 = vld [vmem:[#allocation7 + $0x188] sm:$0xff]
    %v862 = vld [vmem:[#allocation7 + $0x190] sm:$0xff]
    %v863 = vld [vmem:[#allocation7 + $0x198] sm:$0xff]
    %v864 = vld [vmem:[#allocation7 + $0x1a0] sm:$0xff]
    %v865 = vld [vmem:[#allocation7 + $0x1a8] sm:$0xff]
    %v866 = vld [vmem:[#allocation7 + $0x1b0] sm:$0xff]
    %v867 = vld [vmem:[#allocation7 + $0x1b8] sm:$0xff]
    %v868 = vld [vmem:[#allocation7 + $0x1c0] sm:$0xff]
    %v869 = vld [vmem:[#allocation7 + $0x1c8] sm:$0xff]
    %v870 = vld [vmem:[#allocation7 + $0x1d0] sm:$0xff]
    %v871 = vld [vmem:[#allocation7 + $0x1d8] sm:$0xff]
    %v872 = vld [vmem:[#allocation7 + $0x1e0] sm:$0xff]
    %v873 = vld [vmem:[#allocation7 + $0x1e8] sm:$0xff]
    %v874 = vld [vmem:[#allocation7 + $0x1f0] sm:$0xff]
    %v875 = vld [vmem:[#allocation7 + $0x1f8] sm:$0xff]
    %876 = vmatprep.subr.mxu0 %v873
    %877 = vmatpush1.msra.mxu0 %v872
    %878 = vmatprep.subr.mxu0 %v869
    %879 = vmatpush1.msra.mxu0 %v868
    %880 = vmatprep.subr.mxu0 %v865
    %881 = vmatpush1.msra.mxu0 %v864
    %882 = vmatprep.subr.mxu0 %v861
    %883 = vmatpush1.msra.mxu0 %v860
    %884 = vmatprep.subr.mxu0 %v857
    %885 = vmatpush1.msra.mxu0 %v856
    %886 = vmatprep.subr.mxu0 %v853
    %887 = vmatpush1.msra.mxu0 %v852
    %888 = vmatprep.subr.mxu0 %v849
    %889 = vmatpush1.msra.mxu0 %v848
    %890 = vmatprep.subr.mxu0 %v845
    %891 = vmatpush1.msra.mxu0 %v844
    %892 = vmatprep.subr.mxu0 %v841
    %893 = vmatpush1.msra.mxu0 %v840
    %894 = vmatprep.subr.mxu0 %v837
    %895 = vmatpush1.msra.mxu0 %v836
    %896 = vmatprep.subr.mxu0 %v833
    %897 = vmatpush1.msra.mxu0 %v832
    %898 = vmatprep.subr.mxu0 %v829
    %899 = vmatpush1.msra.mxu0 %v828
    %900 = vmatprep.subr.mxu0 %v825
    %901 = vmatpush1.msra.mxu0 %v824
    %902 = vmatprep.subr.mxu0 %v821
    %903 = vmatpush1.msra.mxu0 %v820
    %904 = vmatprep.subr.mxu0 %v817
    %905 = vmatpush1.msra.mxu0 %v816
    %906 = vmatprep.subr.mxu0 %v813
    %907 = vmatpush1.msra.mxu0 %v812
    %908 = vmatprep.subr.mxu0 0.0
    %909 = vmatpush2.msra.mxu0 0.0
    %910 = vmatprep.subr.mxu0 0.0
    %911 = vmatpush2.msra.mxu0 0.0
    %912 = vmatprep.subr.mxu0 0.0
    %913 = vmatpush2.msra.mxu0 0.0
    %914 = vmatprep.subr.mxu0 0.0
    %915 = vmatpush2.msra.mxu0 0.0
    %916 = vmatprep.subr.mxu0 0.0
    %917 = vmatpush2.msra.mxu0 0.0
    %918 = vmatprep.subr.mxu0 0.0
    %919 = vmatpush2.msra.mxu0 0.0
    %920 = vmatprep.subr.mxu0 0.0
    %921 = vmatpush2.msra.mxu0 0.0
    %922 = vmatprep.subr.mxu0 0.0
    %923 = vmatpush2.msra.mxu0 0.0
    %924 = vmatprep.subr.mxu0 0.0
    %925 = vmatpush2.msra.mxu0 0.0
    %926 = vmatprep.subr.mxu0 0.0
    %927 = vmatpush2.msra.mxu0 0.0
    %928 = vmatprep.subr.mxu0 0.0
    %929 = vmatpush2.msra.mxu0 0.0
    %930 = vmatprep.subr.mxu0 0.0
    %931 = vmatpush2.msra.mxu0 0.0
    %932 = vmatprep.subr.mxu0 0.0
    %933 = vmatpush2.msra.mxu0 0.0
    %934 = vmatprep.subr.mxu0 0.0
    %935 = vmatpush2.msra.mxu0 0.0
    %936 = vmatprep.subr.mxu0 0.0
    %937 = vmatpush2.msra.mxu0 0.0
    %938 = vmatprep.subr.mxu0 0.0
    %939 = vmatpush2.msra.mxu0 0.0
    %940 = vmatprep.mubr.f32.mxu0 0.0
    %941 = vmatmul.mubr.f32.gmra.mxu0 %v806
    %v942 = vpop.f32.mrf.mxu0
    %v943 = vadd.f32 0.0, %v942
    %v944 = vpop.f32.mrf.mxu0
    %v945 = vadd.f32 0.0, %v944
    %946 = vdwg.mxu0
    %947 = vmatprep.subr.mxu0 %v875
    %948 = vmatpush1.msra.mxu0 %v874
    %949 = vmatprep.subr.mxu0 %v871
    %950 = vmatpush1.msra.mxu0 %v870
    %951 = vmatprep.subr.mxu0 %v867
    %952 = vmatpush1.msra.mxu0 %v866
    %953 = vmatprep.subr.mxu0 %v863
    %954 = vmatpush1.msra.mxu0 %v862
    %955 = vmatprep.subr.mxu0 %v859
    %956 = vmatpush1.msra.mxu0 %v858
    %957 = vmatprep.subr.mxu0 %v855
    %958 = vmatpush1.msra.mxu0 %v854
    %959 = vmatprep.subr.mxu0 %v851
    %960 = vmatpush1.msra.mxu0 %v850
    %961 = vmatprep.subr.mxu0 %v847
    %962 = vmatpush1.msra.mxu0 %v846
    %963 = vmatprep.subr.mxu0 %v843
    %964 = vmatpush1.msra.mxu0 %v842
    %965 = vmatprep.subr.mxu0 %v839
    %966 = vmatpush1.msra.mxu0 %v838
    %967 = vmatprep.subr.mxu0 %v835
    %968 = vmatpush1.msra.mxu0 %v834
    %969 = vmatprep.subr.mxu0 %v831
    %970 = vmatpush1.msra.mxu0 %v830
    %971 = vmatprep.subr.mxu0 %v827
    %972 = vmatpush1.msra.mxu0 %v826
    %973 = vmatprep.subr.mxu0 %v823
    %974 = vmatpush1.msra.mxu0 %v822
    %975 = vmatprep.subr.mxu0 %v819
    %976 = vmatpush1.msra.mxu0 %v818
    %977 = vmatprep.subr.mxu0 %v815
    %978 = vmatpush1.msra.mxu0 %v814
    %979 = vmatprep.subr.mxu0 0.0
    %980 = vmatpush2.msra.mxu0 0.0
    %981 = vmatprep.subr.mxu0 0.0
    %982 = vmatpush2.msra.mxu0 0.0
    %983 = vmatprep.subr.mxu0 0.0
    %984 = vmatpush2.msra.mxu0 0.0
    %985 = vmatprep.subr.mxu0 0.0
    %986 = vmatpush2.msra.mxu0 0.0
    %987 = vmatprep.subr.mxu0 0.0
    %988 = vmatpush2.msra.mxu0 0.0
    %989 = vmatprep.subr.mxu0 0.0
    %990 = vmatpush2.msra.mxu0 0.0
    %991 = vmatprep.subr.mxu0 0.0
    %992 = vmatpush2.msra.mxu0 0.0
    %993 = vmatprep.subr.mxu0 0.0
    %994 = vmatpush2.msra.mxu0 0.0
    %995 = vmatprep.subr.mxu0 0.0
    %996 = vmatpush2.msra.mxu0 0.0
    %997 = vmatprep.subr.mxu0 0.0
    %998 = vmatpush2.msra.mxu0 0.0
    %999 = vmatprep.subr.mxu0 0.0
    %1000 = vmatpush2.msra.mxu0 0.0
    %1001 = vmatprep.subr.mxu0 0.0
    %1002 = vmatpush2.msra.mxu0 0.0
    %1003 = vmatprep.subr.mxu0 0.0
    %1004 = vmatpush2.msra.mxu0 0.0
    %1005 = vmatprep.subr.mxu0 0.0
    %1006 = vmatpush2.msra.mxu0 0.0
    %1007 = vmatprep.subr.mxu0 0.0
    %1008 = vmatpush2.msra.mxu0 0.0
    %1009 = vmatprep.subr.mxu0 0.0
    %1010 = vmatpush2.msra.mxu0 0.0
    %1011 = vmatprep.mubr.f32.mxu0 0.0
    %1012 = vmatmul.mubr.f32.gmra.mxu0 %v806
    %v1013 = vpop.f32.mrf.mxu0
    %v1014 = vadd.f32 0.0, %v1013
    %v1015 = vpop.f32.mrf.mxu0
    %v1016 = vadd.f32 0.0, %v1015
    %1017 = vdwg.mxu0
    %v1018 = vadd.f32 %v808, %v943
    %v1019 = vadd.f32 %v809, %v945
    %v1020 = vadd.f32 %v810, %v1014
    %v1021 = vadd.f32 %v811, %v1016
    %v1022 = vxor.u32 %v1018, 2147483648
    %v1023 = vxor.u32 %v1019, 2147483648
    %v1024 = vxor.u32 %v1020, 2147483648
    %v1025 = vmul.f32 %v1022, 1.442695
    %v1026 = vpow.pop %v1025
    %v1027 = vmul.f32 %v1023, 1.442695
    %v1028 = vpow.pop %v1027
    %v1029 = vmul.f32 %v1024, 1.442695
    %v1030 = vpow.pop %v1029
    %v1031 = vadd.f32 %v1026, 1.0
    %v1032 = vadd.f32 %v1028, 1.0
    %v1033 = vadd.f32 %v1030, 1.0
    %v1034 = vrcp.pop %v1031
    %v1035 = vmul.f32 1.0, %v1034
    %v1036 = vrcp.pop %v1032
    %v1037 = vmul.f32 1.0, %v1036
    %v1038 = vrcp.pop %v1033
    %v1039 = vmul.f32 1.0, %v1038
    %v1040 = vtanh.pop %v1021
    %v1041 = vmul.f32 %v1037, %v804
    %v1042 = vmul.f32 %v1035, %v1040
    %v1043 = vadd.f32 %v1041, %v1042
    %v1044 = vtanh.pop %v1043
    %v1045 = vmul.f32 %v1039, %v1044
    %1046 = vst [vmem:[#allocation3 + $0x8] sm:$0xff] %v1045
    %v1047 = vld [vmem:[#allocation2 + $0x40] sm:$0xff]
    %v1048 = vld [vmem:[#allocation2 + $0x48] sm:$0xff]
    %v1049 = vld [vmem:[#allocation2 + $0x50] sm:$0xff]
    %v1050 = vld [vmem:[#allocation2 + $0x58] sm:$0xff]
    %v1051 = vld [vmem:[#allocation7] sm:$0xff]
    %v1052 = vld [vmem:[#allocation7 + $0x8] sm:$0xff]
    %v1053 = vld [vmem:[#allocation7 + $0x10] sm:$0xff]
    %v1054 = vld [vmem:[#allocation7 + $0x18] sm:$0xff]
    %v1055 = vld [vmem:[#allocation7 + $0x20] sm:$0xff]
    %v1056 = vld [vmem:[#allocation7 + $0x28] sm:$0xff]
    %v1057 = vld [vmem:[#allocation7 + $0x30] sm:$0xff]
    %v1058 = vld [vmem:[#allocation7 + $0x38] sm:$0xff]
    %v1059 = vld [vmem:[#allocation7 + $0x40] sm:$0xff]
    %v1060 = vld [vmem:[#allocation7 + $0x48] sm:$0xff]
    %v1061 = vld [vmem:[#allocation7 + $0x50] sm:$0xff]
    %v1062 = vld [vmem:[#allocation7 + $0x58] sm:$0xff]
    %v1063 = vld [vmem:[#allocation7 + $0x60] sm:$0xff]
    %v1064 = vld [vmem:[#allocation7 + $0x68] sm:$0xff]
    %v1065 = vld [vmem:[#allocation7 + $0x70] sm:$0xff]
    %v1066 = vld [vmem:[#allocation7 + $0x78] sm:$0xff]
    %v1067 = vld [vmem:[#allocation7 + $0x80] sm:$0xff]
    %v1068 = vld [vmem:[#allocation7 + $0x88] sm:$0xff]
    %v1069 = vld [vmem:[#allocation7 + $0x90] sm:$0xff]
    %v1070 = vld [vmem:[#allocation7 + $0x98] sm:$0xff]
    %v1071 = vld [vmem:[#allocation7 + $0xa0] sm:$0xff]
    %v1072 = vld [vmem:[#allocation7 + $0xa8] sm:$0xff]
    %v1073 = vld [vmem:[#allocation7 + $0xb0] sm:$0xff]
    %v1074 = vld [vmem:[#allocation7 + $0xb8] sm:$0xff]
    %v1075 = vld [vmem:[#allocation7 + $0xc0] sm:$0xff]
    %v1076 = vld [vmem:[#allocation7 + $0xc8] sm:$0xff]
    %v1077 = vld [vmem:[#allocation7 + $0xd0] sm:$0xff]
    %v1078 = vld [vmem:[#allocation7 + $0xd8] sm:$0xff]
    %v1079 = vld [vmem:[#allocation7 + $0xe0] sm:$0xff]
    %v1080 = vld [vmem:[#allocation7 + $0xe8] sm:$0xff]
    %v1081 = vld [vmem:[#allocation7 + $0xf0] sm:$0xff]
    %v1082 = vld [vmem:[#allocation7 + $0xf8] sm:$0xff]
    %v1083 = vld [vmem:[#allocation7 + $0x100] sm:$0xff]
    %v1084 = vld [vmem:[#allocation7 + $0x108] sm:$0xff]
    %v1085 = vld [vmem:[#allocation7 + $0x110] sm:$0xff]
    %v1086 = vld [vmem:[#allocation7 + $0x118] sm:$0xff]
    %v1087 = vld [vmem:[#allocation7 + $0x120] sm:$0xff]
    %v1088 = vld [vmem:[#allocation7 + $0x128] sm:$0xff]
    %v1089 = vld [vmem:[#allocation7 + $0x130] sm:$0xff]
    %v1090 = vld [vmem:[#allocation7 + $0x138] sm:$0xff]
    %v1091 = vld [vmem:[#allocation7 + $0x140] sm:$0xff]
    %v1092 = vld [vmem:[#allocation7 + $0x148] sm:$0xff]
    %v1093 = vld [vmem:[#allocation7 + $0x150] sm:$0xff]
    %v1094 = vld [vmem:[#allocation7 + $0x158] sm:$0xff]
    %v1095 = vld [vmem:[#allocation7 + $0x160] sm:$0xff]
    %v1096 = vld [vmem:[#allocation7 + $0x168] sm:$0xff]
    %v1097 = vld [vmem:[#allocation7 + $0x170] sm:$0xff]
    %v1098 = vld [vmem:[#allocation7 + $0x178] sm:$0xff]
    %v1099 = vld [vmem:[#allocation7 + $0x180] sm:$0xff]
    %v1100 = vld [vmem:[#allocation7 + $0x188] sm:$0xff]
    %v1101 = vld [vmem:[#allocation7 + $0x190] sm:$0xff]
    %v1102 = vld [vmem:[#allocation7 + $0x198] sm:$0xff]
    %v1103 = vld [vmem:[#allocation7 + $0x1a0] sm:$0xff]
    %v1104 = vld [vmem:[#allocation7 + $0x1a8] sm:$0xff]
    %v1105 = vld [vmem:[#allocation7 + $0x1b0] sm:$0xff]
    %v1106 = vld [vmem:[#allocation7 + $0x1b8] sm:$0xff]
    %v1107 = vld [vmem:[#allocation7 + $0x1c0] sm:$0xff]
    %v1108 = vld [vmem:[#allocation7 + $0x1c8] sm:$0xff]
    %v1109 = vld [vmem:[#allocation7 + $0x1d0] sm:$0xff]
    %v1110 = vld [vmem:[#allocation7 + $0x1d8] sm:$0xff]
    %v1111 = vld [vmem:[#allocation7 + $0x1e0] sm:$0xff]
    %v1112 = vld [vmem:[#allocation7 + $0x1e8] sm:$0xff]
    %v1113 = vld [vmem:[#allocation7 + $0x1f0] sm:$0xff]
    %v1114 = vld [vmem:[#allocation7 + $0x1f8] sm:$0xff]
    %1115 = vmatprep.subr.mxu0 %v1112
    %1116 = vmatpush1.msra.mxu0 %v1111
    %1117 = vmatprep.subr.mxu0 %v1108
    %1118 = vmatpush1.msra.mxu0 %v1107
    %1119 = vmatprep.subr.mxu0 %v1104
    %1120 = vmatpush1.msra.mxu0 %v1103
    %1121 = vmatprep.subr.mxu0 %v1100
    %1122 = vmatpush1.msra.mxu0 %v1099
    %1123 = vmatprep.subr.mxu0 %v1096
    %1124 = vmatpush1.msra.mxu0 %v1095
    %1125 = vmatprep.subr.mxu0 %v1092
    %1126 = vmatpush1.msra.mxu0 %v1091
    %1127 = vmatprep.subr.mxu0 %v1088
    %1128 = vmatpush1.msra.mxu0 %v1087
    %1129 = vmatprep.subr.mxu0 %v1084
    %1130 = vmatpush1.msra.mxu0 %v1083
    %1131 = vmatprep.subr.mxu0 %v1080
    %1132 = vmatpush1.msra.mxu0 %v1079
    %1133 = vmatprep.subr.mxu0 %v1076
    %1134 = vmatpush1.msra.mxu0 %v1075
    %1135 = vmatprep.subr.mxu0 %v1072
    %1136 = vmatpush1.msra.mxu0 %v1071
    %1137 = vmatprep.subr.mxu0 %v1068
    %1138 = vmatpush1.msra.mxu0 %v1067
    %1139 = vmatprep.subr.mxu0 %v1064
    %1140 = vmatpush1.msra.mxu0 %v1063
    %1141 = vmatprep.subr.mxu0 %v1060
    %1142 = vmatpush1.msra.mxu0 %v1059
    %1143 = vmatprep.subr.mxu0 %v1056
    %1144 = vmatpush1.msra.mxu0 %v1055
    %1145 = vmatprep.subr.mxu0 %v1052
    %1146 = vmatpush1.msra.mxu0 %v1051
    %1147 = vmatprep.subr.mxu0 0.0
    %1148 = vmatpush2.msra.mxu0 0.0
    %1149 = vmatprep.subr.mxu0 0.0
    %1150 = vmatpush2.msra.mxu0 0.0
    %1151 = vmatprep.subr.mxu0 0.0
    %1152 = vmatpush2.msra.mxu0 0.0
    %1153 = vmatprep.subr.mxu0 0.0
    %1154 = vmatpush2.msra.mxu0 0.0
    %1155 = vmatprep.subr.mxu0 0.0
    %1156 = vmatpush2.msra.mxu0 0.0
    %1157 = vmatprep.subr.mxu0 0.0
    %1158 = vmatpush2.msra.mxu0 0.0
    %1159 = vmatprep.subr.mxu0 0.0
    %1160 = vmatpush2.msra.mxu0 0.0
    %1161 = vmatprep.subr.mxu0 0.0
    %1162 = vmatpush2.msra.mxu0 0.0
    %1163 = vmatprep.subr.mxu0 0.0
    %1164 = vmatpush2.msra.mxu0 0.0
    %1165 = vmatprep.subr.mxu0 0.0
    %1166 = vmatpush2.msra.mxu0 0.0
    %1167 = vmatprep.subr.mxu0 0.0
    %1168 = vmatpush2.msra.mxu0 0.0
    %1169 = vmatprep.subr.mxu0 0.0
    %1170 = vmatpush2.msra.mxu0 0.0
    %1171 = vmatprep.subr.mxu0 0.0
    %1172 = vmatpush2.msra.mxu0 0.0
    %1173 = vmatprep.subr.mxu0 0.0
    %1174 = vmatpush2.msra.mxu0 0.0
    %1175 = vmatprep.subr.mxu0 0.0
    %1176 = vmatpush2.msra.mxu0 0.0
    %1177 = vmatprep.subr.mxu0 0.0
    %1178 = vmatpush2.msra.mxu0 0.0
    %1179 = vmatprep.mubr.f32.mxu0 0.0
    %1180 = vmatmul.mubr.f32.gmra.mxu0 %v1045
    %v1181 = vpop.f32.mrf.mxu0
    %v1182 = vadd.f32 0.0, %v1181
    %v1183 = vpop.f32.mrf.mxu0
    %v1184 = vadd.f32 0.0, %v1183
    %1185 = vdwg.mxu0
    %1186 = vmatprep.subr.mxu0 %v1114
    %1187 = vmatpush1.msra.mxu0 %v1113
    %1188 = vmatprep.subr.mxu0 %v1110
    %1189 = vmatpush1.msra.mxu0 %v1109
    %1190 = vmatprep.subr.mxu0 %v1106
    %1191 = vmatpush1.msra.mxu0 %v1105
    %1192 = vmatprep.subr.mxu0 %v1102
    %1193 = vmatpush1.msra.mxu0 %v1101
    %1194 = vmatprep.subr.mxu0 %v1098
    %1195 = vmatpush1.msra.mxu0 %v1097
    %1196 = vmatprep.subr.mxu0 %v1094
    %1197 = vmatpush1.msra.mxu0 %v1093
    %1198 = vmatprep.subr.mxu0 %v1090
    %1199 = vmatpush1.msra.mxu0 %v1089
    %1200 = vmatprep.subr.mxu0 %v1086
    %1201 = vmatpush1.msra.mxu0 %v1085
    %1202 = vmatprep.subr.mxu0 %v1082
    %1203 = vmatpush1.msra.mxu0 %v1081
    %1204 = vmatprep.subr.mxu0 %v1078
    %1205 = vmatpush1.msra.mxu0 %v1077
    %1206 = vmatprep.subr.mxu0 %v1074
    %1207 = vmatpush1.msra.mxu0 %v1073
    %1208 = vmatprep.subr.mxu0 %v1070
    %1209 = vmatpush1.msra.mxu0 %v1069
    %1210 = vmatprep.subr.mxu0 %v1066
    %1211 = vmatpush1.msra.mxu0 %v1065
    %1212 = vmatprep.subr.mxu0 %v1062
    %1213 = vmatpush1.msra.mxu0 %v1061
    %1214 = vmatprep.subr.mxu0 %v1058
    %1215 = vmatpush1.msra.mxu0 %v1057
    %1216 = vmatprep.subr.mxu0 %v1054
    %1217 = vmatpush1.msra.mxu0 %v1053
    %1218 = vmatprep.subr.mxu0 0.0
    %1219 = vmatpush2.msra.mxu0 0.0
    %1220 = vmatprep.subr.mxu0 0.0
    %1221 = vmatpush2.msra.mxu0 0.0
    %1222 = vmatprep.subr.mxu0 0.0
    %1223 = vmatpush2.msra.mxu0 0.0
    %1224 = vmatprep.subr.mxu0 0.0
    %1225 = vmatpush2.msra.mxu0 0.0
    %1226 = vmatprep.subr.mxu0 0.0
    %1227 = vmatpush2.msra.mxu0 0.0
    %1228 = vmatprep.subr.mxu0 0.0
    %1229 = vmatpush2.msra.mxu0 0.0
    %1230 = vmatprep.subr.mxu0 0.0
    %1231 = vmatpush2.msra.mxu0 0.0
    %1232 = vmatprep.subr.mxu0 0.0
    %1233 = vmatpush2.msra.mxu0 0.0
    %1234 = vmatprep.subr.mxu0 0.0
    %1235 = vmatpush2.msra.mxu0 0.0
    %1236 = vmatprep.subr.mxu0 0.0
    %1237 = vmatpush2.msra.mxu0 0.0
    %1238 = vmatprep.subr.mxu0 0.0
    %1239 = vmatpush2.msra.mxu0 0.0
    %1240 = vmatprep.subr.mxu0 0.0
    %1241 = vmatpush2.msra.mxu0 0.0
    %1242 = vmatprep.subr.mxu0 0.0
    %1243 = vmatpush2.msra.mxu0 0.0
    %1244 = vmatprep.subr.mxu0 0.0
    %1245 = vmatpush2.msra.mxu0 0.0
    %1246 = vmatprep.subr.mxu0 0.0
    %1247 = vmatpush2.msra.mxu0 0.0
    %1248 = vmatprep.subr.mxu0 0.0
    %1249 = vmatpush2.msra.mxu0 0.0
    %1250 = vmatprep.mubr.f32.mxu0 0.0
    %1251 = vmatmul.mubr.f32.gmra.mxu0 %v1045
    %v1252 = vpop.f32.mrf.mxu0
    %v1253 = vadd.f32 0.0, %v1252
    %v1254 = vpop.f32.mrf.mxu0
    %v1255 = vadd.f32 0.0, %v1254
    %1256 = vdwg.mxu0
    %v1257 = vadd.f32 %v1047, %v1182
    %v1258 = vadd.f32 %v1048, %v1184
    %v1259 = vadd.f32 %v1049, %v1253
    %v1260 = vadd.f32 %v1050, %v1255
    %v1261 = vxor.u32 %v1257, 2147483648
    %v1262 = vxor.u32 %v1258, 2147483648
    %v1263 = vxor.u32 %v1259, 2147483648
    %v1264 = vmul.f32 %v1261, 1.442695
    %v1265 = vpow.pop %v1264
    %v1266 = vmul.f32 %v1262, 1.442695
    %v1267 = vpow.pop %v1266
    %v1268 = vmul.f32 %v1263, 1.442695
    %v1269 = vpow.pop %v1268
    %v1270 = vadd.f32 %v1265, 1.0
    %v1271 = vadd.f32 %v1267, 1.0
    %v1272 = vadd.f32 %v1269, 1.0
    %v1273 = vrcp.pop %v1270
    %v1274 = vmul.f32 1.0, %v1273
    %v1275 = vrcp.pop %v1271
    %v1276 = vmul.f32 1.0, %v1275
    %v1277 = vrcp.pop %v1272
    %v1278 = vmul.f32 1.0, %v1277
    %v1279 = vtanh.pop %v1260
    %v1280 = vmul.f32 %v1276, %v1043
    %v1281 = vmul.f32 %v1274, %v1279
    %v1282 = vadd.f32 %v1280, %v1281
    %v1283 = vtanh.pop %v1282
    %v1284 = vmul.f32 %v1278, %v1283
    %1285 = vst [vmem:[#allocation3 + $0x10] sm:$0xff] %v1284
    %v1286 = vld [vmem:[#allocation2 + $0x60] sm:$0xff]
    %v1287 = vld [vmem:[#allocation2 + $0x68] sm:$0xff]
    %v1288 = vld [vmem:[#allocation2 + $0x70] sm:$0xff]
    %v1289 = vld [vmem:[#allocation2 + $0x78] sm:$0xff]
    %v1290 = vld [vmem:[#allocation7] sm:$0xff]
    %v1291 = vld [vmem:[#allocation7 + $0x8] sm:$0xff]
    %v1292 = vld [vmem:[#allocation7 + $0x10] sm:$0xff]
    %v1293 = vld [vmem:[#allocation7 + $0x18] sm:$0xff]
    %v1294 = vld [vmem:[#allocation7 + $0x20] sm:$0xff]
    %v1295 = vld [vmem:[#allocation7 + $0x28] sm:$0xff]
    %v1296 = vld [vmem:[#allocation7 + $0x30] sm:$0xff]
    %v1297 = vld [vmem:[#allocation7 + $0x38] sm:$0xff]
    %v1298 = vld [vmem:[#allocation7 + $0x40] sm:$0xff]
    %v1299 = vld [vmem:[#allocation7 + $0x48] sm:$0xff]
    %v1300 = vld [vmem:[#allocation7 + $0x50] sm:$0xff]
    %v1301 = vld [vmem:[#allocation7 + $0x58] sm:$0xff]
    %v1302 = vld [vmem:[#allocation7 + $0x60] sm:$0xff]
    %v1303 = vld [vmem:[#allocation7 + $0x68] sm:$0xff]
    %v1304 = vld [vmem:[#allocation7 + $0x70] sm:$0xff]
    %v1305 = vld [vmem:[#allocation7 + $0x78] sm:$0xff]
    %v1306 = vld [vmem:[#allocation7 + $0x80] sm:$0xff]
    %v1307 = vld [vmem:[#allocation7 + $0x88] sm:$0xff]
    %v1308 = vld [vmem:[#allocation7 + $0x90] sm:$0xff]
    %v1309 = vld [vmem:[#allocation7 + $0x98] sm:$0xff]
    %v1310 = vld [vmem:[#allocation7 + $0xa0] sm:$0xff]
    %v1311 = vld [vmem:[#allocation7 + $0xa8] sm:$0xff]
    %v1312 = vld [vmem:[#allocation7 + $0xb0] sm:$0xff]
    %v1313 = vld [vmem:[#allocation7 + $0xb8] sm:$0xff]
    %v1314 = vld [vmem:[#allocation7 + $0xc0] sm:$0xff]
    %v1315 = vld [vmem:[#allocation7 + $0xc8] sm:$0xff]
    %v1316 = vld [vmem:[#allocation7 + $0xd0] sm:$0xff]
    %v1317 = vld [vmem:[#allocation7 + $0xd8] sm:$0xff]
    %v1318 = vld [vmem:[#allocation7 + $0xe0] sm:$0xff]
    %v1319 = vld [vmem:[#allocation7 + $0xe8] sm:$0xff]
    %v1320 = vld [vmem:[#allocation7 + $0xf0] sm:$0xff]
    %v1321 = vld [vmem:[#allocation7 + $0xf8] sm:$0xff]
    %v1322 = vld [vmem:[#allocation7 + $0x100] sm:$0xff]
    %v1323 = vld [vmem:[#allocation7 + $0x108] sm:$0xff]
    %v1324 = vld [vmem:[#allocation7 + $0x110] sm:$0xff]
    %v1325 = vld [vmem:[#allocation7 + $0x118] sm:$0xff]
    %v1326 = vld [vmem:[#allocation7 + $0x120] sm:$0xff]
    %v1327 = vld [vmem:[#allocation7 + $0x128] sm:$0xff]
    %v1328 = vld [vmem:[#allocation7 + $0x130] sm:$0xff]
    %v1329 = vld [vmem:[#allocation7 + $0x138] sm:$0xff]
    %v1330 = vld [vmem:[#allocation7 + $0x140] sm:$0xff]
    %v1331 = vld [vmem:[#allocation7 + $0x148] sm:$0xff]
    %v1332 = vld [vmem:[#allocation7 + $0x150] sm:$0xff]
    %v1333 = vld [vmem:[#allocation7 + $0x158] sm:$0xff]
    %v1334 = vld [vmem:[#allocation7 + $0x160] sm:$0xff]
    %v1335 = vld [vmem:[#allocation7 + $0x168] sm:$0xff]
    %v1336 = vld [vmem:[#allocation7 + $0x170] sm:$0xff]
    %v1337 = vld [vmem:[#allocation7 + $0x178] sm:$0xff]
    %v1338 = vld [vmem:[#allocation7 + $0x180] sm:$0xff]
    %v1339 = vld [vmem:[#allocation7 + $0x188] sm:$0xff]
    %v1340 = vld [vmem:[#allocation7 + $0x190] sm:$0xff]
    %v1341 = vld [vmem:[#allocation7 + $0x198] sm:$0xff]
    %v1342 = vld [vmem:[#allocation7 + $0x1a0] sm:$0xff]
    %v1343 = vld [vmem:[#allocation7 + $0x1a8] sm:$0xff]
    %v1344 = vld [vmem:[#allocation7 + $0x1b0] sm:$0xff]
    %v1345 = vld [vmem:[#allocation7 + $0x1b8] sm:$0xff]
    %v1346 = vld [vmem:[#allocation7 + $0x1c0] sm:$0xff]
    %v1347 = vld [vmem:[#allocation7 + $0x1c8] sm:$0xff]
    %v1348 = vld [vmem:[#allocation7 + $0x1d0] sm:$0xff]
    %v1349 = vld [vmem:[#allocation7 + $0x1d8] sm:$0xff]
    %v1350 = vld [vmem:[#allocation7 + $0x1e0] sm:$0xff]
    %v1351 = vld [vmem:[#allocation7 + $0x1e8] sm:$0xff]
    %v1352 = vld [vmem:[#allocation7 + $0x1f0] sm:$0xff]
    %v1353 = vld [vmem:[#allocation7 + $0x1f8] sm:$0xff]
    %1354 = vmatprep.subr.mxu0 %v1351
    %1355 = vmatpush1.msra.mxu0 %v1350
    %1356 = vmatprep.subr.mxu0 %v1347
    %1357 = vmatpush1.msra.mxu0 %v1346
    %1358 = vmatprep.subr.mxu0 %v1343
    %1359 = vmatpush1.msra.mxu0 %v1342
    %1360 = vmatprep.subr.mxu0 %v1339
    %1361 = vmatpush1.msra.mxu0 %v1338
    %1362 = vmatprep.subr.mxu0 %v1335
    %1363 = vmatpush1.msra.mxu0 %v1334
    %1364 = vmatprep.subr.mxu0 %v1331
    %1365 = vmatpush1.msra.mxu0 %v1330
    %1366 = vmatprep.subr.mxu0 %v1327
    %1367 = vmatpush1.msra.mxu0 %v1326
    %1368 = vmatprep.subr.mxu0 %v1323
    %1369 = vmatpush1.msra.mxu0 %v1322
    %1370 = vmatprep.subr.mxu0 %v1319
    %1371 = vmatpush1.msra.mxu0 %v1318
    %1372 = vmatprep.subr.mxu0 %v1315
    %1373 = vmatpush1.msra.mxu0 %v1314
    %1374 = vmatprep.subr.mxu0 %v1311
    %1375 = vmatpush1.msra.mxu0 %v1310
    %1376 = vmatprep.subr.mxu0 %v1307
    %1377 = vmatpush1.msra.mxu0 %v1306
    %1378 = vmatprep.subr.mxu0 %v1303
    %1379 = vmatpush1.msra.mxu0 %v1302
    %1380 = vmatprep.subr.mxu0 %v1299
    %1381 = vmatpush1.msra.mxu0 %v1298
    %1382 = vmatprep.subr.mxu0 %v1295
    %1383 = vmatpush1.msra.mxu0 %v1294
    %1384 = vmatprep.subr.mxu0 %v1291
    %1385 = vmatpush1.msra.mxu0 %v1290
    %1386 = vmatprep.subr.mxu0 0.0
    %1387 = vmatpush2.msra.mxu0 0.0
    %1388 = vmatprep.subr.mxu0 0.0
    %1389 = vmatpush2.msra.mxu0 0.0
    %1390 = vmatprep.subr.mxu0 0.0
    %1391 = vmatpush2.msra.mxu0 0.0
    %1392 = vmatprep.subr.mxu0 0.0
    %1393 = vmatpush2.msra.mxu0 0.0
    %1394 = vmatprep.subr.mxu0 0.0
    %1395 = vmatpush2.msra.mxu0 0.0
    %1396 = vmatprep.subr.mxu0 0.0
    %1397 = vmatpush2.msra.mxu0 0.0
    %1398 = vmatprep.subr.mxu0 0.0
    %1399 = vmatpush2.msra.mxu0 0.0
    %1400 = vmatprep.subr.mxu0 0.0
    %1401 = vmatpush2.msra.mxu0 0.0
    %1402 = vmatprep.subr.mxu0 0.0
    %1403 = vmatpush2.msra.mxu0 0.0
    %1404 = vmatprep.subr.mxu0 0.0
    %1405 = vmatpush2.msra.mxu0 0.0
    %1406 = vmatprep.subr.mxu0 0.0
    %1407 = vmatpush2.msra.mxu0 0.0
    %1408 = vmatprep.subr.mxu0 0.0
    %1409 = vmatpush2.msra.mxu0 0.0
    %1410 = vmatprep.subr.mxu0 0.0
    %1411 = vmatpush2.msra.mxu0 0.0
    %1412 = vmatprep.subr.mxu0 0.0
    %1413 = vmatpush2.msra.mxu0 0.0
    %1414 = vmatprep.subr.mxu0 0.0
    %1415 = vmatpush2.msra.mxu0 0.0
    %1416 = vmatprep.subr.mxu0 0.0
    %1417 = vmatpush2.msra.mxu0 0.0
    %1418 = vmatprep.mubr.f32.mxu0 0.0
    %1419 = vmatmul.mubr.f32.gmra.mxu0 %v1284
    %v1420 = vpop.f32.mrf.mxu0
    %v1421 = vadd.f32 0.0, %v1420
    %v1422 = vpop.f32.mrf.mxu0
    %v1423 = vadd.f32 0.0, %v1422
    %1424 = vdwg.mxu0
    %1425 = vmatprep.subr.mxu0 %v1353
    %1426 = vmatpush1.msra.mxu0 %v1352
    %1427 = vmatprep.subr.mxu0 %v1349
    %1428 = vmatpush1.msra.mxu0 %v1348
    %1429 = vmatprep.subr.mxu0 %v1345
    %1430 = vmatpush1.msra.mxu0 %v1344
    %1431 = vmatprep.subr.mxu0 %v1341
    %1432 = vmatpush1.msra.mxu0 %v1340
    %1433 = vmatprep.subr.mxu0 %v1337
    %1434 = vmatpush1.msra.mxu0 %v1336
    %1435 = vmatprep.subr.mxu0 %v1333
    %1436 = vmatpush1.msra.mxu0 %v1332
    %1437 = vmatprep.subr.mxu0 %v1329
    %1438 = vmatpush1.msra.mxu0 %v1328
    %1439 = vmatprep.subr.mxu0 %v1325
    %1440 = vmatpush1.msra.mxu0 %v1324
    %1441 = vmatprep.subr.mxu0 %v1321
    %1442 = vmatpush1.msra.mxu0 %v1320
    %1443 = vmatprep.subr.mxu0 %v1317
    %1444 = vmatpush1.msra.mxu0 %v1316
    %1445 = vmatprep.subr.mxu0 %v1313
    %1446 = vmatpush1.msra.mxu0 %v1312
    %1447 = vmatprep.subr.mxu0 %v1309
    %1448 = vmatpush1.msra.mxu0 %v1308
    %1449 = vmatprep.subr.mxu0 %v1305
    %1450 = vmatpush1.msra.mxu0 %v1304
    %1451 = vmatprep.subr.mxu0 %v1301
    %1452 = vmatpush1.msra.mxu0 %v1300
    %1453 = vmatprep.subr.mxu0 %v1297
    %1454 = vmatpush1.msra.mxu0 %v1296
    %1455 = vmatprep.subr.mxu0 %v1293
    %1456 = vmatpush1.msra.mxu0 %v1292
    %1457 = vmatprep.subr.mxu0 0.0
    %1458 = vmatpush2.msra.mxu0 0.0
    %1459 = vmatprep.subr.mxu0 0.0
    %1460 = vmatpush2.msra.mxu0 0.0
    %1461 = vmatprep.subr.mxu0 0.0
    %1462 = vmatpush2.msra.mxu0 0.0
    %1463 = vmatprep.subr.mxu0 0.0
    %1464 = vmatpush2.msra.mxu0 0.0
    %1465 = vmatprep.subr.mxu0 0.0
    %1466 = vmatpush2.msra.mxu0 0.0
    %1467 = vmatprep.subr.mxu0 0.0
    %1468 = vmatpush2.msra.mxu0 0.0
    %1469 = vmatprep.subr.mxu0 0.0
    %1470 = vmatpush2.msra.mxu0 0.0
    %1471 = vmatprep.subr.mxu0 0.0
    %1472 = vmatpush2.msra.mxu0 0.0
    %1473 = vmatprep.subr.mxu0 0.0
    %1474 = vmatpush2.msra.mxu0 0.0
    %1475 = vmatprep.subr.mxu0 0.0
    %1476 = vmatpush2.msra.mxu0 0.0
    %1477 = vmatprep.subr.mxu0 0.0
    %1478 = vmatpush2.msra.mxu0 0.0
    %1479 = vmatprep.subr.mxu0 0.0
    %1480 = vmatpush2.msra.mxu0 0.0
    %1481 = vmatprep.subr.mxu0 0.0
    %1482 = vmatpush2.msra.mxu0 0.0
    %1483 = vmatprep.subr.mxu0 0.0
    %1484 = vmatpush2.msra.mxu0 0.0
    %1485 = vmatprep.subr.mxu0 0.0
    %1486 = vmatpush2.msra.mxu0 0.0
    %1487 = vmatprep.subr.mxu0 0.0
    %1488 = vmatpush2.msra.mxu0 0.0
    %1489 = vmatprep.mubr.f32.mxu0 0.0
    %1490 = vmatmul.mubr.f32.gmra.mxu0 %v1284
    %v1491 = vpop.f32.mrf.mxu0
    %v1492 = vadd.f32 0.0, %v1491
    %v1493 = vpop.f32.mrf.mxu0
    %v1494 = vadd.f32 0.0, %v1493
    %1495 = vdwg.mxu0
    %v1496 = vadd.f32 %v1286, %v1421
    %v1497 = vadd.f32 %v1287, %v1423
    %v1498 = vadd.f32 %v1288, %v1492
    %v1499 = vadd.f32 %v1289, %v1494
    %v1500 = vxor.u32 %v1496, 2147483648
    %v1501 = vxor.u32 %v1497, 2147483648
    %v1502 = vxor.u32 %v1498, 2147483648
    %v1503 = vmul.f32 %v1500, 1.442695
    %v1504 = vpow.pop %v1503
    %v1505 = vmul.f32 %v1501, 1.442695
    %v1506 = vpow.pop %v1505
    %v1507 = vmul.f32 %v1502, 1.442695
    %v1508 = vpow.pop %v1507
    %v1509 = vadd.f32 %v1504, 1.0
    %v1510 = vadd.f32 %v1506, 1.0
    %v1511 = vadd.f32 %v1508, 1.0
    %v1512 = vrcp.pop %v1509
    %v1513 = vmul.f32 1.0, %v1512
    %v1514 = vrcp.pop %v1510
    %v1515 = vmul.f32 1.0, %v1514
    %v1516 = vrcp.pop %v1511
    %v1517 = vmul.f32 1.0, %v1516
    %v1518 = vtanh.pop %v1499
    %v1519 = vmul.f32 %v1515, %v1282
    %v1520 = vmul.f32 %v1513, %v1518
    %v1521 = vadd.f32 %v1519, %v1520
    %v1522 = vtanh.pop %v1521
    %v1523 = vmul.f32 %v1517, %v1522
    %1524 = vst [vmem:[#allocation3 + $0x18] sm:$0xff] %v1523
    %v1525 = vld [vmem:[#allocation2 + $0x80] sm:$0xff]
    %v1526 = vld [vmem:[#allocation2 + $0x88] sm:$0xff]
    %v1527 = vld [vmem:[#allocation2 + $0x90] sm:$0xff]
    %v1528 = vld [vmem:[#allocation2 + $0x98] sm:$0xff]
    %v1529 = vld [vmem:[#allocation7] sm:$0xff]
    %v1530 = vld [vmem:[#allocation7 + $0x8] sm:$0xff]
    %v1531 = vld [vmem:[#allocation7 + $0x10] sm:$0xff]
    %v1532 = vld [vmem:[#allocation7 + $0x18] sm:$0xff]
    %v1533 = vld [vmem:[#allocation7 + $0x20] sm:$0xff]
    %v1534 = vld [vmem:[#allocation7 + $0x28] sm:$0xff]
    %v1535 = vld [vmem:[#allocation7 + $0x30] sm:$0xff]
    %v1536 = vld [vmem:[#allocation7 + $0x38] sm:$0xff]
    %v1537 = vld [vmem:[#allocation7 + $0x40] sm:$0xff]
    %v1538 = vld [vmem:[#allocation7 + $0x48] sm:$0xff]
    %v1539 = vld [vmem:[#allocation7 + $0x50] sm:$0xff]
    %v1540 = vld [vmem:[#allocation7 + $0x58] sm:$0xff]
    %v1541 = vld [vmem:[#allocation7 + $0x60] sm:$0xff]
    %v1542 = vld [vmem:[#allocation7 + $0x68] sm:$0xff]
    %v1543 = vld [vmem:[#allocation7 + $0x70] sm:$0xff]
    %v1544 = vld [vmem:[#allocation7 + $0x78] sm:$0xff]
    %v1545 = vld [vmem:[#allocation7 + $0x80] sm:$0xff]
    %v1546 = vld [vmem:[#allocation7 + $0x88] sm:$0xff]
    %v1547 = vld [vmem:[#allocation7 + $0x90] sm:$0xff]
    %v1548 = vld [vmem:[#allocation7 + $0x98] sm:$0xff]
    %v1549 = vld [vmem:[#allocation7 + $0xa0] sm:$0xff]
    %v1550 = vld [vmem:[#allocation7 + $0xa8] sm:$0xff]
    %v1551 = vld [vmem:[#allocation7 + $0xb0] sm:$0xff]
    %v1552 = vld [vmem:[#allocation7 + $0xb8] sm:$0xff]
    %v1553 = vld [vmem:[#allocation7 + $0xc0] sm:$0xff]
    %v1554 = vld [vmem:[#allocation7 + $0xc8] sm:$0xff]
    %v1555 = vld [vmem:[#allocation7 + $0xd0] sm:$0xff]
    %v1556 = vld [vmem:[#allocation7 + $0xd8] sm:$0xff]
    %v1557 = vld [vmem:[#allocation7 + $0xe0] sm:$0xff]
    %v1558 = vld [vmem:[#allocation7 + $0xe8] sm:$0xff]
    %v1559 = vld [vmem:[#allocation7 + $0xf0] sm:$0xff]
    %v1560 = vld [vmem:[#allocation7 + $0xf8] sm:$0xff]
    %v1561 = vld [vmem:[#allocation7 + $0x100] sm:$0xff]
    %v1562 = vld [vmem:[#allocation7 + $0x108] sm:$0xff]
    %v1563 = vld [vmem:[#allocation7 + $0x110] sm:$0xff]
    %v1564 = vld [vmem:[#allocation7 + $0x118] sm:$0xff]
    %v1565 = vld [vmem:[#allocation7 + $0x120] sm:$0xff]
    %v1566 = vld [vmem:[#allocation7 + $0x128] sm:$0xff]
    %v1567 = vld [vmem:[#allocation7 + $0x130] sm:$0xff]
    %v1568 = vld [vmem:[#allocation7 + $0x138] sm:$0xff]
    %v1569 = vld [vmem:[#allocation7 + $0x140] sm:$0xff]
    %v1570 = vld [vmem:[#allocation7 + $0x148] sm:$0xff]
    %v1571 = vld [vmem:[#allocation7 + $0x150] sm:$0xff]
    %v1572 = vld [vmem:[#allocation7 + $0x158] sm:$0xff]
    %v1573 = vld [vmem:[#allocation7 + $0x160] sm:$0xff]
    %v1574 = vld [vmem:[#allocation7 + $0x168] sm:$0xff]
    %v1575 = vld [vmem:[#allocation7 + $0x170] sm:$0xff]
    %v1576 = vld [vmem:[#allocation7 + $0x178] sm:$0xff]
    %v1577 = vld [vmem:[#allocation7 + $0x180] sm:$0xff]
    %v1578 = vld [vmem:[#allocation7 + $0x188] sm:$0xff]
    %v1579 = vld [vmem:[#allocation7 + $0x190] sm:$0xff]
    %v1580 = vld [vmem:[#allocation7 + $0x198] sm:$0xff]
    %v1581 = vld [vmem:[#allocation7 + $0x1a0] sm:$0xff]
    %v1582 = vld [vmem:[#allocation7 + $0x1a8] sm:$0xff]
    %v1583 = vld [vmem:[#allocation7 + $0x1b0] sm:$0xff]
    %v1584 = vld [vmem:[#allocation7 + $0x1b8] sm:$0xff]
    %v1585 = vld [vmem:[#allocation7 + $0x1c0] sm:$0xff]
    %v1586 = vld [vmem:[#allocation7 + $0x1c8] sm:$0xff]
    %v1587 = vld [vmem:[#allocation7 + $0x1d0] sm:$0xff]
    %v1588 = vld [vmem:[#allocation7 + $0x1d8] sm:$0xff]
    %v1589 = vld [vmem:[#allocation7 + $0x1e0] sm:$0xff]
    %v1590 = vld [vmem:[#allocation7 + $0x1e8] sm:$0xff]
    %v1591 = vld [vmem:[#allocation7 + $0x1f0] sm:$0xff]
    %v1592 = vld [vmem:[#allocation7 + $0x1f8] sm:$0xff]
    %1593 = vmatprep.subr.mxu0 %v1590
    %1594 = vmatpush1.msra.mxu0 %v1589
    %1595 = vmatprep.subr.mxu0 %v1586
    %1596 = vmatpush1.msra.mxu0 %v1585
    %1597 = vmatprep.subr.mxu0 %v1582
    %1598 = vmatpush1.msra.mxu0 %v1581
    %1599 = vmatprep.subr.mxu0 %v1578
    %1600 = vmatpush1.msra.mxu0 %v1577
    %1601 = vmatprep.subr.mxu0 %v1574
    %1602 = vmatpush1.msra.mxu0 %v1573
    %1603 = vmatprep.subr.mxu0 %v1570
    %1604 = vmatpush1.msra.mxu0 %v1569
    %1605 = vmatprep.subr.mxu0 %v1566
    %1606 = vmatpush1.msra.mxu0 %v1565
    %1607 = vmatprep.subr.mxu0 %v1562
    %1608 = vmatpush1.msra.mxu0 %v1561
    %1609 = vmatprep.subr.mxu0 %v1558
    %1610 = vmatpush1.msra.mxu0 %v1557
    %1611 = vmatprep.subr.mxu0 %v1554
    %1612 = vmatpush1.msra.mxu0 %v1553
    %1613 = vmatprep.subr.mxu0 %v1550
    %1614 = vmatpush1.msra.mxu0 %v1549
    %1615 = vmatprep.subr.mxu0 %v1546
    %1616 = vmatpush1.msra.mxu0 %v1545
    %1617 = vmatprep.subr.mxu0 %v1542
    %1618 = vmatpush1.msra.mxu0 %v1541
    %1619 = vmatprep.subr.mxu0 %v1538
    %1620 = vmatpush1.msra.mxu0 %v1537
    %1621 = vmatprep.subr.mxu0 %v1534
    %1622 = vmatpush1.msra.mxu0 %v1533
    %1623 = vmatprep.subr.mxu0 %v1530
    %1624 = vmatpush1.msra.mxu0 %v1529
    %1625 = vmatprep.subr.mxu0 0.0
    %1626 = vmatpush2.msra.mxu0 0.0
    %1627 = vmatprep.subr.mxu0 0.0
    %1628 = vmatpush2.msra.mxu0 0.0
    %1629 = vmatprep.subr.mxu0 0.0
    %1630 = vmatpush2.msra.mxu0 0.0
    %1631 = vmatprep.subr.mxu0 0.0
    %1632 = vmatpush2.msra.mxu0 0.0
    %1633 = vmatprep.subr.mxu0 0.0
    %1634 = vmatpush2.msra.mxu0 0.0
    %1635 = vmatprep.subr.mxu0 0.0
    %1636 = vmatpush2.msra.mxu0 0.0
    %1637 = vmatprep.subr.mxu0 0.0
    %1638 = vmatpush2.msra.mxu0 0.0
    %1639 = vmatprep.subr.mxu0 0.0
    %1640 = vmatpush2.msra.mxu0 0.0
    %1641 = vmatprep.subr.mxu0 0.0
    %1642 = vmatpush2.msra.mxu0 0.0
    %1643 = vmatprep.subr.mxu0 0.0
    %1644 = vmatpush2.msra.mxu0 0.0
    %1645 = vmatprep.subr.mxu0 0.0
    %1646 = vmatpush2.msra.mxu0 0.0
    %1647 = vmatprep.subr.mxu0 0.0
    %1648 = vmatpush2.msra.mxu0 0.0
    %1649 = vmatprep.subr.mxu0 0.0
    %1650 = vmatpush2.msra.mxu0 0.0
    %1651 = vmatprep.subr.mxu0 0.0
    %1652 = vmatpush2.msra.mxu0 0.0
    %1653 = vmatprep.subr.mxu0 0.0
    %1654 = vmatpush2.msra.mxu0 0.0
    %1655 = vmatprep.subr.mxu0 0.0
    %1656 = vmatpush2.msra.mxu0 0.0
    %1657 = vmatprep.mubr.f32.mxu0 0.0
    %1658 = vmatmul.mubr.f32.gmra.mxu0 %v1523
    %v1659 = vpop.f32.mrf.mxu0
    %v1660 = vadd.f32 0.0, %v1659
    %v1661 = vpop.f32.mrf.mxu0
    %v1662 = vadd.f32 0.0, %v1661
    %1663 = vdwg.mxu0
    %1664 = vmatprep.subr.mxu0 %v1592
    %1665 = vmatpush1.msra.mxu0 %v1591
    %1666 = vmatprep.subr.mxu0 %v1588
    %1667 = vmatpush1.msra.mxu0 %v1587
    %1668 = vmatprep.subr.mxu0 %v1584
    %1669 = vmatpush1.msra.mxu0 %v1583
    %1670 = vmatprep.subr.mxu0 %v1580
    %1671 = vmatpush1.msra.mxu0 %v1579
    %1672 = vmatprep.subr.mxu0 %v1576
    %1673 = vmatpush1.msra.mxu0 %v1575
    %1674 = vmatprep.subr.mxu0 %v1572
    %1675 = vmatpush1.msra.mxu0 %v1571
    %1676 = vmatprep.subr.mxu0 %v1568
    %1677 = vmatpush1.msra.mxu0 %v1567
    %1678 = vmatprep.subr.mxu0 %v1564
    %1679 = vmatpush1.msra.mxu0 %v1563
    %1680 = vmatprep.subr.mxu0 %v1560
    %1681 = vmatpush1.msra.mxu0 %v1559
    %1682 = vmatprep.subr.mxu0 %v1556
    %1683 = vmatpush1.msra.mxu0 %v1555
    %1684 = vmatprep.subr.mxu0 %v1552
    %1685 = vmatpush1.msra.mxu0 %v1551
    %1686 = vmatprep.subr.mxu0 %v1548
    %1687 = vmatpush1.msra.mxu0 %v1547
    %1688 = vmatprep.subr.mxu0 %v1544
    %1689 = vmatpush1.msra.mxu0 %v1543
    %1690 = vmatprep.subr.mxu0 %v1540
    %1691 = vmatpush1.msra.mxu0 %v1539
    %1692 = vmatprep.subr.mxu0 %v1536
    %1693 = vmatpush1.msra.mxu0 %v1535
    %1694 = vmatprep.subr.mxu0 %v1532
    %1695 = vmatpush1.msra.mxu0 %v1531
    %1696 = vmatprep.subr.mxu0 0.0
    %1697 = vmatpush2.msra.mxu0 0.0
    %1698 = vmatprep.subr.mxu0 0.0
    %1699 = vmatpush2.msra.mxu0 0.0
    %1700 = vmatprep.subr.mxu0 0.0
    %1701 = vmatpush2.msra.mxu0 0.0
    %1702 = vmatprep.subr.mxu0 0.0
    %1703 = vmatpush2.msra.mxu0 0.0
    %1704 = vmatprep.subr.mxu0 0.0
    %1705 = vmatpush2.msra.mxu0 0.0
    %1706 = vmatprep.subr.mxu0 0.0
    %1707 = vmatpush2.msra.mxu0 0.0
    %1708 = vmatprep.subr.mxu0 0.0
    %1709 = vmatpush2.msra.mxu0 0.0
    %1710 = vmatprep.subr.mxu0 0.0
    %1711 = vmatpush2.msra.mxu0 0.0
    %1712 = vmatprep.subr.mxu0 0.0
    %1713 = vmatpush2.msra.mxu0 0.0
    %1714 = vmatprep.subr.mxu0 0.0
    %1715 = vmatpush2.msra.mxu0 0.0
    %1716 = vmatprep.subr.mxu0 0.0
    %1717 = vmatpush2.msra.mxu0 0.0
    %1718 = vmatprep.subr.mxu0 0.0
    %1719 = vmatpush2.msra.mxu0 0.0
    %1720 = vmatprep.subr.mxu0 0.0
    %1721 = vmatpush2.msra.mxu0 0.0
    %1722 = vmatprep.subr.mxu0 0.0
    %1723 = vmatpush2.msra.mxu0 0.0
    %1724 = vmatprep.subr.mxu0 0.0
    %1725 = vmatpush2.msra.mxu0 0.0
    %1726 = vmatprep.subr.mxu0 0.0
    %1727 = vmatpush2.msra.mxu0 0.0
    %1728 = vmatprep.mubr.f32.mxu0 0.0
    %1729 = vmatmul.mubr.f32.gmra.mxu0 %v1523
    %v1730 = vpop.f32.mrf.mxu0
    %v1731 = vadd.f32 0.0, %v1730
    %v1732 = vpop.f32.mrf.mxu0
    %v1733 = vadd.f32 0.0, %v1732
    %1734 = vdwg.mxu0
    %v1735 = vadd.f32 %v1525, %v1660
    %v1736 = vadd.f32 %v1526, %v1662
    %v1737 = vadd.f32 %v1527, %v1731
    %v1738 = vadd.f32 %v1528, %v1733
    %v1739 = vxor.u32 %v1735, 2147483648
    %v1740 = vxor.u32 %v1736, 2147483648
    %v1741 = vxor.u32 %v1737, 2147483648
    %v1742 = vmul.f32 %v1739, 1.442695
    %v1743 = vpow.pop %v1742
    %v1744 = vmul.f32 %v1740, 1.442695
    %v1745 = vpow.pop %v1744
    %v1746 = vmul.f32 %v1741, 1.442695
    %v1747 = vpow.pop %v1746
    %v1748 = vadd.f32 %v1743, 1.0
    %v1749 = vadd.f32 %v1745, 1.0
    %v1750 = vadd.f32 %v1747, 1.0
    %v1751 = vrcp.pop %v1748
    %v1752 = vmul.f32 1.0, %v1751
    %v1753 = vrcp.pop %v1749
    %v1754 = vmul.f32 1.0, %v1753
    %v1755 = vrcp.pop %v1750
    %v1756 = vmul.f32 1.0, %v1755
    %v1757 = vtanh.pop %v1738
    %v1758 = vmul.f32 %v1754, %v1521
    %v1759 = vmul.f32 %v1752, %v1757
    %v1760 = vadd.f32 %v1758, %v1759
    %v1761 = vtanh.pop %v1760
    %v1762 = vmul.f32 %v1756, %v1761
    %1763 = vst [vmem:[#allocation3 + $0x20] sm:$0xff] %v1762
    %v1764 = vld [vmem:[#allocation2 + $0xa0] sm:$0xff]
    %v1765 = vld [vmem:[#allocation2 + $0xa8] sm:$0xff]
    %v1766 = vld [vmem:[#allocation2 + $0xb0] sm:$0xff]
    %v1767 = vld [vmem:[#allocation2 + $0xb8] sm:$0xff]
    %v1768 = vld [vmem:[#allocation7] sm:$0xff]
    %v1769 = vld [vmem:[#allocation7 + $0x8] sm:$0xff]
    %v1770 = vld [vmem:[#allocation7 + $0x10] sm:$0xff]
    %v1771 = vld [vmem:[#allocation7 + $0x18] sm:$0xff]
    %v1772 = vld [vmem:[#allocation7 + $0x20] sm:$0xff]
    %v1773 = vld [vmem:[#allocation7 + $0x28] sm:$0xff]
    %v1774 = vld [vmem:[#allocation7 + $0x30] sm:$0xff]
    %v1775 = vld [vmem:[#allocation7 + $0x38] sm:$0xff]
    %v1776 = vld [vmem:[#allocation7 + $0x40] sm:$0xff]
    %v1777 = vld [vmem:[#allocation7 + $0x48] sm:$0xff]
    %v1778 = vld [vmem:[#allocation7 + $0x50] sm:$0xff]
    %v1779 = vld [vmem:[#allocation7 + $0x58] sm:$0xff]
    %v1780 = vld [vmem:[#allocation7 + $0x60] sm:$0xff]
    %v1781 = vld [vmem:[#allocation7 + $0x68] sm:$0xff]
    %v1782 = vld [vmem:[#allocation7 + $0x70] sm:$0xff]
    %v1783 = vld [vmem:[#allocation7 + $0x78] sm:$0xff]
    %v1784 = vld [vmem:[#allocation7 + $0x80] sm:$0xff]
    %v1785 = vld [vmem:[#allocation7 + $0x88] sm:$0xff]
    %v1786 = vld [vmem:[#allocation7 + $0x90] sm:$0xff]
    %v1787 = vld [vmem:[#allocation7 + $0x98] sm:$0xff]
    %v1788 = vld [vmem:[#allocation7 + $0xa0] sm:$0xff]
    %v1789 = vld [vmem:[#allocation7 + $0xa8] sm:$0xff]
    %v1790 = vld [vmem:[#allocation7 + $0xb0] sm:$0xff]
    %v1791 = vld [vmem:[#allocation7 + $0xb8] sm:$0xff]
    %v1792 = vld [vmem:[#allocation7 + $0xc0] sm:$0xff]
    %v1793 = vld [vmem:[#allocation7 + $0xc8] sm:$0xff]
    %v1794 = vld [vmem:[#allocation7 + $0xd0] sm:$0xff]
    %v1795 = vld [vmem:[#allocation7 + $0xd8] sm:$0xff]
    %v1796 = vld [vmem:[#allocation7 + $0xe0] sm:$0xff]
    %v1797 = vld [vmem:[#allocation7 + $0xe8] sm:$0xff]
    %v1798 = vld [vmem:[#allocation7 + $0xf0] sm:$0xff]
    %v1799 = vld [vmem:[#allocation7 + $0xf8] sm:$0xff]
    %v1800 = vld [vmem:[#allocation7 + $0x100] sm:$0xff]
    %v1801 = vld [vmem:[#allocation7 + $0x108] sm:$0xff]
    %v1802 = vld [vmem:[#allocation7 + $0x110] sm:$0xff]
    %v1803 = vld [vmem:[#allocation7 + $0x118] sm:$0xff]
    %v1804 = vld [vmem:[#allocation7 + $0x120] sm:$0xff]
    %v1805 = vld [vmem:[#allocation7 + $0x128] sm:$0xff]
    %v1806 = vld [vmem:[#allocation7 + $0x130] sm:$0xff]
    %v1807 = vld [vmem:[#allocation7 + $0x138] sm:$0xff]
    %v1808 = vld [vmem:[#allocation7 + $0x140] sm:$0xff]
    %v1809 = vld [vmem:[#allocation7 + $0x148] sm:$0xff]
    %v1810 = vld [vmem:[#allocation7 + $0x150] sm:$0xff]
    %v1811 = vld [vmem:[#allocation7 + $0x158] sm:$0xff]
    %v1812 = vld [vmem:[#allocation7 + $0x160] sm:$0xff]
    %v1813 = vld [vmem:[#allocation7 + $0x168] sm:$0xff]
    %v1814 = vld [vmem:[#allocation7 + $0x170] sm:$0xff]
    %v1815 = vld [vmem:[#allocation7 + $0x178] sm:$0xff]
    %v1816 = vld [vmem:[#allocation7 + $0x180] sm:$0xff]
    %v1817 = vld [vmem:[#allocation7 + $0x188] sm:$0xff]
    %v1818 = vld [vmem:[#allocation7 + $0x190] sm:$0xff]
    %v1819 = vld [vmem:[#allocation7 + $0x198] sm:$0xff]
    %v1820 = vld [vmem:[#allocation7 + $0x1a0] sm:$0xff]
    %v1821 = vld [vmem:[#allocation7 + $0x1a8] sm:$0xff]
    %v1822 = vld [vmem:[#allocation7 + $0x1b0] sm:$0xff]
    %v1823 = vld [vmem:[#allocation7 + $0x1b8] sm:$0xff]
    %v1824 = vld [vmem:[#allocation7 + $0x1c0] sm:$0xff]
    %v1825 = vld [vmem:[#allocation7 + $0x1c8] sm:$0xff]
    %v1826 = vld [vmem:[#allocation7 + $0x1d0] sm:$0xff]
    %v1827 = vld [vmem:[#allocation7 + $0x1d8] sm:$0xff]
    %v1828 = vld [vmem:[#allocation7 + $0x1e0] sm:$0xff]
    %v1829 = vld [vmem:[#allocation7 + $0x1e8] sm:$0xff]
    %v1830 = vld [vmem:[#allocation7 + $0x1f0] sm:$0xff]
    %v1831 = vld [vmem:[#allocation7 + $0x1f8] sm:$0xff]
    %1832 = vmatprep.subr.mxu0 %v1829
    %1833 = vmatpush1.msra.mxu0 %v1828
    %1834 = vmatprep.subr.mxu0 %v1825
    %1835 = vmatpush1.msra.mxu0 %v1824
    %1836 = vmatprep.subr.mxu0 %v1821
    %1837 = vmatpush1.msra.mxu0 %v1820
    %1838 = vmatprep.subr.mxu0 %v1817
    %1839 = vmatpush1.msra.mxu0 %v1816
    %1840 = vmatprep.subr.mxu0 %v1813
    %1841 = vmatpush1.msra.mxu0 %v1812
    %1842 = vmatprep.subr.mxu0 %v1809
    %1843 = vmatpush1.msra.mxu0 %v1808
    %1844 = vmatprep.subr.mxu0 %v1805
    %1845 = vmatpush1.msra.mxu0 %v1804
    %1846 = vmatprep.subr.mxu0 %v1801
    %1847 = vmatpush1.msra.mxu0 %v1800
    %1848 = vmatprep.subr.mxu0 %v1797
    %1849 = vmatpush1.msra.mxu0 %v1796
    %1850 = vmatprep.subr.mxu0 %v1793
    %1851 = vmatpush1.msra.mxu0 %v1792
    %1852 = vmatprep.subr.mxu0 %v1789
    %1853 = vmatpush1.msra.mxu0 %v1788
    %1854 = vmatprep.subr.mxu0 %v1785
    %1855 = vmatpush1.msra.mxu0 %v1784
    %1856 = vmatprep.subr.mxu0 %v1781
    %1857 = vmatpush1.msra.mxu0 %v1780
    %1858 = vmatprep.subr.mxu0 %v1777
    %1859 = vmatpush1.msra.mxu0 %v1776
    %1860 = vmatprep.subr.mxu0 %v1773
    %1861 = vmatpush1.msra.mxu0 %v1772
    %1862 = vmatprep.subr.mxu0 %v1769
    %1863 = vmatpush1.msra.mxu0 %v1768
    %1864 = vmatprep.subr.mxu0 0.0
    %1865 = vmatpush2.msra.mxu0 0.0
    %1866 = vmatprep.subr.mxu0 0.0
    %1867 = vmatpush2.msra.mxu0 0.0
    %1868 = vmatprep.subr.mxu0 0.0
    %1869 = vmatpush2.msra.mxu0 0.0
    %1870 = vmatprep.subr.mxu0 0.0
    %1871 = vmatpush2.msra.mxu0 0.0
    %1872 = vmatprep.subr.mxu0 0.0
    %1873 = vmatpush2.msra.mxu0 0.0
    %1874 = vmatprep.subr.mxu0 0.0
    %1875 = vmatpush2.msra.mxu0 0.0
    %1876 = vmatprep.subr.mxu0 0.0
    %1877 = vmatpush2.msra.mxu0 0.0
    %1878 = vmatprep.subr.mxu0 0.0
    %1879 = vmatpush2.msra.mxu0 0.0
    %1880 = vmatprep.subr.mxu0 0.0
    %1881 = vmatpush2.msra.mxu0 0.0
    %1882 = vmatprep.subr.mxu0 0.0
    %1883 = vmatpush2.msra.mxu0 0.0
    %1884 = vmatprep.subr.mxu0 0.0
    %1885 = vmatpush2.msra.mxu0 0.0
    %1886 = vmatprep.subr.mxu0 0.0
    %1887 = vmatpush2.msra.mxu0 0.0
    %1888 = vmatprep.subr.mxu0 0.0
    %1889 = vmatpush2.msra.mxu0 0.0
    %1890 = vmatprep.subr.mxu0 0.0
    %1891 = vmatpush2.msra.mxu0 0.0
    %1892 = vmatprep.subr.mxu0 0.0
    %1893 = vmatpush2.msra.mxu0 0.0
    %1894 = vmatprep.subr.mxu0 0.0
    %1895 = vmatpush2.msra.mxu0 0.0
    %1896 = vmatprep.mubr.f32.mxu0 0.0
    %1897 = vmatmul.mubr.f32.gmra.mxu0 %v1762
    %v1898 = vpop.f32.mrf.mxu0
    %v1899 = vadd.f32 0.0, %v1898
    %v1900 = vpop.f32.mrf.mxu0
    %v1901 = vadd.f32 0.0, %v1900
    %1902 = vdwg.mxu0
    %1903 = vmatprep.subr.mxu0 %v1831
    %1904 = vmatpush1.msra.mxu0 %v1830
    %1905 = vmatprep.subr.mxu0 %v1827
    %1906 = vmatpush1.msra.mxu0 %v1826
    %1907 = vmatprep.subr.mxu0 %v1823
    %1908 = vmatpush1.msra.mxu0 %v1822
    %1909 = vmatprep.subr.mxu0 %v1819
    %1910 = vmatpush1.msra.mxu0 %v1818
    %1911 = vmatprep.subr.mxu0 %v1815
    %1912 = vmatpush1.msra.mxu0 %v1814
    %1913 = vmatprep.subr.mxu0 %v1811
    %1914 = vmatpush1.msra.mxu0 %v1810
    %1915 = vmatprep.subr.mxu0 %v1807
    %1916 = vmatpush1.msra.mxu0 %v1806
    %1917 = vmatprep.subr.mxu0 %v1803
    %1918 = vmatpush1.msra.mxu0 %v1802
    %1919 = vmatprep.subr.mxu0 %v1799
    %1920 = vmatpush1.msra.mxu0 %v1798
    %1921 = vmatprep.subr.mxu0 %v1795
    %1922 = vmatpush1.msra.mxu0 %v1794
    %1923 = vmatprep.subr.mxu0 %v1791
    %1924 = vmatpush1.msra.mxu0 %v1790
    %1925 = vmatprep.subr.mxu0 %v1787
    %1926 = vmatpush1.msra.mxu0 %v1786
    %1927 = vmatprep.subr.mxu0 %v1783
    %1928 = vmatpush1.msra.mxu0 %v1782
    %1929 = vmatprep.subr.mxu0 %v1779
    %1930 = vmatpush1.msra.mxu0 %v1778
    %1931 = vmatprep.subr.mxu0 %v1775
    %1932 = vmatpush1.msra.mxu0 %v1774
    %1933 = vmatprep.subr.mxu0 %v1771
    %1934 = vmatpush1.msra.mxu0 %v1770
    %1935 = vmatprep.subr.mxu0 0.0
    %1936 = vmatpush2.msra.mxu0 0.0
    %1937 = vmatprep.subr.mxu0 0.0
    %1938 = vmatpush2.msra.mxu0 0.0
    %1939 = vmatprep.subr.mxu0 0.0
    %1940 = vmatpush2.msra.mxu0 0.0
    %1941 = vmatprep.subr.mxu0 0.0
    %1942 = vmatpush2.msra.mxu0 0.0
    %1943 = vmatprep.subr.mxu0 0.0
    %1944 = vmatpush2.msra.mxu0 0.0
    %1945 = vmatprep.subr.mxu0 0.0
    %1946 = vmatpush2.msra.mxu0 0.0
    %1947 = vmatprep.subr.mxu0 0.0
    %1948 = vmatpush2.msra.mxu0 0.0
    %1949 = vmatprep.subr.mxu0 0.0
    %1950 = vmatpush2.msra.mxu0 0.0
    %1951 = vmatprep.subr.mxu0 0.0
    %1952 = vmatpush2.msra.mxu0 0.0
    %1953 = vmatprep.subr.mxu0 0.0
    %1954 = vmatpush2.msra.mxu0 0.0
    %1955 = vmatprep.subr.mxu0 0.0
    %1956 = vmatpush2.msra.mxu0 0.0
    %1957 = vmatprep.subr.mxu0 0.0
    %1958 = vmatpush2.msra.mxu0 0.0
    %1959 = vmatprep.subr.mxu0 0.0
    %1960 = vmatpush2.msra.mxu0 0.0
    %1961 = vmatprep.subr.mxu0 0.0
    %1962 = vmatpush2.msra.mxu0 0.0
    %1963 = vmatprep.subr.mxu0 0.0
    %1964 = vmatpush2.msra.mxu0 0.0
    %1965 = vmatprep.subr.mxu0 0.0
    %1966 = vmatpush2.msra.mxu0 0.0
    %1967 = vmatprep.mubr.f32.mxu0 0.0
    %1968 = vmatmul.mubr.f32.gmra.mxu0 %v1762
    %v1969 = vpop.f32.mrf.mxu0
    %v1970 = vadd.f32 0.0, %v1969
    %v1971 = vpop.f32.mrf.mxu0
    %v1972 = vadd.f32 0.0, %v1971
    %1973 = vdwg.mxu0
    %v1974 = vadd.f32 %v1764, %v1899
    %v1975 = vadd.f32 %v1765, %v1901
    %v1976 = vadd.f32 %v1766, %v1970
    %v1977 = vadd.f32 %v1767, %v1972
    %v1978 = vxor.u32 %v1974, 2147483648
    %v1979 = vxor.u32 %v1975, 2147483648
    %v1980 = vxor.u32 %v1976, 2147483648
    %v1981 = vmul.f32 %v1978, 1.442695
    %v1982 = vpow.pop %v1981
    %v1983 = vmul.f32 %v1979, 1.442695
    %v1984 = vpow.pop %v1983
    %v1985 = vmul.f32 %v1980, 1.442695
    %v1986 = vpow.pop %v1985
    %v1987 = vadd.f32 %v1982, 1.0
    %v1988 = vadd.f32 %v1984, 1.0
    %v1989 = vadd.f32 %v1986, 1.0
    %v1990 = vrcp.pop %v1987
    %v1991 = vmul.f32 1.0, %v1990
    %v1992 = vrcp.pop %v1988
    %v1993 = vmul.f32 1.0, %v1992
    %v1994 = vrcp.pop %v1989
    %v1995 = vmul.f32 1.0, %v1994
    %v1996 = vtanh.pop %v1977
    %v1997 = vmul.f32 %v1993, %v1760
    %v1998 = vmul.f32 %v1991, %v1996
    %v1999 = vadd.f32 %v1997, %v1998
    %v2000 = vtanh.pop %v1999
    %v2001 = vmul.f32 %v1995, %v2000
    %2002 = vst [vmem:[#allocation3 + $0x28] sm:$0xff] %v2001
    %v2003 = vld [vmem:[#allocation2 + $0xc0] sm:$0xff]
    %v2004 = vld [vmem:[#allocation2 + $0xc8] sm:$0xff]
    %v2005 = vld [vmem:[#allocation2 + $0xd0] sm:$0xff]
    %v2006 = vld [vmem:[#allocation2 + $0xd8] sm:$0xff]
    %v2007 = vld [vmem:[#allocation7] sm:$0xff]
    %v2008 = vld [vmem:[#allocation7 + $0x8] sm:$0xff]
    %v2009 = vld [vmem:[#allocation7 + $0x10] sm:$0xff]
    %v2010 = vld [vmem:[#allocation7 + $0x18] sm:$0xff]
    %v2011 = vld [vmem:[#allocation7 + $0x20] sm:$0xff]
    %v2012 = vld [vmem:[#allocation7 + $0x28] sm:$0xff]
    %v2013 = vld [vmem:[#allocation7 + $0x30] sm:$0xff]
    %v2014 = vld [vmem:[#allocation7 + $0x38] sm:$0xff]
    %v2015 = vld [vmem:[#allocation7 + $0x40] sm:$0xff]
    %v2016 = vld [vmem:[#allocation7 + $0x48] sm:$0xff]
    %v2017 = vld [vmem:[#allocation7 + $0x50] sm:$0xff]
    %v2018 = vld [vmem:[#allocation7 + $0x58] sm:$0xff]
    %v2019 = vld [vmem:[#allocation7 + $0x60] sm:$0xff]
    %v2020 = vld [vmem:[#allocation7 + $0x68] sm:$0xff]
    %v2021 = vld [vmem:[#allocation7 + $0x70] sm:$0xff]
    %v2022 = vld [vmem:[#allocation7 + $0x78] sm:$0xff]
    %v2023 = vld [vmem:[#allocation7 + $0x80] sm:$0xff]
    %v2024 = vld [vmem:[#allocation7 + $0x88] sm:$0xff]
    %v2025 = vld [vmem:[#allocation7 + $0x90] sm:$0xff]
    %v2026 = vld [vmem:[#allocation7 + $0x98] sm:$0xff]
    %v2027 = vld [vmem:[#allocation7 + $0xa0] sm:$0xff]
    %v2028 = vld [vmem:[#allocation7 + $0xa8] sm:$0xff]
    %v2029 = vld [vmem:[#allocation7 + $0xb0] sm:$0xff]
    %v2030 = vld [vmem:[#allocation7 + $0xb8] sm:$0xff]
    %v2031 = vld [vmem:[#allocation7 + $0xc0] sm:$0xff]
    %v2032 = vld [vmem:[#allocation7 + $0xc8] sm:$0xff]
    %v2033 = vld [vmem:[#allocation7 + $0xd0] sm:$0xff]
    %v2034 = vld [vmem:[#allocation7 + $0xd8] sm:$0xff]
    %v2035 = vld [vmem:[#allocation7 + $0xe0] sm:$0xff]
    %v2036 = vld [vmem:[#allocation7 + $0xe8] sm:$0xff]
    %v2037 = vld [vmem:[#allocation7 + $0xf0] sm:$0xff]
    %v2038 = vld [vmem:[#allocation7 + $0xf8] sm:$0xff]
    %v2039 = vld [vmem:[#allocation7 + $0x100] sm:$0xff]
    %v2040 = vld [vmem:[#allocation7 + $0x108] sm:$0xff]
    %v2041 = vld [vmem:[#allocation7 + $0x110] sm:$0xff]
    %v2042 = vld [vmem:[#allocation7 + $0x118] sm:$0xff]
    %v2043 = vld [vmem:[#allocation7 + $0x120] sm:$0xff]
    %v2044 = vld [vmem:[#allocation7 + $0x128] sm:$0xff]
    %v2045 = vld [vmem:[#allocation7 + $0x130] sm:$0xff]
    %v2046 = vld [vmem:[#allocation7 + $0x138] sm:$0xff]
    %v2047 = vld [vmem:[#allocation7 + $0x140] sm:$0xff]
    %v2048 = vld [vmem:[#allocation7 + $0x148] sm:$0xff]
    %v2049 = vld [vmem:[#allocation7 + $0x150] sm:$0xff]
    %v2050 = vld [vmem:[#allocation7 + $0x158] sm:$0xff]
    %v2051 = vld [vmem:[#allocation7 + $0x160] sm:$0xff]
    %v2052 = vld [vmem:[#allocation7 + $0x168] sm:$0xff]
    %v2053 = vld [vmem:[#allocation7 + $0x170] sm:$0xff]
    %v2054 = vld [vmem:[#allocation7 + $0x178] sm:$0xff]
    %v2055 = vld [vmem:[#allocation7 + $0x180] sm:$0xff]
    %v2056 = vld [vmem:[#allocation7 + $0x188] sm:$0xff]
    %v2057 = vld [vmem:[#allocation7 + $0x190] sm:$0xff]
    %v2058 = vld [vmem:[#allocation7 + $0x198] sm:$0xff]
    %v2059 = vld [vmem:[#allocation7 + $0x1a0] sm:$0xff]
    %v2060 = vld [vmem:[#allocation7 + $0x1a8] sm:$0xff]
    %v2061 = vld [vmem:[#allocation7 + $0x1b0] sm:$0xff]
    %v2062 = vld [vmem:[#allocation7 + $0x1b8] sm:$0xff]
    %v2063 = vld [vmem:[#allocation7 + $0x1c0] sm:$0xff]
    %v2064 = vld [vmem:[#allocation7 + $0x1c8] sm:$0xff]
    %v2065 = vld [vmem:[#allocation7 + $0x1d0] sm:$0xff]
    %v2066 = vld [vmem:[#allocation7 + $0x1d8] sm:$0xff]
    %v2067 = vld [vmem:[#allocation7 + $0x1e0] sm:$0xff]
    %v2068 = vld [vmem:[#allocation7 + $0x1e8] sm:$0xff]
    %v2069 = vld [vmem:[#allocation7 + $0x1f0] sm:$0xff]
    %v2070 = vld [vmem:[#allocation7 + $0x1f8] sm:$0xff]
    %2071 = vmatprep.subr.mxu0 %v2068
    %2072 = vmatpush1.msra.mxu0 %v2067
    %2073 = vmatprep.subr.mxu0 %v2064
    %2074 = vmatpush1.msra.mxu0 %v2063
    %2075 = vmatprep.subr.mxu0 %v2060
    %2076 = vmatpush1.msra.mxu0 %v2059
    %2077 = vmatprep.subr.mxu0 %v2056
    %2078 = vmatpush1.msra.mxu0 %v2055
    %2079 = vmatprep.subr.mxu0 %v2052
    %2080 = vmatpush1.msra.mxu0 %v2051
    %2081 = vmatprep.subr.mxu0 %v2048
    %2082 = vmatpush1.msra.mxu0 %v2047
    %2083 = vmatprep.subr.mxu0 %v2044
    %2084 = vmatpush1.msra.mxu0 %v2043
    %2085 = vmatprep.subr.mxu0 %v2040
    %2086 = vmatpush1.msra.mxu0 %v2039
    %2087 = vmatprep.subr.mxu0 %v2036
    %2088 = vmatpush1.msra.mxu0 %v2035
    %2089 = vmatprep.subr.mxu0 %v2032
    %2090 = vmatpush1.msra.mxu0 %v2031
    %2091 = vmatprep.subr.mxu0 %v2028
    %2092 = vmatpush1.msra.mxu0 %v2027
    %2093 = vmatprep.subr.mxu0 %v2024
    %2094 = vmatpush1.msra.mxu0 %v2023
    %2095 = vmatprep.subr.mxu0 %v2020
    %2096 = vmatpush1.msra.mxu0 %v2019
    %2097 = vmatprep.subr.mxu0 %v2016
    %2098 = vmatpush1.msra.mxu0 %v2015
    %2099 = vmatprep.subr.mxu0 %v2012
    %2100 = vmatpush1.msra.mxu0 %v2011
    %2101 = vmatprep.subr.mxu0 %v2008
    %2102 = vmatpush1.msra.mxu0 %v2007
    %2103 = vmatprep.subr.mxu0 0.0
    %2104 = vmatpush2.msra.mxu0 0.0
    %2105 = vmatprep.subr.mxu0 0.0
    %2106 = vmatpush2.msra.mxu0 0.0
    %2107 = vmatprep.subr.mxu0 0.0
    %2108 = vmatpush2.msra.mxu0 0.0
    %2109 = vmatprep.subr.mxu0 0.0
    %2110 = vmatpush2.msra.mxu0 0.0
    %2111 = vmatprep.subr.mxu0 0.0
    %2112 = vmatpush2.msra.mxu0 0.0
    %2113 = vmatprep.subr.mxu0 0.0
    %2114 = vmatpush2.msra.mxu0 0.0
    %2115 = vmatprep.subr.mxu0 0.0
    %2116 = vmatpush2.msra.mxu0 0.0
    %2117 = vmatprep.subr.mxu0 0.0
    %2118 = vmatpush2.msra.mxu0 0.0
    %2119 = vmatprep.subr.mxu0 0.0
    %2120 = vmatpush2.msra.mxu0 0.0
    %2121 = vmatprep.subr.mxu0 0.0
    %2122 = vmatpush2.msra.mxu0 0.0
    %2123 = vmatprep.subr.mxu0 0.0
    %2124 = vmatpush2.msra.mxu0 0.0
    %2125 = vmatprep.subr.mxu0 0.0
    %2126 = vmatpush2.msra.mxu0 0.0
    %2127 = vmatprep.subr.mxu0 0.0
    %2128 = vmatpush2.msra.mxu0 0.0
    %2129 = vmatprep.subr.mxu0 0.0
    %2130 = vmatpush2.msra.mxu0 0.0
    %2131 = vmatprep.subr.mxu0 0.0
    %2132 = vmatpush2.msra.mxu0 0.0
    %2133 = vmatprep.subr.mxu0 0.0
    %2134 = vmatpush2.msra.mxu0 0.0
    %2135 = vmatprep.mubr.f32.mxu0 0.0
    %2136 = vmatmul.mubr.f32.gmra.mxu0 %v2001
    %v2137 = vpop.f32.mrf.mxu0
    %v2138 = vadd.f32 0.0, %v2137
    %v2139 = vpop.f32.mrf.mxu0
    %v2140 = vadd.f32 0.0, %v2139
    %2141 = vdwg.mxu0
    %2142 = vmatprep.subr.mxu0 %v2070
    %2143 = vmatpush1.msra.mxu0 %v2069
    %2144 = vmatprep.subr.mxu0 %v2066
    %2145 = vmatpush1.msra.mxu0 %v2065
    %2146 = vmatprep.subr.mxu0 %v2062
    %2147 = vmatpush1.msra.mxu0 %v2061
    %2148 = vmatprep.subr.mxu0 %v2058
    %2149 = vmatpush1.msra.mxu0 %v2057
    %2150 = vmatprep.subr.mxu0 %v2054
    %2151 = vmatpush1.msra.mxu0 %v2053
    %2152 = vmatprep.subr.mxu0 %v2050
    %2153 = vmatpush1.msra.mxu0 %v2049
    %2154 = vmatprep.subr.mxu0 %v2046
    %2155 = vmatpush1.msra.mxu0 %v2045
    %2156 = vmatprep.subr.mxu0 %v2042
    %2157 = vmatpush1.msra.mxu0 %v2041
    %2158 = vmatprep.subr.mxu0 %v2038
    %2159 = vmatpush1.msra.mxu0 %v2037
    %2160 = vmatprep.subr.mxu0 %v2034
    %2161 = vmatpush1.msra.mxu0 %v2033
    %2162 = vmatprep.subr.mxu0 %v2030
    %2163 = vmatpush1.msra.mxu0 %v2029
    %2164 = vmatprep.subr.mxu0 %v2026
    %2165 = vmatpush1.msra.mxu0 %v2025
    %2166 = vmatprep.subr.mxu0 %v2022
    %2167 = vmatpush1.msra.mxu0 %v2021
    %2168 = vmatprep.subr.mxu0 %v2018
    %2169 = vmatpush1.msra.mxu0 %v2017
    %2170 = vmatprep.subr.mxu0 %v2014
    %2171 = vmatpush1.msra.mxu0 %v2013
    %2172 = vmatprep.subr.mxu0 %v2010
    %2173 = vmatpush1.msra.mxu0 %v2009
    %2174 = vmatprep.subr.mxu0 0.0
    %2175 = vmatpush2.msra.mxu0 0.0
    %2176 = vmatprep.subr.mxu0 0.0
    %2177 = vmatpush2.msra.mxu0 0.0
    %2178 = vmatprep.subr.mxu0 0.0
    %2179 = vmatpush2.msra.mxu0 0.0
    %2180 = vmatprep.subr.mxu0 0.0
    %2181 = vmatpush2.msra.mxu0 0.0
    %2182 = vmatprep.subr.mxu0 0.0
    %2183 = vmatpush2.msra.mxu0 0.0
    %2184 = vmatprep.subr.mxu0 0.0
    %2185 = vmatpush2.msra.mxu0 0.0
    %2186 = vmatprep.subr.mxu0 0.0
    %2187 = vmatpush2.msra.mxu0 0.0
    %2188 = vmatprep.subr.mxu0 0.0
    %2189 = vmatpush2.msra.mxu0 0.0
    %2190 = vmatprep.subr.mxu0 0.0
    %2191 = vmatpush2.msra.mxu0 0.0
    %2192 = vmatprep.subr.mxu0 0.0
    %2193 = vmatpush2.msra.mxu0 0.0
    %2194 = vmatprep.subr.mxu0 0.0
    %2195 = vmatpush2.msra.mxu0 0.0
    %2196 = vmatprep.subr.mxu0 0.0
    %2197 = vmatpush2.msra.mxu0 0.0
    %2198 = vmatprep.subr.mxu0 0.0
    %2199 = vmatpush2.msra.mxu0 0.0
    %2200 = vmatprep.subr.mxu0 0.0
    %2201 = vmatpush2.msra.mxu0 0.0
    %2202 = vmatprep.subr.mxu0 0.0
    %2203 = vmatpush2.msra.mxu0 0.0
    %2204 = vmatprep.subr.mxu0 0.0
    %2205 = vmatpush2.msra.mxu0 0.0
    %2206 = vmatprep.mubr.f32.mxu0 0.0
    %2207 = vmatmul.mubr.f32.gmra.mxu0 %v2001
    %v2208 = vpop.f32.mrf.mxu0
    %v2209 = vadd.f32 0.0, %v2208
    %v2210 = vpop.f32.mrf.mxu0
    %v2211 = vadd.f32 0.0, %v2210
    %2212 = vdwg.mxu0
    %v2213 = vadd.f32 %v2003, %v2138
    %v2214 = vadd.f32 %v2004, %v2140
    %v2215 = vadd.f32 %v2005, %v2209
    %v2216 = vadd.f32 %v2006, %v2211
    %v2217 = vxor.u32 %v2213, 2147483648
    %v2218 = vxor.u32 %v2214, 2147483648
    %v2219 = vxor.u32 %v2215, 2147483648
    %v2220 = vmul.f32 %v2217, 1.442695
    %v2221 = vpow.pop %v2220
    %v2222 = vmul.f32 %v2218, 1.442695
    %v2223 = vpow.pop %v2222
    %v2224 = vmul.f32 %v2219, 1.442695
    %v2225 = vpow.pop %v2224
    %v2226 = vadd.f32 %v2221, 1.0
    %v2227 = vadd.f32 %v2223, 1.0
    %v2228 = vadd.f32 %v2225, 1.0
    %v2229 = vrcp.pop %v2226
    %v2230 = vmul.f32 1.0, %v2229
    %v2231 = vrcp.pop %v2227
    %v2232 = vmul.f32 1.0, %v2231
    %v2233 = vrcp.pop %v2228
    %v2234 = vmul.f32 1.0, %v2233
    %v2235 = vtanh.pop %v2216
    %v2236 = vmul.f32 %v2232, %v1999
    %v2237 = vmul.f32 %v2230, %v2235
    %v2238 = vadd.f32 %v2236, %v2237
    %v2239 = vtanh.pop %v2238
    %v2240 = vmul.f32 %v2234, %v2239
    %2241 = vst [vmem:[#allocation3 + $0x30] sm:$0xff] %v2240
    %v2242 = vld [vmem:[#allocation2 + $0xe0] sm:$0xff]
    %v2243 = vld [vmem:[#allocation2 + $0xe8] sm:$0xff]
    %v2244 = vld [vmem:[#allocation2 + $0xf0] sm:$0xff]
    %v2245 = vld [vmem:[#allocation2 + $0xf8] sm:$0xff]
    %v2246 = vld [vmem:[#allocation7] sm:$0xff]
    %v2247 = vld [vmem:[#allocation7 + $0x8] sm:$0xff]
    %v2248 = vld [vmem:[#allocation7 + $0x10] sm:$0xff]
    %v2249 = vld [vmem:[#allocation7 + $0x18] sm:$0xff]
    %v2250 = vld [vmem:[#allocation7 + $0x20] sm:$0xff]
    %v2251 = vld [vmem:[#allocation7 + $0x28] sm:$0xff]
    %v2252 = vld [vmem:[#allocation7 + $0x30] sm:$0xff]
    %v2253 = vld [vmem:[#allocation7 + $0x38] sm:$0xff]
    %v2254 = vld [vmem:[#allocation7 + $0x40] sm:$0xff]
    %v2255 = vld [vmem:[#allocation7 + $0x48] sm:$0xff]
    %v2256 = vld [vmem:[#allocation7 + $0x50] sm:$0xff]
    %v2257 = vld [vmem:[#allocation7 + $0x58] sm:$0xff]
    %v2258 = vld [vmem:[#allocation7 + $0x60] sm:$0xff]
    %v2259 = vld [vmem:[#allocation7 + $0x68] sm:$0xff]
    %v2260 = vld [vmem:[#allocation7 + $0x70] sm:$0xff]
    %v2261 = vld [vmem:[#allocation7 + $0x78] sm:$0xff]
    %v2262 = vld [vmem:[#allocation7 + $0x80] sm:$0xff]
    %v2263 = vld [vmem:[#allocation7 + $0x88] sm:$0xff]
    %v2264 = vld [vmem:[#allocation7 + $0x90] sm:$0xff]
    %v2265 = vld [vmem:[#allocation7 + $0x98] sm:$0xff]
    %v2266 = vld [vmem:[#allocation7 + $0xa0] sm:$0xff]
    %v2267 = vld [vmem:[#allocation7 + $0xa8] sm:$0xff]
    %v2268 = vld [vmem:[#allocation7 + $0xb0] sm:$0xff]
    %v2269 = vld [vmem:[#allocation7 + $0xb8] sm:$0xff]
    %v2270 = vld [vmem:[#allocation7 + $0xc0] sm:$0xff]
    %v2271 = vld [vmem:[#allocation7 + $0xc8] sm:$0xff]
    %v2272 = vld [vmem:[#allocation7 + $0xd0] sm:$0xff]
    %v2273 = vld [vmem:[#allocation7 + $0xd8] sm:$0xff]
    %v2274 = vld [vmem:[#allocation7 + $0xe0] sm:$0xff]
    %v2275 = vld [vmem:[#allocation7 + $0xe8] sm:$0xff]
    %v2276 = vld [vmem:[#allocation7 + $0xf0] sm:$0xff]
    %v2277 = vld [vmem:[#allocation7 + $0xf8] sm:$0xff]
    %v2278 = vld [vmem:[#allocation7 + $0x100] sm:$0xff]
    %v2279 = vld [vmem:[#allocation7 + $0x108] sm:$0xff]
    %v2280 = vld [vmem:[#allocation7 + $0x110] sm:$0xff]
    %v2281 = vld [vmem:[#allocation7 + $0x118] sm:$0xff]
    %v2282 = vld [vmem:[#allocation7 + $0x120] sm:$0xff]
    %v2283 = vld [vmem:[#allocation7 + $0x128] sm:$0xff]
    %v2284 = vld [vmem:[#allocation7 + $0x130] sm:$0xff]
    %v2285 = vld [vmem:[#allocation7 + $0x138] sm:$0xff]
    %v2286 = vld [vmem:[#allocation7 + $0x140] sm:$0xff]
    %v2287 = vld [vmem:[#allocation7 + $0x148] sm:$0xff]
    %v2288 = vld [vmem:[#allocation7 + $0x150] sm:$0xff]
    %v2289 = vld [vmem:[#allocation7 + $0x158] sm:$0xff]
    %v2290 = vld [vmem:[#allocation7 + $0x160] sm:$0xff]
    %v2291 = vld [vmem:[#allocation7 + $0x168] sm:$0xff]
    %v2292 = vld [vmem:[#allocation7 + $0x170] sm:$0xff]
    %v2293 = vld [vmem:[#allocation7 + $0x178] sm:$0xff]
    %v2294 = vld [vmem:[#allocation7 + $0x180] sm:$0xff]
    %v2295 = vld [vmem:[#allocation7 + $0x188] sm:$0xff]
    %v2296 = vld [vmem:[#allocation7 + $0x190] sm:$0xff]
    %v2297 = vld [vmem:[#allocation7 + $0x198] sm:$0xff]
    %v2298 = vld [vmem:[#allocation7 + $0x1a0] sm:$0xff]
    %v2299 = vld [vmem:[#allocation7 + $0x1a8] sm:$0xff]
    %v2300 = vld [vmem:[#allocation7 + $0x1b0] sm:$0xff]
    %v2301 = vld [vmem:[#allocation7 + $0x1b8] sm:$0xff]
    %v2302 = vld [vmem:[#allocation7 + $0x1c0] sm:$0xff]
    %v2303 = vld [vmem:[#allocation7 + $0x1c8] sm:$0xff]
    %v2304 = vld [vmem:[#allocation7 + $0x1d0] sm:$0xff]
    %v2305 = vld [vmem:[#allocation7 + $0x1d8] sm:$0xff]
    %v2306 = vld [vmem:[#allocation7 + $0x1e0] sm:$0xff]
    %v2307 = vld [vmem:[#allocation7 + $0x1e8] sm:$0xff]
    %v2308 = vld [vmem:[#allocation7 + $0x1f0] sm:$0xff]
    %v2309 = vld [vmem:[#allocation7 + $0x1f8] sm:$0xff]
    %2310 = vmatprep.subr.mxu0 %v2307
    %2311 = vmatpush1.msra.mxu0 %v2306
    %2312 = vmatprep.subr.mxu0 %v2303
    %2313 = vmatpush1.msra.mxu0 %v2302
    %2314 = vmatprep.subr.mxu0 %v2299
    %2315 = vmatpush1.msra.mxu0 %v2298
    %2316 = vmatprep.subr.mxu0 %v2295
    %2317 = vmatpush1.msra.mxu0 %v2294
    %2318 = vmatprep.subr.mxu0 %v2291
    %2319 = vmatpush1.msra.mxu0 %v2290
    %2320 = vmatprep.subr.mxu0 %v2287
    %2321 = vmatpush1.msra.mxu0 %v2286
    %2322 = vmatprep.subr.mxu0 %v2283
    %2323 = vmatpush1.msra.mxu0 %v2282
    %2324 = vmatprep.subr.mxu0 %v2279
    %2325 = vmatpush1.msra.mxu0 %v2278
    %2326 = vmatprep.subr.mxu0 %v2275
    %2327 = vmatpush1.msra.mxu0 %v2274
    %2328 = vmatprep.subr.mxu0 %v2271
    %2329 = vmatpush1.msra.mxu0 %v2270
    %2330 = vmatprep.subr.mxu0 %v2267
    %2331 = vmatpush1.msra.mxu0 %v2266
    %2332 = vmatprep.subr.mxu0 %v2263
    %2333 = vmatpush1.msra.mxu0 %v2262
    %2334 = vmatprep.subr.mxu0 %v2259
    %2335 = vmatpush1.msra.mxu0 %v2258
    %2336 = vmatprep.subr.mxu0 %v2255
    %2337 = vmatpush1.msra.mxu0 %v2254
    %2338 = vmatprep.subr.mxu0 %v2251
    %2339 = vmatpush1.msra.mxu0 %v2250
    %2340 = vmatprep.subr.mxu0 %v2247
    %2341 = vmatpush1.msra.mxu0 %v2246
    %2342 = vmatprep.subr.mxu0 0.0
    %2343 = vmatpush2.msra.mxu0 0.0
    %2344 = vmatprep.subr.mxu0 0.0
    %2345 = vmatpush2.msra.mxu0 0.0
    %2346 = vmatprep.subr.mxu0 0.0
    %2347 = vmatpush2.msra.mxu0 0.0
    %2348 = vmatprep.subr.mxu0 0.0
    %2349 = vmatpush2.msra.mxu0 0.0
    %2350 = vmatprep.subr.mxu0 0.0
    %2351 = vmatpush2.msra.mxu0 0.0
    %2352 = vmatprep.subr.mxu0 0.0
    %2353 = vmatpush2.msra.mxu0 0.0
    %2354 = vmatprep.subr.mxu0 0.0
    %2355 = vmatpush2.msra.mxu0 0.0
    %2356 = vmatprep.subr.mxu0 0.0
    %2357 = vmatpush2.msra.mxu0 0.0
    %2358 = vmatprep.subr.mxu0 0.0
    %2359 = vmatpush2.msra.mxu0 0.0
    %2360 = vmatprep.subr.mxu0 0.0
    %2361 = vmatpush2.msra.mxu0 0.0
    %2362 = vmatprep.subr.mxu0 0.0
    %2363 = vmatpush2.msra.mxu0 0.0
    %2364 = vmatprep.subr.mxu0 0.0
    %2365 = vmatpush2.msra.mxu0 0.0
    %2366 = vmatprep.subr.mxu0 0.0
    %2367 = vmatpush2.msra.mxu0 0.0
    %2368 = vmatprep.subr.mxu0 0.0
    %2369 = vmatpush2.msra.mxu0 0.0
    %2370 = vmatprep.subr.mxu0 0.0
    %2371 = vmatpush2.msra.mxu0 0.0
    %2372 = vmatprep.subr.mxu0 0.0
    %2373 = vmatpush2.msra.mxu0 0.0
    %2374 = vmatprep.mubr.f32.mxu0 0.0
    %2375 = vmatmul.mubr.f32.gmra.mxu0 %v2240
    %v2376 = vpop.f32.mrf.mxu0
    %v2377 = vadd.f32 0.0, %v2376
    %v2378 = vpop.f32.mrf.mxu0
    %v2379 = vadd.f32 0.0, %v2378
    %2380 = vdwg.mxu0
    %2381 = vmatprep.subr.mxu0 %v2309
    %2382 = vmatpush1.msra.mxu0 %v2308
    %2383 = vmatprep.subr.mxu0 %v2305
    %2384 = vmatpush1.msra.mxu0 %v2304
    %2385 = vmatprep.subr.mxu0 %v2301
    %2386 = vmatpush1.msra.mxu0 %v2300
    %2387 = vmatprep.subr.mxu0 %v2297
    %2388 = vmatpush1.msra.mxu0 %v2296
    %2389 = vmatprep.subr.mxu0 %v2293
    %2390 = vmatpush1.msra.mxu0 %v2292
    %2391 = vmatprep.subr.mxu0 %v2289
    %2392 = vmatpush1.msra.mxu0 %v2288
    %2393 = vmatprep.subr.mxu0 %v2285
    %2394 = vmatpush1.msra.mxu0 %v2284
    %2395 = vmatprep.subr.mxu0 %v2281
    %2396 = vmatpush1.msra.mxu0 %v2280
    %2397 = vmatprep.subr.mxu0 %v2277
    %2398 = vmatpush1.msra.mxu0 %v2276
    %2399 = vmatprep.subr.mxu0 %v2273
    %2400 = vmatpush1.msra.mxu0 %v2272
    %2401 = vmatprep.subr.mxu0 %v2269
    %2402 = vmatpush1.msra.mxu0 %v2268
    %2403 = vmatprep.subr.mxu0 %v2265
    %2404 = vmatpush1.msra.mxu0 %v2264
    %2405 = vmatprep.subr.mxu0 %v2261
    %2406 = vmatpush1.msra.mxu0 %v2260
    %2407 = vmatprep.subr.mxu0 %v2257
    %2408 = vmatpush1.msra.mxu0 %v2256
    %2409 = vmatprep.subr.mxu0 %v2253
    %2410 = vmatpush1.msra.mxu0 %v2252
    %2411 = vmatprep.subr.mxu0 %v2249
    %2412 = vmatpush1.msra.mxu0 %v2248
    %2413 = vmatprep.subr.mxu0 0.0
    %2414 = vmatpush2.msra.mxu0 0.0
    %2415 = vmatprep.subr.mxu0 0.0
    %2416 = vmatpush2.msra.mxu0 0.0
    %2417 = vmatprep.subr.mxu0 0.0
    %2418 = vmatpush2.msra.mxu0 0.0
    %2419 = vmatprep.subr.mxu0 0.0
    %2420 = vmatpush2.msra.mxu0 0.0
    %2421 = vmatprep.subr.mxu0 0.0
    %2422 = vmatpush2.msra.mxu0 0.0
    %2423 = vmatprep.subr.mxu0 0.0
    %2424 = vmatpush2.msra.mxu0 0.0
    %2425 = vmatprep.subr.mxu0 0.0
    %2426 = vmatpush2.msra.mxu0 0.0
    %2427 = vmatprep.subr.mxu0 0.0
    %2428 = vmatpush2.msra.mxu0 0.0
    %2429 = vmatprep.subr.mxu0 0.0
    %2430 = vmatpush2.msra.mxu0 0.0
    %2431 = vmatprep.subr.mxu0 0.0
    %2432 = vmatpush2.msra.mxu0 0.0
    %2433 = vmatprep.subr.mxu0 0.0
    %2434 = vmatpush2.msra.mxu0 0.0
    %2435 = vmatprep.subr.mxu0 0.0
    %2436 = vmatpush2.msra.mxu0 0.0
    %2437 = vmatprep.subr.mxu0 0.0
    %2438 = vmatpush2.msra.mxu0 0.0
    %2439 = vmatprep.subr.mxu0 0.0
    %2440 = vmatpush2.msra.mxu0 0.0
    %2441 = vmatprep.subr.mxu0 0.0
    %2442 = vmatpush2.msra.mxu0 0.0
    %2443 = vmatprep.subr.mxu0 0.0
    %2444 = vmatpush2.msra.mxu0 0.0
    %2445 = vmatprep.mubr.f32.mxu0 0.0
    %2446 = vmatmul.mubr.f32.gmra.mxu0 %v2240
    %v2447 = vpop.f32.mrf.mxu0
    %v2448 = vadd.f32 0.0, %v2447
    %v2449 = vpop.f32.mrf.mxu0
    %v2450 = vadd.f32 0.0, %v2449
    %2451 = vdwg.mxu0
    %v2452 = vadd.f32 %v2242, %v2377
    %v2453 = vadd.f32 %v2243, %v2379
    %v2454 = vadd.f32 %v2244, %v2448
    %v2455 = vadd.f32 %v2245, %v2450
    %v2456 = vxor.u32 %v2452, 2147483648
    %v2457 = vxor.u32 %v2453, 2147483648
    %v2458 = vxor.u32 %v2454, 2147483648
    %v2459 = vmul.f32 %v2456, 1.442695
    %v2460 = vpow.pop %v2459
    %v2461 = vmul.f32 %v2457, 1.442695
    %v2462 = vpow.pop %v2461
    %v2463 = vmul.f32 %v2458, 1.442695
    %v2464 = vpow.pop %v2463
    %v2465 = vadd.f32 %v2460, 1.0
    %v2466 = vadd.f32 %v2462, 1.0
    %v2467 = vadd.f32 %v2464, 1.0
    %v2468 = vrcp.pop %v2465
    %v2469 = vmul.f32 1.0, %v2468
    %v2470 = vrcp.pop %v2466
    %v2471 = vmul.f32 1.0, %v2470
    %v2472 = vrcp.pop %v2467
    %v2473 = vmul.f32 1.0, %v2472
    %v2474 = vtanh.pop %v2455
    %v2475 = vmul.f32 %v2471, %v2238
    %v2476 = vmul.f32 %v2469, %v2474
    %v2477 = vadd.f32 %v2475, %v2476
    %v2478 = vtanh.pop %v2477
    %v2479 = vmul.f32 %v2473, %v2478
    %2480 = vst [vmem:[#allocation3 + $0x38] sm:$0xff] %v2479
    %v2481 = vld [vmem:[#allocation2 + $0x100] sm:$0xff]
    %v2482 = vld [vmem:[#allocation2 + $0x108] sm:$0xff]
    %v2483 = vld [vmem:[#allocation2 + $0x110] sm:$0xff]
    %v2484 = vld [vmem:[#allocation2 + $0x118] sm:$0xff]
    %v2485 = vld [vmem:[#allocation7] sm:$0xff]
    %v2486 = vld [vmem:[#allocation7 + $0x8] sm:$0xff]
    %v2487 = vld [vmem:[#allocation7 + $0x10] sm:$0xff]
    %v2488 = vld [vmem:[#allocation7 + $0x18] sm:$0xff]
    %v2489 = vld [vmem:[#allocation7 + $0x20] sm:$0xff]
    %v2490 = vld [vmem:[#allocation7 + $0x28] sm:$0xff]
    %v2491 = vld [vmem:[#allocation7 + $0x30] sm:$0xff]
    %v2492 = vld [vmem:[#allocation7 + $0x38] sm:$0xff]
    %v2493 = vld [vmem:[#allocation7 + $0x40] sm:$0xff]
    %v2494 = vld [vmem:[#allocation7 + $0x48] sm:$0xff]
    %v2495 = vld [vmem:[#allocation7 + $0x50] sm:$0xff]
    %v2496 = vld [vmem:[#allocation7 + $0x58] sm:$0xff]
    %v2497 = vld [vmem:[#allocation7 + $0x60] sm:$0xff]
    %v2498 = vld [vmem:[#allocation7 + $0x68] sm:$0xff]
    %v2499 = vld [vmem:[#allocation7 + $0x70] sm:$0xff]
    %v2500 = vld [vmem:[#allocation7 + $0x78] sm:$0xff]
    %v2501 = vld [vmem:[#allocation7 + $0x80] sm:$0xff]
    %v2502 = vld [vmem:[#allocation7 + $0x88] sm:$0xff]
    %v2503 = vld [vmem:[#allocation7 + $0x90] sm:$0xff]
    %v2504 = vld [vmem:[#allocation7 + $0x98] sm:$0xff]
    %v2505 = vld [vmem:[#allocation7 + $0xa0] sm:$0xff]
    %v2506 = vld [vmem:[#allocation7 + $0xa8] sm:$0xff]
    %v2507 = vld [vmem:[#allocation7 + $0xb0] sm:$0xff]
    %v2508 = vld [vmem:[#allocation7 + $0xb8] sm:$0xff]
    %v2509 = vld [vmem:[#allocation7 + $0xc0] sm:$0xff]
    %v2510 = vld [vmem:[#allocation7 + $0xc8] sm:$0xff]
    %v2511 = vld [vmem:[#allocation7 + $0xd0] sm:$0xff]
    %v2512 = vld [vmem:[#allocation7 + $0xd8] sm:$0xff]
    %v2513 = vld [vmem:[#allocation7 + $0xe0] sm:$0xff]
    %v2514 = vld [vmem:[#allocation7 + $0xe8] sm:$0xff]
    %v2515 = vld [vmem:[#allocation7 + $0xf0] sm:$0xff]
    %v2516 = vld [vmem:[#allocation7 + $0xf8] sm:$0xff]
    %v2517 = vld [vmem:[#allocation7 + $0x100] sm:$0xff]
    %v2518 = vld [vmem:[#allocation7 + $0x108] sm:$0xff]
    %v2519 = vld [vmem:[#allocation7 + $0x110] sm:$0xff]
    %v2520 = vld [vmem:[#allocation7 + $0x118] sm:$0xff]
    %v2521 = vld [vmem:[#allocation7 + $0x120] sm:$0xff]
    %v2522 = vld [vmem:[#allocation7 + $0x128] sm:$0xff]
    %v2523 = vld [vmem:[#allocation7 + $0x130] sm:$0xff]
    %v2524 = vld [vmem:[#allocation7 + $0x138] sm:$0xff]
    %v2525 = vld [vmem:[#allocation7 + $0x140] sm:$0xff]
    %v2526 = vld [vmem:[#allocation7 + $0x148] sm:$0xff]
    %v2527 = vld [vmem:[#allocation7 + $0x150] sm:$0xff]
    %v2528 = vld [vmem:[#allocation7 + $0x158] sm:$0xff]
    %v2529 = vld [vmem:[#allocation7 + $0x160] sm:$0xff]
    %v2530 = vld [vmem:[#allocation7 + $0x168] sm:$0xff]
    %v2531 = vld [vmem:[#allocation7 + $0x170] sm:$0xff]
    %v2532 = vld [vmem:[#allocation7 + $0x178] sm:$0xff]
    %v2533 = vld [vmem:[#allocation7 + $0x180] sm:$0xff]
    %v2534 = vld [vmem:[#allocation7 + $0x188] sm:$0xff]
    %v2535 = vld [vmem:[#allocation7 + $0x190] sm:$0xff]
    %v2536 = vld [vmem:[#allocation7 + $0x198] sm:$0xff]
    %v2537 = vld [vmem:[#allocation7 + $0x1a0] sm:$0xff]
    %v2538 = vld [vmem:[#allocation7 + $0x1a8] sm:$0xff]
    %v2539 = vld [vmem:[#allocation7 + $0x1b0] sm:$0xff]
    %v2540 = vld [vmem:[#allocation7 + $0x1b8] sm:$0xff]
    %v2541 = vld [vmem:[#allocation7 + $0x1c0] sm:$0xff]
    %v2542 = vld [vmem:[#allocation7 + $0x1c8] sm:$0xff]
    %v2543 = vld [vmem:[#allocation7 + $0x1d0] sm:$0xff]
    %v2544 = vld [vmem:[#allocation7 + $0x1d8] sm:$0xff]
    %v2545 = vld [vmem:[#allocation7 + $0x1e0] sm:$0xff]
    %v2546 = vld [vmem:[#allocation7 + $0x1e8] sm:$0xff]
    %v2547 = vld [vmem:[#allocation7 + $0x1f0] sm:$0xff]
    %v2548 = vld [vmem:[#allocation7 + $0x1f8] sm:$0xff]
    %2549 = vmatprep.subr.mxu0 %v2546
    %2550 = vmatpush1.msra.mxu0 %v2545
    %2551 = vmatprep.subr.mxu0 %v2542
    %2552 = vmatpush1.msra.mxu0 %v2541
    %2553 = vmatprep.subr.mxu0 %v2538
    %2554 = vmatpush1.msra.mxu0 %v2537
    %2555 = vmatprep.subr.mxu0 %v2534
    %2556 = vmatpush1.msra.mxu0 %v2533
    %2557 = vmatprep.subr.mxu0 %v2530
    %2558 = vmatpush1.msra.mxu0 %v2529
    %2559 = vmatprep.subr.mxu0 %v2526
    %2560 = vmatpush1.msra.mxu0 %v2525
    %2561 = vmatprep.subr.mxu0 %v2522
    %2562 = vmatpush1.msra.mxu0 %v2521
    %2563 = vmatprep.subr.mxu0 %v2518
    %2564 = vmatpush1.msra.mxu0 %v2517
    %2565 = vmatprep.subr.mxu0 %v2514
    %2566 = vmatpush1.msra.mxu0 %v2513
    %2567 = vmatprep.subr.mxu0 %v2510
    %2568 = vmatpush1.msra.mxu0 %v2509
    %2569 = vmatprep.subr.mxu0 %v2506
    %2570 = vmatpush1.msra.mxu0 %v2505
    %2571 = vmatprep.subr.mxu0 %v2502
    %2572 = vmatpush1.msra.mxu0 %v2501
    %2573 = vmatprep.subr.mxu0 %v2498
    %2574 = vmatpush1.msra.mxu0 %v2497
    %2575 = vmatprep.subr.mxu0 %v2494
    %2576 = vmatpush1.msra.mxu0 %v2493
    %2577 = vmatprep.subr.mxu0 %v2490
    %2578 = vmatpush1.msra.mxu0 %v2489
    %2579 = vmatprep.subr.mxu0 %v2486
    %2580 = vmatpush1.msra.mxu0 %v2485
    %2581 = vmatprep.subr.mxu0 0.0
    %2582 = vmatpush2.msra.mxu0 0.0
    %2583 = vmatprep.subr.mxu0 0.0
    %2584 = vmatpush2.msra.mxu0 0.0
    %2585 = vmatprep.subr.mxu0 0.0
    %2586 = vmatpush2.msra.mxu0 0.0
    %2587 = vmatprep.subr.mxu0 0.0
    %2588 = vmatpush2.msra.mxu0 0.0
    %2589 = vmatprep.subr.mxu0 0.0
    %2590 = vmatpush2.msra.mxu0 0.0
    %2591 = vmatprep.subr.mxu0 0.0
    %2592 = vmatpush2.msra.mxu0 0.0
    %2593 = vmatprep.subr.mxu0 0.0
    %2594 = vmatpush2.msra.mxu0 0.0
    %2595 = vmatprep.subr.mxu0 0.0
    %2596 = vmatpush2.msra.mxu0 0.0
    %2597 = vmatprep.subr.mxu0 0.0
    %2598 = vmatpush2.msra.mxu0 0.0
    %2599 = vmatprep.subr.mxu0 0.0
    %2600 = vmatpush2.msra.mxu0 0.0
    %2601 = vmatprep.subr.mxu0 0.0
    %2602 = vmatpush2.msra.mxu0 0.0
    %2603 = vmatprep.subr.mxu0 0.0
    %2604 = vmatpush2.msra.mxu0 0.0
    %2605 = vmatprep.subr.mxu0 0.0
    %2606 = vmatpush2.msra.mxu0 0.0
    %2607 = vmatprep.subr.mxu0 0.0
    %2608 = vmatpush2.msra.mxu0 0.0
    %2609 = vmatprep.subr.mxu0 0.0
    %2610 = vmatpush2.msra.mxu0 0.0
    %2611 = vmatprep.subr.mxu0 0.0
    %2612 = vmatpush2.msra.mxu0 0.0
    %2613 = vmatprep.mubr.f32.mxu0 0.0
    %2614 = vmatmul.mubr.f32.gmra.mxu0 %v2479
    %v2615 = vpop.f32.mrf.mxu0
    %v2616 = vadd.f32 0.0, %v2615
    %v2617 = vpop.f32.mrf.mxu0
    %v2618 = vadd.f32 0.0, %v2617
    %2619 = vdwg.mxu0
    %2620 = vmatprep.subr.mxu0 %v2548
    %2621 = vmatpush1.msra.mxu0 %v2547
    %2622 = vmatprep.subr.mxu0 %v2544
    %2623 = vmatpush1.msra.mxu0 %v2543
    %2624 = vmatprep.subr.mxu0 %v2540
    %2625 = vmatpush1.msra.mxu0 %v2539
    %2626 = vmatprep.subr.mxu0 %v2536
    %2627 = vmatpush1.msra.mxu0 %v2535
    %2628 = vmatprep.subr.mxu0 %v2532
    %2629 = vmatpush1.msra.mxu0 %v2531
    %2630 = vmatprep.subr.mxu0 %v2528
    %2631 = vmatpush1.msra.mxu0 %v2527
    %2632 = vmatprep.subr.mxu0 %v2524
    %2633 = vmatpush1.msra.mxu0 %v2523
    %2634 = vmatprep.subr.mxu0 %v2520
    %2635 = vmatpush1.msra.mxu0 %v2519
    %2636 = vmatprep.subr.mxu0 %v2516
    %2637 = vmatpush1.msra.mxu0 %v2515
    %2638 = vmatprep.subr.mxu0 %v2512
    %2639 = vmatpush1.msra.mxu0 %v2511
    %2640 = vmatprep.subr.mxu0 %v2508
    %2641 = vmatpush1.msra.mxu0 %v2507
    %2642 = vmatprep.subr.mxu0 %v2504
    %2643 = vmatpush1.msra.mxu0 %v2503
    %2644 = vmatprep.subr.mxu0 %v2500
    %2645 = vmatpush1.msra.mxu0 %v2499
    %2646 = vmatprep.subr.mxu0 %v2496
    %2647 = vmatpush1.msra.mxu0 %v2495
    %2648 = vmatprep.subr.mxu0 %v2492
    %2649 = vmatpush1.msra.mxu0 %v2491
    %2650 = vmatprep.subr.mxu0 %v2488
    %2651 = vmatpush1.msra.mxu0 %v2487
    %2652 = vmatprep.subr.mxu0 0.0
    %2653 = vmatpush2.msra.mxu0 0.0
    %2654 = vmatprep.subr.mxu0 0.0
    %2655 = vmatpush2.msra.mxu0 0.0
    %2656 = vmatprep.subr.mxu0 0.0
    %2657 = vmatpush2.msra.mxu0 0.0
    %2658 = vmatprep.subr.mxu0 0.0
    %2659 = vmatpush2.msra.mxu0 0.0
    %2660 = vmatprep.subr.mxu0 0.0
    %2661 = vmatpush2.msra.mxu0 0.0
    %2662 = vmatprep.subr.mxu0 0.0
    %2663 = vmatpush2.msra.mxu0 0.0
    %2664 = vmatprep.subr.mxu0 0.0
    %2665 = vmatpush2.msra.mxu0 0.0
    %2666 = vmatprep.subr.mxu0 0.0
    %2667 = vmatpush2.msra.mxu0 0.0
    %2668 = vmatprep.subr.mxu0 0.0
    %2669 = vmatpush2.msra.mxu0 0.0
    %2670 = vmatprep.subr.mxu0 0.0
    %2671 = vmatpush2.msra.mxu0 0.0
    %2672 = vmatprep.subr.mxu0 0.0
    %2673 = vmatpush2.msra.mxu0 0.0
    %2674 = vmatprep.subr.mxu0 0.0
    %2675 = vmatpush2.msra.mxu0 0.0
    %2676 = vmatprep.subr.mxu0 0.0
    %2677 = vmatpush2.msra.mxu0 0.0
    %2678 = vmatprep.subr.mxu0 0.0
    %2679 = vmatpush2.msra.mxu0 0.0
    %2680 = vmatprep.subr.mxu0 0.0
    %2681 = vmatpush2.msra.mxu0 0.0
    %2682 = vmatprep.subr.mxu0 0.0
    %2683 = vmatpush2.msra.mxu0 0.0
    %2684 = vmatprep.mubr.f32.mxu0 0.0
    %2685 = vmatmul.mubr.f32.gmra.mxu0 %v2479
    %v2686 = vpop.f32.mrf.mxu0
    %v2687 = vadd.f32 0.0, %v2686
    %v2688 = vpop.f32.mrf.mxu0
    %v2689 = vadd.f32 0.0, %v2688
    %2690 = vdwg.mxu0
    %v2691 = vadd.f32 %v2481, %v2616
    %v2692 = vadd.f32 %v2482, %v2618
    %v2693 = vadd.f32 %v2483, %v2687
    %v2694 = vadd.f32 %v2484, %v2689
    %v2695 = vxor.u32 %v2691, 2147483648
    %v2696 = vxor.u32 %v2692, 2147483648
    %v2697 = vxor.u32 %v2693, 2147483648
    %v2698 = vmul.f32 %v2695, 1.442695
    %v2699 = vpow.pop %v2698
    %v2700 = vmul.f32 %v2696, 1.442695
    %v2701 = vpow.pop %v2700
    %v2702 = vmul.f32 %v2697, 1.442695
    %v2703 = vpow.pop %v2702
    %v2704 = vadd.f32 %v2699, 1.0
    %v2705 = vadd.f32 %v2701, 1.0
    %v2706 = vadd.f32 %v2703, 1.0
    %v2707 = vrcp.pop %v2704
    %v2708 = vmul.f32 1.0, %v2707
    %v2709 = vrcp.pop %v2705
    %v2710 = vmul.f32 1.0, %v2709
    %v2711 = vrcp.pop %v2706
    %v2712 = vmul.f32 1.0, %v2711
    %v2713 = vtanh.pop %v2694
    %v2714 = vmul.f32 %v2710, %v2477
    %v2715 = vmul.f32 %v2708, %v2713
    %v2716 = vadd.f32 %v2714, %v2715
    %v2717 = vtanh.pop %v2716
    %v2718 = vmul.f32 %v2712, %v2717
    %2719 = vst [vmem:[#allocation3 + $0x40] sm:$0xff] %v2718
    %v2720 = vld [vmem:[#allocation2 + $0x120] sm:$0xff]
    %v2721 = vld [vmem:[#allocation2 + $0x128] sm:$0xff]
    %v2722 = vld [vmem:[#allocation2 + $0x130] sm:$0xff]
    %v2723 = vld [vmem:[#allocation2 + $0x138] sm:$0xff]
    %v2724 = vld [vmem:[#allocation7] sm:$0xff]
    %v2725 = vld [vmem:[#allocation7 + $0x8] sm:$0xff]
    %v2726 = vld [vmem:[#allocation7 + $0x10] sm:$0xff]
    %v2727 = vld [vmem:[#allocation7 + $0x18] sm:$0xff]
    %v2728 = vld [vmem:[#allocation7 + $0x20] sm:$0xff]
    %v2729 = vld [vmem:[#allocation7 + $0x28] sm:$0xff]
    %v2730 = vld [vmem:[#allocation7 + $0x30] sm:$0xff]
    %v2731 = vld [vmem:[#allocation7 + $0x38] sm:$0xff]
    %v2732 = vld [vmem:[#allocation7 + $0x40] sm:$0xff]
    %v2733 = vld [vmem:[#allocation7 + $0x48] sm:$0xff]
    %v2734 = vld [vmem:[#allocation7 + $0x50] sm:$0xff]
    %v2735 = vld [vmem:[#allocation7 + $0x58] sm:$0xff]
    %v2736 = vld [vmem:[#allocation7 + $0x60] sm:$0xff]
    %v2737 = vld [vmem:[#allocation7 + $0x68] sm:$0xff]
    %v2738 = vld [vmem:[#allocation7 + $0x70] sm:$0xff]
    %v2739 = vld [vmem:[#allocation7 + $0x78] sm:$0xff]
    %v2740 = vld [vmem:[#allocation7 + $0x80] sm:$0xff]
    %v2741 = vld [vmem:[#allocation7 + $0x88] sm:$0xff]
    %v2742 = vld [vmem:[#allocation7 + $0x90] sm:$0xff]
    %v2743 = vld [vmem:[#allocation7 + $0x98] sm:$0xff]
    %v2744 = vld [vmem:[#allocation7 + $0xa0] sm:$0xff]
    %v2745 = vld [vmem:[#allocation7 + $0xa8] sm:$0xff]
    %v2746 = vld [vmem:[#allocation7 + $0xb0] sm:$0xff]
    %v2747 = vld [vmem:[#allocation7 + $0xb8] sm:$0xff]
    %v2748 = vld [vmem:[#allocation7 + $0xc0] sm:$0xff]
    %v2749 = vld [vmem:[#allocation7 + $0xc8] sm:$0xff]
    %v2750 = vld [vmem:[#allocation7 + $0xd0] sm:$0xff]
    %v2751 = vld [vmem:[#allocation7 + $0xd8] sm:$0xff]
    %v2752 = vld [vmem:[#allocation7 + $0xe0] sm:$0xff]
    %v2753 = vld [vmem:[#allocation7 + $0xe8] sm:$0xff]
    %v2754 = vld [vmem:[#allocation7 + $0xf0] sm:$0xff]
    %v2755 = vld [vmem:[#allocation7 + $0xf8] sm:$0xff]
    %v2756 = vld [vmem:[#allocation7 + $0x100] sm:$0xff]
    %v2757 = vld [vmem:[#allocation7 + $0x108] sm:$0xff]
    %v2758 = vld [vmem:[#allocation7 + $0x110] sm:$0xff]
    %v2759 = vld [vmem:[#allocation7 + $0x118] sm:$0xff]
    %v2760 = vld [vmem:[#allocation7 + $0x120] sm:$0xff]
    %v2761 = vld [vmem:[#allocation7 + $0x128] sm:$0xff]
    %v2762 = vld [vmem:[#allocation7 + $0x130] sm:$0xff]
    %v2763 = vld [vmem:[#allocation7 + $0x138] sm:$0xff]
    %v2764 = vld [vmem:[#allocation7 + $0x140] sm:$0xff]
    %v2765 = vld [vmem:[#allocation7 + $0x148] sm:$0xff]
    %v2766 = vld [vmem:[#allocation7 + $0x150] sm:$0xff]
    %v2767 = vld [vmem:[#allocation7 + $0x158] sm:$0xff]
    %v2768 = vld [vmem:[#allocation7 + $0x160] sm:$0xff]
    %v2769 = vld [vmem:[#allocation7 + $0x168] sm:$0xff]
    %v2770 = vld [vmem:[#allocation7 + $0x170] sm:$0xff]
    %v2771 = vld [vmem:[#allocation7 + $0x178] sm:$0xff]
    %v2772 = vld [vmem:[#allocation7 + $0x180] sm:$0xff]
    %v2773 = vld [vmem:[#allocation7 + $0x188] sm:$0xff]
    %v2774 = vld [vmem:[#allocation7 + $0x190] sm:$0xff]
    %v2775 = vld [vmem:[#allocation7 + $0x198] sm:$0xff]
    %v2776 = vld [vmem:[#allocation7 + $0x1a0] sm:$0xff]
    %v2777 = vld [vmem:[#allocation7 + $0x1a8] sm:$0xff]
    %v2778 = vld [vmem:[#allocation7 + $0x1b0] sm:$0xff]
    %v2779 = vld [vmem:[#allocation7 + $0x1b8] sm:$0xff]
    %v2780 = vld [vmem:[#allocation7 + $0x1c0] sm:$0xff]
    %v2781 = vld [vmem:[#allocation7 + $0x1c8] sm:$0xff]
    %v2782 = vld [vmem:[#allocation7 + $0x1d0] sm:$0xff]
    %v2783 = vld [vmem:[#allocation7 + $0x1d8] sm:$0xff]
    %v2784 = vld [vmem:[#allocation7 + $0x1e0] sm:$0xff]
    %v2785 = vld [vmem:[#allocation7 + $0x1e8] sm:$0xff]
    %v2786 = vld [vmem:[#allocation7 + $0x1f0] sm:$0xff]
    %v2787 = vld [vmem:[#allocation7 + $0x1f8] sm:$0xff]
    %2788 = vmatprep.subr.mxu0 %v2785
    %2789 = vmatpush1.msra.mxu0 %v2784
    %2790 = vmatprep.subr.mxu0 %v2781
    %2791 = vmatpush1.msra.mxu0 %v2780
    %2792 = vmatprep.subr.mxu0 %v2777
    %2793 = vmatpush1.msra.mxu0 %v2776
    %2794 = vmatprep.subr.mxu0 %v2773
    %2795 = vmatpush1.msra.mxu0 %v2772
    %2796 = vmatprep.subr.mxu0 %v2769
    %2797 = vmatpush1.msra.mxu0 %v2768
    %2798 = vmatprep.subr.mxu0 %v2765
    %2799 = vmatpush1.msra.mxu0 %v2764
    %2800 = vmatprep.subr.mxu0 %v2761
    %2801 = vmatpush1.msra.mxu0 %v2760
    %2802 = vmatprep.subr.mxu0 %v2757
    %2803 = vmatpush1.msra.mxu0 %v2756
    %2804 = vmatprep.subr.mxu0 %v2753
    %2805 = vmatpush1.msra.mxu0 %v2752
    %2806 = vmatprep.subr.mxu0 %v2749
    %2807 = vmatpush1.msra.mxu0 %v2748
    %2808 = vmatprep.subr.mxu0 %v2745
    %2809 = vmatpush1.msra.mxu0 %v2744
    %2810 = vmatprep.subr.mxu0 %v2741
    %2811 = vmatpush1.msra.mxu0 %v2740
    %2812 = vmatprep.subr.mxu0 %v2737
    %2813 = vmatpush1.msra.mxu0 %v2736
    %2814 = vmatprep.subr.mxu0 %v2733
    %2815 = vmatpush1.msra.mxu0 %v2732
    %2816 = vmatprep.subr.mxu0 %v2729
    %2817 = vmatpush1.msra.mxu0 %v2728
    %2818 = vmatprep.subr.mxu0 %v2725
    %2819 = vmatpush1.msra.mxu0 %v2724
    %2820 = vmatprep.subr.mxu0 0.0
    %2821 = vmatpush2.msra.mxu0 0.0
    %2822 = vmatprep.subr.mxu0 0.0
    %2823 = vmatpush2.msra.mxu0 0.0
    %2824 = vmatprep.subr.mxu0 0.0
    %2825 = vmatpush2.msra.mxu0 0.0
    %2826 = vmatprep.subr.mxu0 0.0
    %2827 = vmatpush2.msra.mxu0 0.0
    %2828 = vmatprep.subr.mxu0 0.0
    %2829 = vmatpush2.msra.mxu0 0.0
    %2830 = vmatprep.subr.mxu0 0.0
    %2831 = vmatpush2.msra.mxu0 0.0
    %2832 = vmatprep.subr.mxu0 0.0
    %2833 = vmatpush2.msra.mxu0 0.0
    %2834 = vmatprep.subr.mxu0 0.0
    %2835 = vmatpush2.msra.mxu0 0.0
    %2836 = vmatprep.subr.mxu0 0.0
    %2837 = vmatpush2.msra.mxu0 0.0
    %2838 = vmatprep.subr.mxu0 0.0
    %2839 = vmatpush2.msra.mxu0 0.0
    %2840 = vmatprep.subr.mxu0 0.0
    %2841 = vmatpush2.msra.mxu0 0.0
    %2842 = vmatprep.subr.mxu0 0.0
    %2843 = vmatpush2.msra.mxu0 0.0
    %2844 = vmatprep.subr.mxu0 0.0
    %2845 = vmatpush2.msra.mxu0 0.0
    %2846 = vmatprep.subr.mxu0 0.0
    %2847 = vmatpush2.msra.mxu0 0.0
    %2848 = vmatprep.subr.mxu0 0.0
    %2849 = vmatpush2.msra.mxu0 0.0
    %2850 = vmatprep.subr.mxu0 0.0
    %2851 = vmatpush2.msra.mxu0 0.0
    %2852 = vmatprep.mubr.f32.mxu0 0.0
    %2853 = vmatmul.mubr.f32.gmra.mxu0 %v2718
    %v2854 = vpop.f32.mrf.mxu0
    %v2855 = vadd.f32 0.0, %v2854
    %v2856 = vpop.f32.mrf.mxu0
    %v2857 = vadd.f32 0.0, %v2856
    %2858 = vdwg.mxu0
    %2859 = vmatprep.subr.mxu0 %v2787
    %2860 = vmatpush1.msra.mxu0 %v2786
    %2861 = vmatprep.subr.mxu0 %v2783
    %2862 = vmatpush1.msra.mxu0 %v2782
    %2863 = vmatprep.subr.mxu0 %v2779
    %2864 = vmatpush1.msra.mxu0 %v2778
    %2865 = vmatprep.subr.mxu0 %v2775
    %2866 = vmatpush1.msra.mxu0 %v2774
    %2867 = vmatprep.subr.mxu0 %v2771
    %2868 = vmatpush1.msra.mxu0 %v2770
    %2869 = vmatprep.subr.mxu0 %v2767
    %2870 = vmatpush1.msra.mxu0 %v2766
    %2871 = vmatprep.subr.mxu0 %v2763
    %2872 = vmatpush1.msra.mxu0 %v2762
    %2873 = vmatprep.subr.mxu0 %v2759
    %2874 = vmatpush1.msra.mxu0 %v2758
    %2875 = vmatprep.subr.mxu0 %v2755
    %2876 = vmatpush1.msra.mxu0 %v2754
    %2877 = vmatprep.subr.mxu0 %v2751
    %2878 = vmatpush1.msra.mxu0 %v2750
    %2879 = vmatprep.subr.mxu0 %v2747
    %2880 = vmatpush1.msra.mxu0 %v2746
    %2881 = vmatprep.subr.mxu0 %v2743
    %2882 = vmatpush1.msra.mxu0 %v2742
    %2883 = vmatprep.subr.mxu0 %v2739
    %2884 = vmatpush1.msra.mxu0 %v2738
    %2885 = vmatprep.subr.mxu0 %v2735
    %2886 = vmatpush1.msra.mxu0 %v2734
    %2887 = vmatprep.subr.mxu0 %v2731
    %2888 = vmatpush1.msra.mxu0 %v2730
    %2889 = vmatprep.subr.mxu0 %v2727
    %2890 = vmatpush1.msra.mxu0 %v2726
    %2891 = vmatprep.subr.mxu0 0.0
    %2892 = vmatpush2.msra.mxu0 0.0
    %2893 = vmatprep.subr.mxu0 0.0
    %2894 = vmatpush2.msra.mxu0 0.0
    %2895 = vmatprep.subr.mxu0 0.0
    %2896 = vmatpush2.msra.mxu0 0.0
    %2897 = vmatprep.subr.mxu0 0.0
    %2898 = vmatpush2.msra.mxu0 0.0
    %2899 = vmatprep.subr.mxu0 0.0
    %2900 = vmatpush2.msra.mxu0 0.0
    %2901 = vmatprep.subr.mxu0 0.0
    %2902 = vmatpush2.msra.mxu0 0.0
    %2903 = vmatprep.subr.mxu0 0.0
    %2904 = vmatpush2.msra.mxu0 0.0
    %2905 = vmatprep.subr.mxu0 0.0
    %2906 = vmatpush2.msra.mxu0 0.0
    %2907 = vmatprep.subr.mxu0 0.0
    %2908 = vmatpush2.msra.mxu0 0.0
    %2909 = vmatprep.subr.mxu0 0.0
    %2910 = vmatpush2.msra.mxu0 0.0
    %2911 = vmatprep.subr.mxu0 0.0
    %2912 = vmatpush2.msra.mxu0 0.0
    %2913 = vmatprep.subr.mxu0 0.0
    %2914 = vmatpush2.msra.mxu0 0.0
    %2915 = vmatprep.subr.mxu0 0.0
    %2916 = vmatpush2.msra.mxu0 0.0
    %2917 = vmatprep.subr.mxu0 0.0
    %2918 = vmatpush2.msra.mxu0 0.0
    %2919 = vmatprep.subr.mxu0 0.0
    %2920 = vmatpush2.msra.mxu0 0.0
    %2921 = vmatprep.subr.mxu0 0.0
    %2922 = vmatpush2.msra.mxu0 0.0
    %2923 = vmatprep.mubr.f32.mxu0 0.0
    %2924 = vmatmul.mubr.f32.gmra.mxu0 %v2718
    %v2925 = vpop.f32.mrf.mxu0
    %v2926 = vadd.f32 0.0, %v2925
    %v2927 = vpop.f32.mrf.mxu0
    %v2928 = vadd.f32 0.0, %v2927
    %2929 = vdwg.mxu0
    %v2930 = vadd.f32 %v2720, %v2855
    %v2931 = vadd.f32 %v2721, %v2857
    %v2932 = vadd.f32 %v2722, %v2926
    %v2933 = vadd.f32 %v2723, %v2928
    %v2934 = vxor.u32 %v2930, 2147483648
    %v2935 = vxor.u32 %v2931, 2147483648
    %v2936 = vxor.u32 %v2932, 2147483648
    %v2937 = vmul.f32 %v2934, 1.442695
    %v2938 = vpow.pop %v2937
    %v2939 = vmul.f32 %v2935, 1.442695
    %v2940 = vpow.pop %v2939
    %v2941 = vmul.f32 %v2936, 1.442695
    %v2942 = vpow.pop %v2941
    %v2943 = vadd.f32 %v2938, 1.0
    %v2944 = vadd.f32 %v2940, 1.0
    %v2945 = vadd.f32 %v2942, 1.0
    %v2946 = vrcp.pop %v2943
    %v2947 = vmul.f32 1.0, %v2946
    %v2948 = vrcp.pop %v2944
    %v2949 = vmul.f32 1.0, %v2948
    %v2950 = vrcp.pop %v2945
    %v2951 = vmul.f32 1.0, %v2950
    %v2952 = vtanh.pop %v2933
    %v2953 = vmul.f32 %v2949, %v2716
    %v2954 = vmul.f32 %v2947, %v2952
    %v2955 = vadd.f32 %v2953, %v2954
    %v2956 = vtanh.pop %v2955
    %v2957 = vmul.f32 %v2951, %v2956
    %2958 = vst [vmem:[#allocation3 + $0x48] sm:$0xff] %v2957
    %v2959 = vld [vmem:[#allocation2 + $0x140] sm:$0xff]
    %v2960 = vld [vmem:[#allocation2 + $0x148] sm:$0xff]
    %v2961 = vld [vmem:[#allocation2 + $0x150] sm:$0xff]
    %v2962 = vld [vmem:[#allocation2 + $0x158] sm:$0xff]
    %v2963 = vld [vmem:[#allocation7] sm:$0xff]
    %v2964 = vld [vmem:[#allocation7 + $0x8] sm:$0xff]
    %v2965 = vld [vmem:[#allocation7 + $0x10] sm:$0xff]
    %v2966 = vld [vmem:[#allocation7 + $0x18] sm:$0xff]
    %v2967 = vld [vmem:[#allocation7 + $0x20] sm:$0xff]
    %v2968 = vld [vmem:[#allocation7 + $0x28] sm:$0xff]
    %v2969 = vld [vmem:[#allocation7 + $0x30] sm:$0xff]
    %v2970 = vld [vmem:[#allocation7 + $0x38] sm:$0xff]
    %v2971 = vld [vmem:[#allocation7 + $0x40] sm:$0xff]
    %v2972 = vld [vmem:[#allocation7 + $0x48] sm:$0xff]
    %v2973 = vld [vmem:[#allocation7 + $0x50] sm:$0xff]
    %v2974 = vld [vmem:[#allocation7 + $0x58] sm:$0xff]
    %v2975 = vld [vmem:[#allocation7 + $0x60] sm:$0xff]
    %v2976 = vld [vmem:[#allocation7 + $0x68] sm:$0xff]
    %v2977 = vld [vmem:[#allocation7 + $0x70] sm:$0xff]
    %v2978 = vld [vmem:[#allocation7 + $0x78] sm:$0xff]
    %v2979 = vld [vmem:[#allocation7 + $0x80] sm:$0xff]
    %v2980 = vld [vmem:[#allocation7 + $0x88] sm:$0xff]
    %v2981 = vld [vmem:[#allocation7 + $0x90] sm:$0xff]
    %v2982 = vld [vmem:[#allocation7 + $0x98] sm:$0xff]
    %v2983 = vld [vmem:[#allocation7 + $0xa0] sm:$0xff]
    %v2984 = vld [vmem:[#allocation7 + $0xa8] sm:$0xff]
    %v2985 = vld [vmem:[#allocation7 + $0xb0] sm:$0xff]
    %v2986 = vld [vmem:[#allocation7 + $0xb8] sm:$0xff]
    %v2987 = vld [vmem:[#allocation7 + $0xc0] sm:$0xff]
    %v2988 = vld [vmem:[#allocation7 + $0xc8] sm:$0xff]
    %v2989 = vld [vmem:[#allocation7 + $0xd0] sm:$0xff]
    %v2990 = vld [vmem:[#allocation7 + $0xd8] sm:$0xff]
    %v2991 = vld [vmem:[#allocation7 + $0xe0] sm:$0xff]
    %v2992 = vld [vmem:[#allocation7 + $0xe8] sm:$0xff]
    %v2993 = vld [vmem:[#allocation7 + $0xf0] sm:$0xff]
    %v2994 = vld [vmem:[#allocation7 + $0xf8] sm:$0xff]
    %v2995 = vld [vmem:[#allocation7 + $0x100] sm:$0xff]
    %v2996 = vld [vmem:[#allocation7 + $0x108] sm:$0xff]
    %v2997 = vld [vmem:[#allocation7 + $0x110] sm:$0xff]
    %v2998 = vld [vmem:[#allocation7 + $0x118] sm:$0xff]
    %v2999 = vld [vmem:[#allocation7 + $0x120] sm:$0xff]
    %v3000 = vld [vmem:[#allocation7 + $0x128] sm:$0xff]
    %v3001 = vld [vmem:[#allocation7 + $0x130] sm:$0xff]
    %v3002 = vld [vmem:[#allocation7 + $0x138] sm:$0xff]
    %v3003 = vld [vmem:[#allocation7 + $0x140] sm:$0xff]
    %v3004 = vld [vmem:[#allocation7 + $0x148] sm:$0xff]
    %v3005 = vld [vmem:[#allocation7 + $0x150] sm:$0xff]
    %v3006 = vld [vmem:[#allocation7 + $0x158] sm:$0xff]
    %v3007 = vld [vmem:[#allocation7 + $0x160] sm:$0xff]
    %v3008 = vld [vmem:[#allocation7 + $0x168] sm:$0xff]
    %v3009 = vld [vmem:[#allocation7 + $0x170] sm:$0xff]
    %v3010 = vld [vmem:[#allocation7 + $0x178] sm:$0xff]
    %v3011 = vld [vmem:[#allocation7 + $0x180] sm:$0xff]
    %v3012 = vld [vmem:[#allocation7 + $0x188] sm:$0xff]
    %v3013 = vld [vmem:[#allocation7 + $0x190] sm:$0xff]
    %v3014 = vld [vmem:[#allocation7 + $0x198] sm:$0xff]
    %v3015 = vld [vmem:[#allocation7 + $0x1a0] sm:$0xff]
    %v3016 = vld [vmem:[#allocation7 + $0x1a8] sm:$0xff]
    %v3017 = vld [vmem:[#allocation7 + $0x1b0] sm:$0xff]
    %v3018 = vld [vmem:[#allocation7 + $0x1b8] sm:$0xff]
    %v3019 = vld [vmem:[#allocation7 + $0x1c0] sm:$0xff]
    %v3020 = vld [vmem:[#allocation7 + $0x1c8] sm:$0xff]
    %v3021 = vld [vmem:[#allocation7 + $0x1d0] sm:$0xff]
    %v3022 = vld [vmem:[#allocation7 + $0x1d8] sm:$0xff]
    %v3023 = vld [vmem:[#allocation7 + $0x1e0] sm:$0xff]
    %v3024 = vld [vmem:[#allocation7 + $0x1e8] sm:$0xff]
    %v3025 = vld [vmem:[#allocation7 + $0x1f0] sm:$0xff]
    %v3026 = vld [vmem:[#allocation7 + $0x1f8] sm:$0xff]
    %3027 = vmatprep.subr.mxu0 %v3024
    %3028 = vmatpush1.msra.mxu0 %v3023
    %3029 = vmatprep.subr.mxu0 %v3020
    %3030 = vmatpush1.msra.mxu0 %v3019
    %3031 = vmatprep.subr.mxu0 %v3016
    %3032 = vmatpush1.msra.mxu0 %v3015
    %3033 = vmatprep.subr.mxu0 %v3012
    %3034 = vmatpush1.msra.mxu0 %v3011
    %3035 = vmatprep.subr.mxu0 %v3008
    %3036 = vmatpush1.msra.mxu0 %v3007
    %3037 = vmatprep.subr.mxu0 %v3004
    %3038 = vmatpush1.msra.mxu0 %v3003
    %3039 = vmatprep.subr.mxu0 %v3000
    %3040 = vmatpush1.msra.mxu0 %v2999
    %3041 = vmatprep.subr.mxu0 %v2996
    %3042 = vmatpush1.msra.mxu0 %v2995
    %3043 = vmatprep.subr.mxu0 %v2992
    %3044 = vmatpush1.msra.mxu0 %v2991
    %3045 = vmatprep.subr.mxu0 %v2988
    %3046 = vmatpush1.msra.mxu0 %v2987
    %3047 = vmatprep.subr.mxu0 %v2984
    %3048 = vmatpush1.msra.mxu0 %v2983
    %3049 = vmatprep.subr.mxu0 %v2980
    %3050 = vmatpush1.msra.mxu0 %v2979
    %3051 = vmatprep.subr.mxu0 %v2976
    %3052 = vmatpush1.msra.mxu0 %v2975
    %3053 = vmatprep.subr.mxu0 %v2972
    %3054 = vmatpush1.msra.mxu0 %v2971
    %3055 = vmatprep.subr.mxu0 %v2968
    %3056 = vmatpush1.msra.mxu0 %v2967
    %3057 = vmatprep.subr.mxu0 %v2964
    %3058 = vmatpush1.msra.mxu0 %v2963
    %3059 = vmatprep.subr.mxu0 0.0
    %3060 = vmatpush2.msra.mxu0 0.0
    %3061 = vmatprep.subr.mxu0 0.0
    %3062 = vmatpush2.msra.mxu0 0.0
    %3063 = vmatprep.subr.mxu0 0.0
    %3064 = vmatpush2.msra.mxu0 0.0
    %3065 = vmatprep.subr.mxu0 0.0
    %3066 = vmatpush2.msra.mxu0 0.0
    %3067 = vmatprep.subr.mxu0 0.0
    %3068 = vmatpush2.msra.mxu0 0.0
    %3069 = vmatprep.subr.mxu0 0.0
    %3070 = vmatpush2.msra.mxu0 0.0
    %3071 = vmatprep.subr.mxu0 0.0
    %3072 = vmatpush2.msra.mxu0 0.0
    %3073 = vmatprep.subr.mxu0 0.0
    %3074 = vmatpush2.msra.mxu0 0.0
    %3075 = vmatprep.subr.mxu0 0.0
    %3076 = vmatpush2.msra.mxu0 0.0
    %3077 = vmatprep.subr.mxu0 0.0
    %3078 = vmatpush2.msra.mxu0 0.0
    %3079 = vmatprep.subr.mxu0 0.0
    %3080 = vmatpush2.msra.mxu0 0.0
    %3081 = vmatprep.subr.mxu0 0.0
    %3082 = vmatpush2.msra.mxu0 0.0
    %3083 = vmatprep.subr.mxu0 0.0
    %3084 = vmatpush2.msra.mxu0 0.0
    %3085 = vmatprep.subr.mxu0 0.0
    %3086 = vmatpush2.msra.mxu0 0.0
    %3087 = vmatprep.subr.mxu0 0.0
    %3088 = vmatpush2.msra.mxu0 0.0
    %3089 = vmatprep.subr.mxu0 0.0
    %3090 = vmatpush2.msra.mxu0 0.0
    %3091 = vmatprep.mubr.f32.mxu0 0.0
    %3092 = vmatmul.mubr.f32.gmra.mxu0 %v2957
    %v3093 = vpop.f32.mrf.mxu0
    %v3094 = vadd.f32 0.0, %v3093
    %v3095 = vpop.f32.mrf.mxu0
    %v3096 = vadd.f32 0.0, %v3095
    %3097 = vdwg.mxu0
    %3098 = vmatprep.subr.mxu0 %v3026
    %3099 = vmatpush1.msra.mxu0 %v3025
    %3100 = vmatprep.subr.mxu0 %v3022
    %3101 = vmatpush1.msra.mxu0 %v3021
    %3102 = vmatprep.subr.mxu0 %v3018
    %3103 = vmatpush1.msra.mxu0 %v3017
    %3104 = vmatprep.subr.mxu0 %v3014
    %3105 = vmatpush1.msra.mxu0 %v3013
    %3106 = vmatprep.subr.mxu0 %v3010
    %3107 = vmatpush1.msra.mxu0 %v3009
    %3108 = vmatprep.subr.mxu0 %v3006
    %3109 = vmatpush1.msra.mxu0 %v3005
    %3110 = vmatprep.subr.mxu0 %v3002
    %3111 = vmatpush1.msra.mxu0 %v3001
    %3112 = vmatprep.subr.mxu0 %v2998
    %3113 = vmatpush1.msra.mxu0 %v2997
    %3114 = vmatprep.subr.mxu0 %v2994
    %3115 = vmatpush1.msra.mxu0 %v2993
    %3116 = vmatprep.subr.mxu0 %v2990
    %3117 = vmatpush1.msra.mxu0 %v2989
    %3118 = vmatprep.subr.mxu0 %v2986
    %3119 = vmatpush1.msra.mxu0 %v2985
    %3120 = vmatprep.subr.mxu0 %v2982
    %3121 = vmatpush1.msra.mxu0 %v2981
    %3122 = vmatprep.subr.mxu0 %v2978
    %3123 = vmatpush1.msra.mxu0 %v2977
    %3124 = vmatprep.subr.mxu0 %v2974
    %3125 = vmatpush1.msra.mxu0 %v2973
    %3126 = vmatprep.subr.mxu0 %v2970
    %3127 = vmatpush1.msra.mxu0 %v2969
    %3128 = vmatprep.subr.mxu0 %v2966
    %3129 = vmatpush1.msra.mxu0 %v2965
    %3130 = vmatprep.subr.mxu0 0.0
    %3131 = vmatpush2.msra.mxu0 0.0
    %3132 = vmatprep.subr.mxu0 0.0
    %3133 = vmatpush2.msra.mxu0 0.0
    %3134 = vmatprep.subr.mxu0 0.0
    %3135 = vmatpush2.msra.mxu0 0.0
    %3136 = vmatprep.subr.mxu0 0.0
    %3137 = vmatpush2.msra.mxu0 0.0
    %3138 = vmatprep.subr.mxu0 0.0
    %3139 = vmatpush2.msra.mxu0 0.0
    %3140 = vmatprep.subr.mxu0 0.0
    %3141 = vmatpush2.msra.mxu0 0.0
    %3142 = vmatprep.subr.mxu0 0.0
    %3143 = vmatpush2.msra.mxu0 0.0
    %3144 = vmatprep.subr.mxu0 0.0
    %3145 = vmatpush2.msra.mxu0 0.0
    %3146 = vmatprep.subr.mxu0 0.0
    %3147 = vmatpush2.msra.mxu0 0.0
    %3148 = vmatprep.subr.mxu0 0.0
    %3149 = vmatpush2.msra.mxu0 0.0
    %3150 = vmatprep.subr.mxu0 0.0
    %3151 = vmatpush2.msra.mxu0 0.0
    %3152 = vmatprep.subr.mxu0 0.0
    %3153 = vmatpush2.msra.mxu0 0.0
    %3154 = vmatprep.subr.mxu0 0.0
    %3155 = vmatpush2.msra.mxu0 0.0
    %3156 = vmatprep.subr.mxu0 0.0
    %3157 = vmatpush2.msra.mxu0 0.0
    %3158 = vmatprep.subr.mxu0 0.0
    %3159 = vmatpush2.msra.mxu0 0.0
    %3160 = vmatprep.subr.mxu0 0.0
    %3161 = vmatpush2.msra.mxu0 0.0
    %3162 = vmatprep.mubr.f32.mxu0 0.0
    %3163 = vmatmul.mubr.f32.gmra.mxu0 %v2957
    %v3164 = vpop.f32.mrf.mxu0
    %v3165 = vadd.f32 0.0, %v3164
    %v3166 = vpop.f32.mrf.mxu0
    %v3167 = vadd.f32 0.0, %v3166
    %3168 = vdwg.mxu0
    %v3169 = vadd.f32 %v2959, %v3094
    %v3170 = vadd.f32 %v2960, %v3096
    %v3171 = vadd.f32 %v2961, %v3165
    %v3172 = vadd.f32 %v2962, %v3167
    %v3173 = vxor.u32 %v3169, 2147483648
    %v3174 = vxor.u32 %v3170, 2147483648
    %v3175 = vxor.u32 %v3171, 2147483648
    %v3176 = vmul.f32 %v3173, 1.442695
    %v3177 = vpow.pop %v3176
    %v3178 = vmul.f32 %v3174, 1.442695
    %v3179 = vpow.pop %v3178
    %v3180 = vmul.f32 %v3175, 1.442695
    %v3181 = vpow.pop %v3180
    %v3182 = vadd.f32 %v3177, 1.0
    %v3183 = vadd.f32 %v3179, 1.0
    %v3184 = vadd.f32 %v3181, 1.0
    %v3185 = vrcp.pop %v3182
    %v3186 = vmul.f32 1.0, %v3185
    %v3187 = vrcp.pop %v3183
    %v3188 = vmul.f32 1.0, %v3187
    %v3189 = vrcp.pop %v3184
    %v3190 = vmul.f32 1.0, %v3189
    %v3191 = vtanh.pop %v3172
    %v3192 = vmul.f32 %v3188, %v2955
    %v3193 = vmul.f32 %v3186, %v3191
    %v3194 = vadd.f32 %v3192, %v3193
    %v3195 = vtanh.pop %v3194
    %v3196 = vmul.f32 %v3190, %v3195
    %3197 = vst [vmem:[#allocation3 + $0x50] sm:$0xff] %v3196
    %v3198 = vld [vmem:[#allocation2 + $0x160] sm:$0xff]
    %v3199 = vld [vmem:[#allocation2 + $0x168] sm:$0xff]
    %v3200 = vld [vmem:[#allocation2 + $0x170] sm:$0xff]
    %v3201 = vld [vmem:[#allocation2 + $0x178] sm:$0xff]
    %v3202 = vld [vmem:[#allocation7] sm:$0xff]
    %v3203 = vld [vmem:[#allocation7 + $0x8] sm:$0xff]
    %v3204 = vld [vmem:[#allocation7 + $0x10] sm:$0xff]
    %v3205 = vld [vmem:[#allocation7 + $0x18] sm:$0xff]
    %v3206 = vld [vmem:[#allocation7 + $0x20] sm:$0xff]
    %v3207 = vld [vmem:[#allocation7 + $0x28] sm:$0xff]
    %v3208 = vld [vmem:[#allocation7 + $0x30] sm:$0xff]
    %v3209 = vld [vmem:[#allocation7 + $0x38] sm:$0xff]
    %v3210 = vld [vmem:[#allocation7 + $0x40] sm:$0xff]
    %v3211 = vld [vmem:[#allocation7 + $0x48] sm:$0xff]
    %v3212 = vld [vmem:[#allocation7 + $0x50] sm:$0xff]
    %v3213 = vld [vmem:[#allocation7 + $0x58] sm:$0xff]
    %v3214 = vld [vmem:[#allocation7 + $0x60] sm:$0xff]
    %v3215 = vld [vmem:[#allocation7 + $0x68] sm:$0xff]
    %v3216 = vld [vmem:[#allocation7 + $0x70] sm:$0xff]
    %v3217 = vld [vmem:[#allocation7 + $0x78] sm:$0xff]
    %v3218 = vld [vmem:[#allocation7 + $0x80] sm:$0xff]
    %v3219 = vld [vmem:[#allocation7 + $0x88] sm:$0xff]
    %v3220 = vld [vmem:[#allocation7 + $0x90] sm:$0xff]
    %v3221 = vld [vmem:[#allocation7 + $0x98] sm:$0xff]
    %v3222 = vld [vmem:[#allocation7 + $0xa0] sm:$0xff]
    %v3223 = vld [vmem:[#allocation7 + $0xa8] sm:$0xff]
    %v3224 = vld [vmem:[#allocation7 + $0xb0] sm:$0xff]
    %v3225 = vld [vmem:[#allocation7 + $0xb8] sm:$0xff]
    %v3226 = vld [vmem:[#allocation7 + $0xc0] sm:$0xff]
    %v3227 = vld [vmem:[#allocation7 + $0xc8] sm:$0xff]
    %v3228 = vld [vmem:[#allocation7 + $0xd0] sm:$0xff]
    %v3229 = vld [vmem:[#allocation7 + $0xd8] sm:$0xff]
    %v3230 = vld [vmem:[#allocation7 + $0xe0] sm:$0xff]
    %v3231 = vld [vmem:[#allocation7 + $0xe8] sm:$0xff]
    %v3232 = vld [vmem:[#allocation7 + $0xf0] sm:$0xff]
    %v3233 = vld [vmem:[#allocation7 + $0xf8] sm:$0xff]
    %v3234 = vld [vmem:[#allocation7 + $0x100] sm:$0xff]
    %v3235 = vld [vmem:[#allocation7 + $0x108] sm:$0xff]
    %v3236 = vld [vmem:[#allocation7 + $0x110] sm:$0xff]
    %v3237 = vld [vmem:[#allocation7 + $0x118] sm:$0xff]
    %v3238 = vld [vmem:[#allocation7 + $0x120] sm:$0xff]
    %v3239 = vld [vmem:[#allocation7 + $0x128] sm:$0xff]
    %v3240 = vld [vmem:[#allocation7 + $0x130] sm:$0xff]
    %v3241 = vld [vmem:[#allocation7 + $0x138] sm:$0xff]
    %v3242 = vld [vmem:[#allocation7 + $0x140] sm:$0xff]
    %v3243 = vld [vmem:[#allocation7 + $0x148] sm:$0xff]
    %v3244 = vld [vmem:[#allocation7 + $0x150] sm:$0xff]
    %v3245 = vld [vmem:[#allocation7 + $0x158] sm:$0xff]
    %v3246 = vld [vmem:[#allocation7 + $0x160] sm:$0xff]
    %v3247 = vld [vmem:[#allocation7 + $0x168] sm:$0xff]
    %v3248 = vld [vmem:[#allocation7 + $0x170] sm:$0xff]
    %v3249 = vld [vmem:[#allocation7 + $0x178] sm:$0xff]
    %v3250 = vld [vmem:[#allocation7 + $0x180] sm:$0xff]
    %v3251 = vld [vmem:[#allocation7 + $0x188] sm:$0xff]
    %v3252 = vld [vmem:[#allocation7 + $0x190] sm:$0xff]
    %v3253 = vld [vmem:[#allocation7 + $0x198] sm:$0xff]
    %v3254 = vld [vmem:[#allocation7 + $0x1a0] sm:$0xff]
    %v3255 = vld [vmem:[#allocation7 + $0x1a8] sm:$0xff]
    %v3256 = vld [vmem:[#allocation7 + $0x1b0] sm:$0xff]
    %v3257 = vld [vmem:[#allocation7 + $0x1b8] sm:$0xff]
    %v3258 = vld [vmem:[#allocation7 + $0x1c0] sm:$0xff]
    %v3259 = vld [vmem:[#allocation7 + $0x1c8] sm:$0xff]
    %v3260 = vld [vmem:[#allocation7 + $0x1d0] sm:$0xff]
    %v3261 = vld [vmem:[#allocation7 + $0x1d8] sm:$0xff]
    %v3262 = vld [vmem:[#allocation7 + $0x1e0] sm:$0xff]
    %v3263 = vld [vmem:[#allocation7 + $0x1e8] sm:$0xff]
    %v3264 = vld [vmem:[#allocation7 + $0x1f0] sm:$0xff]
    %v3265 = vld [vmem:[#allocation7 + $0x1f8] sm:$0xff]
    %3266 = vmatprep.subr.mxu0 %v3263
    %3267 = vmatpush1.msra.mxu0 %v3262
    %3268 = vmatprep.subr.mxu0 %v3259
    %3269 = vmatpush1.msra.mxu0 %v3258
    %3270 = vmatprep.subr.mxu0 %v3255
    %3271 = vmatpush1.msra.mxu0 %v3254
    %3272 = vmatprep.subr.mxu0 %v3251
    %3273 = vmatpush1.msra.mxu0 %v3250
    %3274 = vmatprep.subr.mxu0 %v3247
    %3275 = vmatpush1.msra.mxu0 %v3246
    %3276 = vmatprep.subr.mxu0 %v3243
    %3277 = vmatpush1.msra.mxu0 %v3242
    %3278 = vmatprep.subr.mxu0 %v3239
    %3279 = vmatpush1.msra.mxu0 %v3238
    %3280 = vmatprep.subr.mxu0 %v3235
    %3281 = vmatpush1.msra.mxu0 %v3234
    %3282 = vmatprep.subr.mxu0 %v3231
    %3283 = vmatpush1.msra.mxu0 %v3230
    %3284 = vmatprep.subr.mxu0 %v3227
    %3285 = vmatpush1.msra.mxu0 %v3226
    %3286 = vmatprep.subr.mxu0 %v3223
    %3287 = vmatpush1.msra.mxu0 %v3222
    %3288 = vmatprep.subr.mxu0 %v3219
    %3289 = vmatpush1.msra.mxu0 %v3218
    %3290 = vmatprep.subr.mxu0 %v3215
    %3291 = vmatpush1.msra.mxu0 %v3214
    %3292 = vmatprep.subr.mxu0 %v3211
    %3293 = vmatpush1.msra.mxu0 %v3210
    %3294 = vmatprep.subr.mxu0 %v3207
    %3295 = vmatpush1.msra.mxu0 %v3206
    %3296 = vmatprep.subr.mxu0 %v3203
    %3297 = vmatpush1.msra.mxu0 %v3202
    %3298 = vmatprep.subr.mxu0 0.0
    %3299 = vmatpush2.msra.mxu0 0.0
    %3300 = vmatprep.subr.mxu0 0.0
    %3301 = vmatpush2.msra.mxu0 0.0
    %3302 = vmatprep.subr.mxu0 0.0
    %3303 = vmatpush2.msra.mxu0 0.0
    %3304 = vmatprep.subr.mxu0 0.0
    %3305 = vmatpush2.msra.mxu0 0.0
    %3306 = vmatprep.subr.mxu0 0.0
    %3307 = vmatpush2.msra.mxu0 0.0
    %3308 = vmatprep.subr.mxu0 0.0
    %3309 = vmatpush2.msra.mxu0 0.0
    %3310 = vmatprep.subr.mxu0 0.0
    %3311 = vmatpush2.msra.mxu0 0.0
    %3312 = vmatprep.subr.mxu0 0.0
    %3313 = vmatpush2.msra.mxu0 0.0
    %3314 = vmatprep.subr.mxu0 0.0
    %3315 = vmatpush2.msra.mxu0 0.0
    %3316 = vmatprep.subr.mxu0 0.0
    %3317 = vmatpush2.msra.mxu0 0.0
    %3318 = vmatprep.subr.mxu0 0.0
    %3319 = vmatpush2.msra.mxu0 0.0
    %3320 = vmatprep.subr.mxu0 0.0
    %3321 = vmatpush2.msra.mxu0 0.0
    %3322 = vmatprep.subr.mxu0 0.0
    %3323 = vmatpush2.msra.mxu0 0.0
    %3324 = vmatprep.subr.mxu0 0.0
    %3325 = vmatpush2.msra.mxu0 0.0
    %3326 = vmatprep.subr.mxu0 0.0
    %3327 = vmatpush2.msra.mxu0 0.0
    %3328 = vmatprep.subr.mxu0 0.0
    %3329 = vmatpush2.msra.mxu0 0.0
    %3330 = vmatprep.mubr.f32.mxu0 0.0
    %3331 = vmatmul.mubr.f32.gmra.mxu0 %v3196
    %v3332 = vpop.f32.mrf.mxu0
    %v3333 = vadd.f32 0.0, %v3332
    %v3334 = vpop.f32.mrf.mxu0
    %v3335 = vadd.f32 0.0, %v3334
    %3336 = vdwg.mxu0
    %3337 = vmatprep.subr.mxu0 %v3265
    %3338 = vmatpush1.msra.mxu0 %v3264
    %3339 = vmatprep.subr.mxu0 %v3261
    %3340 = vmatpush1.msra.mxu0 %v3260
    %3341 = vmatprep.subr.mxu0 %v3257
    %3342 = vmatpush1.msra.mxu0 %v3256
    %3343 = vmatprep.subr.mxu0 %v3253
    %3344 = vmatpush1.msra.mxu0 %v3252
    %3345 = vmatprep.subr.mxu0 %v3249
    %3346 = vmatpush1.msra.mxu0 %v3248
    %3347 = vmatprep.subr.mxu0 %v3245
    %3348 = vmatpush1.msra.mxu0 %v3244
    %3349 = vmatprep.subr.mxu0 %v3241
    %3350 = vmatpush1.msra.mxu0 %v3240
    %3351 = vmatprep.subr.mxu0 %v3237
    %3352 = vmatpush1.msra.mxu0 %v3236
    %3353 = vmatprep.subr.mxu0 %v3233
    %3354 = vmatpush1.msra.mxu0 %v3232
    %3355 = vmatprep.subr.mxu0 %v3229
    %3356 = vmatpush1.msra.mxu0 %v3228
    %3357 = vmatprep.subr.mxu0 %v3225
    %3358 = vmatpush1.msra.mxu0 %v3224
    %3359 = vmatprep.subr.mxu0 %v3221
    %3360 = vmatpush1.msra.mxu0 %v3220
    %3361 = vmatprep.subr.mxu0 %v3217
    %3362 = vmatpush1.msra.mxu0 %v3216
    %3363 = vmatprep.subr.mxu0 %v3213
    %3364 = vmatpush1.msra.mxu0 %v3212
    %3365 = vmatprep.subr.mxu0 %v3209
    %3366 = vmatpush1.msra.mxu0 %v3208
    %3367 = vmatprep.subr.mxu0 %v3205
    %3368 = vmatpush1.msra.mxu0 %v3204
    %3369 = vmatprep.subr.mxu0 0.0
    %3370 = vmatpush2.msra.mxu0 0.0
    %3371 = vmatprep.subr.mxu0 0.0
    %3372 = vmatpush2.msra.mxu0 0.0
    %3373 = vmatprep.subr.mxu0 0.0
    %3374 = vmatpush2.msra.mxu0 0.0
    %3375 = vmatprep.subr.mxu0 0.0
    %3376 = vmatpush2.msra.mxu0 0.0
    %3377 = vmatprep.subr.mxu0 0.0
    %3378 = vmatpush2.msra.mxu0 0.0
    %3379 = vmatprep.subr.mxu0 0.0
    %3380 = vmatpush2.msra.mxu0 0.0
    %3381 = vmatprep.subr.mxu0 0.0
    %3382 = vmatpush2.msra.mxu0 0.0
    %3383 = vmatprep.subr.mxu0 0.0
    %3384 = vmatpush2.msra.mxu0 0.0
    %3385 = vmatprep.subr.mxu0 0.0
    %3386 = vmatpush2.msra.mxu0 0.0
    %3387 = vmatprep.subr.mxu0 0.0
    %3388 = vmatpush2.msra.mxu0 0.0
    %3389 = vmatprep.subr.mxu0 0.0
    %3390 = vmatpush2.msra.mxu0 0.0
    %3391 = vmatprep.subr.mxu0 0.0
    %3392 = vmatpush2.msra.mxu0 0.0
    %3393 = vmatprep.subr.mxu0 0.0
    %3394 = vmatpush2.msra.mxu0 0.0
    %3395 = vmatprep.subr.mxu0 0.0
    %3396 = vmatpush2.msra.mxu0 0.0
    %3397 = vmatprep.subr.mxu0 0.0
    %3398 = vmatpush2.msra.mxu0 0.0
    %3399 = vmatprep.subr.mxu0 0.0
    %3400 = vmatpush2.msra.mxu0 0.0
    %3401 = vmatprep.mubr.f32.mxu0 0.0
    %3402 = vmatmul.mubr.f32.gmra.mxu0 %v3196
    %v3403 = vpop.f32.mrf.mxu0
    %v3404 = vadd.f32 0.0, %v3403
    %v3405 = vpop.f32.mrf.mxu0
    %v3406 = vadd.f32 0.0, %v3405
    %3407 = vdwg.mxu0
    %v3408 = vadd.f32 %v3198, %v3333
    %v3409 = vadd.f32 %v3199, %v3335
    %v3410 = vadd.f32 %v3200, %v3404
    %v3411 = vadd.f32 %v3201, %v3406
    %v3412 = vxor.u32 %v3408, 2147483648
    %v3413 = vxor.u32 %v3409, 2147483648
    %v3414 = vxor.u32 %v3410, 2147483648
    %v3415 = vmul.f32 %v3412, 1.442695
    %v3416 = vpow.pop %v3415
    %v3417 = vmul.f32 %v3413, 1.442695
    %v3418 = vpow.pop %v3417
    %v3419 = vmul.f32 %v3414, 1.442695
    %v3420 = vpow.pop %v3419
    %v3421 = vadd.f32 %v3416, 1.0
    %v3422 = vadd.f32 %v3418, 1.0
    %v3423 = vadd.f32 %v3420, 1.0
    %v3424 = vrcp.pop %v3421
    %v3425 = vmul.f32 1.0, %v3424
    %v3426 = vrcp.pop %v3422
    %v3427 = vmul.f32 1.0, %v3426
    %v3428 = vrcp.pop %v3423
    %v3429 = vmul.f32 1.0, %v3428
    %v3430 = vtanh.pop %v3411
    %v3431 = vmul.f32 %v3427, %v3194
    %v3432 = vmul.f32 %v3425, %v3430
    %v3433 = vadd.f32 %v3431, %v3432
    %v3434 = vtanh.pop %v3433
    %v3435 = vmul.f32 %v3429, %v3434
    %3436 = vst [vmem:[#allocation3 + $0x58] sm:$0xff] %v3435
    %v3437 = vld [vmem:[#allocation2 + $0x180] sm:$0xff]
    %v3438 = vld [vmem:[#allocation2 + $0x188] sm:$0xff]
    %v3439 = vld [vmem:[#allocation2 + $0x190] sm:$0xff]
    %v3440 = vld [vmem:[#allocation2 + $0x198] sm:$0xff]
    %v3441 = vld [vmem:[#allocation7] sm:$0xff]
    %v3442 = vld [vmem:[#allocation7 + $0x8] sm:$0xff]
    %v3443 = vld [vmem:[#allocation7 + $0x10] sm:$0xff]
    %v3444 = vld [vmem:[#allocation7 + $0x18] sm:$0xff]
    %v3445 = vld [vmem:[#allocation7 + $0x20] sm:$0xff]
    %v3446 = vld [vmem:[#allocation7 + $0x28] sm:$0xff]
    %v3447 = vld [vmem:[#allocation7 + $0x30] sm:$0xff]
    %v3448 = vld [vmem:[#allocation7 + $0x38] sm:$0xff]
    %v3449 = vld [vmem:[#allocation7 + $0x40] sm:$0xff]
    %v3450 = vld [vmem:[#allocation7 + $0x48] sm:$0xff]
    %v3451 = vld [vmem:[#allocation7 + $0x50] sm:$0xff]
    %v3452 = vld [vmem:[#allocation7 + $0x58] sm:$0xff]
    %v3453 = vld [vmem:[#allocation7 + $0x60] sm:$0xff]
    %v3454 = vld [vmem:[#allocation7 + $0x68] sm:$0xff]
    %v3455 = vld [vmem:[#allocation7 + $0x70] sm:$0xff]
    %v3456 = vld [vmem:[#allocation7 + $0x78] sm:$0xff]
    %v3457 = vld [vmem:[#allocation7 + $0x80] sm:$0xff]
    %v3458 = vld [vmem:[#allocation7 + $0x88] sm:$0xff]
    %v3459 = vld [vmem:[#allocation7 + $0x90] sm:$0xff]
    %v3460 = vld [vmem:[#allocation7 + $0x98] sm:$0xff]
    %v3461 = vld [vmem:[#allocation7 + $0xa0] sm:$0xff]
    %v3462 = vld [vmem:[#allocation7 + $0xa8] sm:$0xff]
    %v3463 = vld [vmem:[#allocation7 + $0xb0] sm:$0xff]
    %v3464 = vld [vmem:[#allocation7 + $0xb8] sm:$0xff]
    %v3465 = vld [vmem:[#allocation7 + $0xc0] sm:$0xff]
    %v3466 = vld [vmem:[#allocation7 + $0xc8] sm:$0xff]
    %v3467 = vld [vmem:[#allocation7 + $0xd0] sm:$0xff]
    %v3468 = vld [vmem:[#allocation7 + $0xd8] sm:$0xff]
    %v3469 = vld [vmem:[#allocation7 + $0xe0] sm:$0xff]
    %v3470 = vld [vmem:[#allocation7 + $0xe8] sm:$0xff]
    %v3471 = vld [vmem:[#allocation7 + $0xf0] sm:$0xff]
    %v3472 = vld [vmem:[#allocation7 + $0xf8] sm:$0xff]
    %v3473 = vld [vmem:[#allocation7 + $0x100] sm:$0xff]
    %v3474 = vld [vmem:[#allocation7 + $0x108] sm:$0xff]
    %v3475 = vld [vmem:[#allocation7 + $0x110] sm:$0xff]
    %v3476 = vld [vmem:[#allocation7 + $0x118] sm:$0xff]
    %v3477 = vld [vmem:[#allocation7 + $0x120] sm:$0xff]
    %v3478 = vld [vmem:[#allocation7 + $0x128] sm:$0xff]
    %v3479 = vld [vmem:[#allocation7 + $0x130] sm:$0xff]
    %v3480 = vld [vmem:[#allocation7 + $0x138] sm:$0xff]
    %v3481 = vld [vmem:[#allocation7 + $0x140] sm:$0xff]
    %v3482 = vld [vmem:[#allocation7 + $0x148] sm:$0xff]
    %v3483 = vld [vmem:[#allocation7 + $0x150] sm:$0xff]
    %v3484 = vld [vmem:[#allocation7 + $0x158] sm:$0xff]
    %v3485 = vld [vmem:[#allocation7 + $0x160] sm:$0xff]
    %v3486 = vld [vmem:[#allocation7 + $0x168] sm:$0xff]
    %v3487 = vld [vmem:[#allocation7 + $0x170] sm:$0xff]
    %v3488 = vld [vmem:[#allocation7 + $0x178] sm:$0xff]
    %v3489 = vld [vmem:[#allocation7 + $0x180] sm:$0xff]
    %v3490 = vld [vmem:[#allocation7 + $0x188] sm:$0xff]
    %v3491 = vld [vmem:[#allocation7 + $0x190] sm:$0xff]
    %v3492 = vld [vmem:[#allocation7 + $0x198] sm:$0xff]
    %v3493 = vld [vmem:[#allocation7 + $0x1a0] sm:$0xff]
    %v3494 = vld [vmem:[#allocation7 + $0x1a8] sm:$0xff]
    %v3495 = vld [vmem:[#allocation7 + $0x1b0] sm:$0xff]
    %v3496 = vld [vmem:[#allocation7 + $0x1b8] sm:$0xff]
    %v3497 = vld [vmem:[#allocation7 + $0x1c0] sm:$0xff]
    %v3498 = vld [vmem:[#allocation7 + $0x1c8] sm:$0xff]
    %v3499 = vld [vmem:[#allocation7 + $0x1d0] sm:$0xff]
    %v3500 = vld [vmem:[#allocation7 + $0x1d8] sm:$0xff]
    %v3501 = vld [vmem:[#allocation7 + $0x1e0] sm:$0xff]
    %v3502 = vld [vmem:[#allocation7 + $0x1e8] sm:$0xff]
    %v3503 = vld [vmem:[#allocation7 + $0x1f0] sm:$0xff]
    %v3504 = vld [vmem:[#allocation7 + $0x1f8] sm:$0xff]
    %3505 = vmatprep.subr.mxu0 %v3502
    %3506 = vmatpush1.msra.mxu0 %v3501
    %3507 = vmatprep.subr.mxu0 %v3498
    %3508 = vmatpush1.msra.mxu0 %v3497
    %3509 = vmatprep.subr.mxu0 %v3494
    %3510 = vmatpush1.msra.mxu0 %v3493
    %3511 = vmatprep.subr.mxu0 %v3490
    %3512 = vmatpush1.msra.mxu0 %v3489
    %3513 = vmatprep.subr.mxu0 %v3486
    %3514 = vmatpush1.msra.mxu0 %v3485
    %3515 = vmatprep.subr.mxu0 %v3482
    %3516 = vmatpush1.msra.mxu0 %v3481
    %3517 = vmatprep.subr.mxu0 %v3478
    %3518 = vmatpush1.msra.mxu0 %v3477
    %3519 = vmatprep.subr.mxu0 %v3474
    %3520 = vmatpush1.msra.mxu0 %v3473
    %3521 = vmatprep.subr.mxu0 %v3470
    %3522 = vmatpush1.msra.mxu0 %v3469
    %3523 = vmatprep.subr.mxu0 %v3466
    %3524 = vmatpush1.msra.mxu0 %v3465
    %3525 = vmatprep.subr.mxu0 %v3462
    %3526 = vmatpush1.msra.mxu0 %v3461
    %3527 = vmatprep.subr.mxu0 %v3458
    %3528 = vmatpush1.msra.mxu0 %v3457
    %3529 = vmatprep.subr.mxu0 %v3454
    %3530 = vmatpush1.msra.mxu0 %v3453
    %3531 = vmatprep.subr.mxu0 %v3450
    %3532 = vmatpush1.msra.mxu0 %v3449
    %3533 = vmatprep.subr.mxu0 %v3446
    %3534 = vmatpush1.msra.mxu0 %v3445
    %3535 = vmatprep.subr.mxu0 %v3442
    %3536 = vmatpush1.msra.mxu0 %v3441
    %3537 = vmatprep.subr.mxu0 0.0
    %3538 = vmatpush2.msra.mxu0 0.0
    %3539 = vmatprep.subr.mxu0 0.0
    %3540 = vmatpush2.msra.mxu0 0.0
    %3541 = vmatprep.subr.mxu0 0.0
    %3542 = vmatpush2.msra.mxu0 0.0
    %3543 = vmatprep.subr.mxu0 0.0
    %3544 = vmatpush2.msra.mxu0 0.0
    %3545 = vmatprep.subr.mxu0 0.0
    %3546 = vmatpush2.msra.mxu0 0.0
    %3547 = vmatprep.subr.mxu0 0.0
    %3548 = vmatpush2.msra.mxu0 0.0
    %3549 = vmatprep.subr.mxu0 0.0
    %3550 = vmatpush2.msra.mxu0 0.0
    %3551 = vmatprep.subr.mxu0 0.0
    %3552 = vmatpush2.msra.mxu0 0.0
    %3553 = vmatprep.subr.mxu0 0.0
    %3554 = vmatpush2.msra.mxu0 0.0
    %3555 = vmatprep.subr.mxu0 0.0
    %3556 = vmatpush2.msra.mxu0 0.0
    %3557 = vmatprep.subr.mxu0 0.0
    %3558 = vmatpush2.msra.mxu0 0.0
    %3559 = vmatprep.subr.mxu0 0.0
    %3560 = vmatpush2.msra.mxu0 0.0
    %3561 = vmatprep.subr.mxu0 0.0
    %3562 = vmatpush2.msra.mxu0 0.0
    %3563 = vmatprep.subr.mxu0 0.0
    %3564 = vmatpush2.msra.mxu0 0.0
    %3565 = vmatprep.subr.mxu0 0.0
    %3566 = vmatpush2.msra.mxu0 0.0
    %3567 = vmatprep.subr.mxu0 0.0
    %3568 = vmatpush2.msra.mxu0 0.0
    %3569 = vmatprep.mubr.f32.mxu0 0.0
    %3570 = vmatmul.mubr.f32.gmra.mxu0 %v3435
    %v3571 = vpop.f32.mrf.mxu0
    %v3572 = vadd.f32 0.0, %v3571
    %v3573 = vpop.f32.mrf.mxu0
    %v3574 = vadd.f32 0.0, %v3573
    %3575 = vdwg.mxu0
    %3576 = vmatprep.subr.mxu0 %v3504
    %3577 = vmatpush1.msra.mxu0 %v3503
    %3578 = vmatprep.subr.mxu0 %v3500
    %3579 = vmatpush1.msra.mxu0 %v3499
    %3580 = vmatprep.subr.mxu0 %v3496
    %3581 = vmatpush1.msra.mxu0 %v3495
    %3582 = vmatprep.subr.mxu0 %v3492
    %3583 = vmatpush1.msra.mxu0 %v3491
    %3584 = vmatprep.subr.mxu0 %v3488
    %3585 = vmatpush1.msra.mxu0 %v3487
    %3586 = vmatprep.subr.mxu0 %v3484
    %3587 = vmatpush1.msra.mxu0 %v3483
    %3588 = vmatprep.subr.mxu0 %v3480
    %3589 = vmatpush1.msra.mxu0 %v3479
    %3590 = vmatprep.subr.mxu0 %v3476
    %3591 = vmatpush1.msra.mxu0 %v3475
    %3592 = vmatprep.subr.mxu0 %v3472
    %3593 = vmatpush1.msra.mxu0 %v3471
    %3594 = vmatprep.subr.mxu0 %v3468
    %3595 = vmatpush1.msra.mxu0 %v3467
    %3596 = vmatprep.subr.mxu0 %v3464
    %3597 = vmatpush1.msra.mxu0 %v3463
    %3598 = vmatprep.subr.mxu0 %v3460
    %3599 = vmatpush1.msra.mxu0 %v3459
    %3600 = vmatprep.subr.mxu0 %v3456
    %3601 = vmatpush1.msra.mxu0 %v3455
    %3602 = vmatprep.subr.mxu0 %v3452
    %3603 = vmatpush1.msra.mxu0 %v3451
    %3604 = vmatprep.subr.mxu0 %v3448
    %3605 = vmatpush1.msra.mxu0 %v3447
    %3606 = vmatprep.subr.mxu0 %v3444
    %3607 = vmatpush1.msra.mxu0 %v3443
    %3608 = vmatprep.subr.mxu0 0.0
    %3609 = vmatpush2.msra.mxu0 0.0
    %3610 = vmatprep.subr.mxu0 0.0
    %3611 = vmatpush2.msra.mxu0 0.0
    %3612 = vmatprep.subr.mxu0 0.0
    %3613 = vmatpush2.msra.mxu0 0.0
    %3614 = vmatprep.subr.mxu0 0.0
    %3615 = vmatpush2.msra.mxu0 0.0
    %3616 = vmatprep.subr.mxu0 0.0
    %3617 = vmatpush2.msra.mxu0 0.0
    %3618 = vmatprep.subr.mxu0 0.0
    %3619 = vmatpush2.msra.mxu0 0.0
    %3620 = vmatprep.subr.mxu0 0.0
    %3621 = vmatpush2.msra.mxu0 0.0
    %3622 = vmatprep.subr.mxu0 0.0
    %3623 = vmatpush2.msra.mxu0 0.0
    %3624 = vmatprep.subr.mxu0 0.0
    %3625 = vmatpush2.msra.mxu0 0.0
    %3626 = vmatprep.subr.mxu0 0.0
    %3627 = vmatpush2.msra.mxu0 0.0
    %3628 = vmatprep.subr.mxu0 0.0
    %3629 = vmatpush2.msra.mxu0 0.0
    %3630 = vmatprep.subr.mxu0 0.0
    %3631 = vmatpush2.msra.mxu0 0.0
    %3632 = vmatprep.subr.mxu0 0.0
    %3633 = vmatpush2.msra.mxu0 0.0
    %3634 = vmatprep.subr.mxu0 0.0
    %3635 = vmatpush2.msra.mxu0 0.0
    %3636 = vmatprep.subr.mxu0 0.0
    %3637 = vmatpush2.msra.mxu0 0.0
    %3638 = vmatprep.subr.mxu0 0.0
    %3639 = vmatpush2.msra.mxu0 0.0
    %3640 = vmatprep.mubr.f32.mxu0 0.0
    %3641 = vmatmul.mubr.f32.gmra.mxu0 %v3435
    %v3642 = vpop.f32.mrf.mxu0
    %v3643 = vadd.f32 0.0, %v3642
    %v3644 = vpop.f32.mrf.mxu0
    %v3645 = vadd.f32 0.0, %v3644
    %3646 = vdwg.mxu0
    %v3647 = vadd.f32 %v3437, %v3572
    %v3648 = vadd.f32 %v3438, %v3574
    %v3649 = vadd.f32 %v3439, %v3643
    %v3650 = vadd.f32 %v3440, %v3645
    %v3651 = vxor.u32 %v3647, 2147483648
    %v3652 = vxor.u32 %v3648, 2147483648
    %v3653 = vxor.u32 %v3649, 2147483648
    %v3654 = vmul.f32 %v3651, 1.442695
    %v3655 = vpow.pop %v3654
    %v3656 = vmul.f32 %v3652, 1.442695
    %v3657 = vpow.pop %v3656
    %v3658 = vmul.f32 %v3653, 1.442695
    %v3659 = vpow.pop %v3658
    %v3660 = vadd.f32 %v3655, 1.0
    %v3661 = vadd.f32 %v3657, 1.0
    %v3662 = vadd.f32 %v3659, 1.0
    %v3663 = vrcp.pop %v3660
    %v3664 = vmul.f32 1.0, %v3663
    %v3665 = vrcp.pop %v3661
    %v3666 = vmul.f32 1.0, %v3665
    %v3667 = vrcp.pop %v3662
    %v3668 = vmul.f32 1.0, %v3667
    %v3669 = vtanh.pop %v3650
    %v3670 = vmul.f32 %v3666, %v3433
    %v3671 = vmul.f32 %v3664, %v3669
    %v3672 = vadd.f32 %v3670, %v3671
    %v3673 = vtanh.pop %v3672
    %v3674 = vmul.f32 %v3668, %v3673
    %3675 = vst [vmem:[#allocation3 + $0x60] sm:$0xff] %v3674
    %v3676 = vld [vmem:[#allocation2 + $0x1a0] sm:$0xff]
    %v3677 = vld [vmem:[#allocation2 + $0x1a8] sm:$0xff]
    %v3678 = vld [vmem:[#allocation2 + $0x1b0] sm:$0xff]
    %v3679 = vld [vmem:[#allocation2 + $0x1b8] sm:$0xff]
    %v3680 = vld [vmem:[#allocation7] sm:$0xff]
    %v3681 = vld [vmem:[#allocation7 + $0x8] sm:$0xff]
    %v3682 = vld [vmem:[#allocation7 + $0x10] sm:$0xff]
    %v3683 = vld [vmem:[#allocation7 + $0x18] sm:$0xff]
    %v3684 = vld [vmem:[#allocation7 + $0x20] sm:$0xff]
    %v3685 = vld [vmem:[#allocation7 + $0x28] sm:$0xff]
    %v3686 = vld [vmem:[#allocation7 + $0x30] sm:$0xff]
    %v3687 = vld [vmem:[#allocation7 + $0x38] sm:$0xff]
    %v3688 = vld [vmem:[#allocation7 + $0x40] sm:$0xff]
    %v3689 = vld [vmem:[#allocation7 + $0x48] sm:$0xff]
    %v3690 = vld [vmem:[#allocation7 + $0x50] sm:$0xff]
    %v3691 = vld [vmem:[#allocation7 + $0x58] sm:$0xff]
    %v3692 = vld [vmem:[#allocation7 + $0x60] sm:$0xff]
    %v3693 = vld [vmem:[#allocation7 + $0x68] sm:$0xff]
    %v3694 = vld [vmem:[#allocation7 + $0x70] sm:$0xff]
    %v3695 = vld [vmem:[#allocation7 + $0x78] sm:$0xff]
    %v3696 = vld [vmem:[#allocation7 + $0x80] sm:$0xff]
    %v3697 = vld [vmem:[#allocation7 + $0x88] sm:$0xff]
    %v3698 = vld [vmem:[#allocation7 + $0x90] sm:$0xff]
    %v3699 = vld [vmem:[#allocation7 + $0x98] sm:$0xff]
    %v3700 = vld [vmem:[#allocation7 + $0xa0] sm:$0xff]
    %v3701 = vld [vmem:[#allocation7 + $0xa8] sm:$0xff]
    %v3702 = vld [vmem:[#allocation7 + $0xb0] sm:$0xff]
    %v3703 = vld [vmem:[#allocation7 + $0xb8] sm:$0xff]
    %v3704 = vld [vmem:[#allocation7 + $0xc0] sm:$0xff]
    %v3705 = vld [vmem:[#allocation7 + $0xc8] sm:$0xff]
    %v3706 = vld [vmem:[#allocation7 + $0xd0] sm:$0xff]
    %v3707 = vld [vmem:[#allocation7 + $0xd8] sm:$0xff]
    %v3708 = vld [vmem:[#allocation7 + $0xe0] sm:$0xff]
    %v3709 = vld [vmem:[#allocation7 + $0xe8] sm:$0xff]
    %v3710 = vld [vmem:[#allocation7 + $0xf0] sm:$0xff]
    %v3711 = vld [vmem:[#allocation7 + $0xf8] sm:$0xff]
    %v3712 = vld [vmem:[#allocation7 + $0x100] sm:$0xff]
    %v3713 = vld [vmem:[#allocation7 + $0x108] sm:$0xff]
    %v3714 = vld [vmem:[#allocation7 + $0x110] sm:$0xff]
    %v3715 = vld [vmem:[#allocation7 + $0x118] sm:$0xff]
    %v3716 = vld [vmem:[#allocation7 + $0x120] sm:$0xff]
    %v3717 = vld [vmem:[#allocation7 + $0x128] sm:$0xff]
    %v3718 = vld [vmem:[#allocation7 + $0x130] sm:$0xff]
    %v3719 = vld [vmem:[#allocation7 + $0x138] sm:$0xff]
    %v3720 = vld [vmem:[#allocation7 + $0x140] sm:$0xff]
    %v3721 = vld [vmem:[#allocation7 + $0x148] sm:$0xff]
    %v3722 = vld [vmem:[#allocation7 + $0x150] sm:$0xff]
    %v3723 = vld [vmem:[#allocation7 + $0x158] sm:$0xff]
    %v3724 = vld [vmem:[#allocation7 + $0x160] sm:$0xff]
    %v3725 = vld [vmem:[#allocation7 + $0x168] sm:$0xff]
    %v3726 = vld [vmem:[#allocation7 + $0x170] sm:$0xff]
    %v3727 = vld [vmem:[#allocation7 + $0x178] sm:$0xff]
    %v3728 = vld [vmem:[#allocation7 + $0x180] sm:$0xff]
    %v3729 = vld [vmem:[#allocation7 + $0x188] sm:$0xff]
    %v3730 = vld [vmem:[#allocation7 + $0x190] sm:$0xff]
    %v3731 = vld [vmem:[#allocation7 + $0x198] sm:$0xff]
    %v3732 = vld [vmem:[#allocation7 + $0x1a0] sm:$0xff]
    %v3733 = vld [vmem:[#allocation7 + $0x1a8] sm:$0xff]
    %v3734 = vld [vmem:[#allocation7 + $0x1b0] sm:$0xff]
    %v3735 = vld [vmem:[#allocation7 + $0x1b8] sm:$0xff]
    %v3736 = vld [vmem:[#allocation7 + $0x1c0] sm:$0xff]
    %v3737 = vld [vmem:[#allocation7 + $0x1c8] sm:$0xff]
    %v3738 = vld [vmem:[#allocation7 + $0x1d0] sm:$0xff]
    %v3739 = vld [vmem:[#allocation7 + $0x1d8] sm:$0xff]
    %v3740 = vld [vmem:[#allocation7 + $0x1e0] sm:$0xff]
    %v3741 = vld [vmem:[#allocation7 + $0x1e8] sm:$0xff]
    %v3742 = vld [vmem:[#allocation7 + $0x1f0] sm:$0xff]
    %v3743 = vld [vmem:[#allocation7 + $0x1f8] sm:$0xff]
    %3744 = vmatprep.subr.mxu0 %v3741
    %3745 = vmatpush1.msra.mxu0 %v3740
    %3746 = vmatprep.subr.mxu0 %v3737
    %3747 = vmatpush1.msra.mxu0 %v3736
    %3748 = vmatprep.subr.mxu0 %v3733
    %3749 = vmatpush1.msra.mxu0 %v3732
    %3750 = vmatprep.subr.mxu0 %v3729
    %3751 = vmatpush1.msra.mxu0 %v3728
    %3752 = vmatprep.subr.mxu0 %v3725
    %3753 = vmatpush1.msra.mxu0 %v3724
    %3754 = vmatprep.subr.mxu0 %v3721
    %3755 = vmatpush1.msra.mxu0 %v3720
    %3756 = vmatprep.subr.mxu0 %v3717
    %3757 = vmatpush1.msra.mxu0 %v3716
    %3758 = vmatprep.subr.mxu0 %v3713
    %3759 = vmatpush1.msra.mxu0 %v3712
    %3760 = vmatprep.subr.mxu0 %v3709
    %3761 = vmatpush1.msra.mxu0 %v3708
    %3762 = vmatprep.subr.mxu0 %v3705
    %3763 = vmatpush1.msra.mxu0 %v3704
    %3764 = vmatprep.subr.mxu0 %v3701
    %3765 = vmatpush1.msra.mxu0 %v3700
    %3766 = vmatprep.subr.mxu0 %v3697
    %3767 = vmatpush1.msra.mxu0 %v3696
    %3768 = vmatprep.subr.mxu0 %v3693
    %3769 = vmatpush1.msra.mxu0 %v3692
    %3770 = vmatprep.subr.mxu0 %v3689
    %3771 = vmatpush1.msra.mxu0 %v3688
    %3772 = vmatprep.subr.mxu0 %v3685
    %3773 = vmatpush1.msra.mxu0 %v3684
    %3774 = vmatprep.subr.mxu0 %v3681
    %3775 = vmatpush1.msra.mxu0 %v3680
    %3776 = vmatprep.subr.mxu0 0.0
    %3777 = vmatpush2.msra.mxu0 0.0
    %3778 = vmatprep.subr.mxu0 0.0
    %3779 = vmatpush2.msra.mxu0 0.0
    %3780 = vmatprep.subr.mxu0 0.0
    %3781 = vmatpush2.msra.mxu0 0.0
    %3782 = vmatprep.subr.mxu0 0.0
    %3783 = vmatpush2.msra.mxu0 0.0
    %3784 = vmatprep.subr.mxu0 0.0
    %3785 = vmatpush2.msra.mxu0 0.0
    %3786 = vmatprep.subr.mxu0 0.0
    %3787 = vmatpush2.msra.mxu0 0.0
    %3788 = vmatprep.subr.mxu0 0.0
    %3789 = vmatpush2.msra.mxu0 0.0
    %3790 = vmatprep.subr.mxu0 0.0
    %3791 = vmatpush2.msra.mxu0 0.0
    %3792 = vmatprep.subr.mxu0 0.0
    %3793 = vmatpush2.msra.mxu0 0.0
    %3794 = vmatprep.subr.mxu0 0.0
    %3795 = vmatpush2.msra.mxu0 0.0
    %3796 = vmatprep.subr.mxu0 0.0
    %3797 = vmatpush2.msra.mxu0 0.0
    %3798 = vmatprep.subr.mxu0 0.0
    %3799 = vmatpush2.msra.mxu0 0.0
    %3800 = vmatprep.subr.mxu0 0.0
    %3801 = vmatpush2.msra.mxu0 0.0
    %3802 = vmatprep.subr.mxu0 0.0
    %3803 = vmatpush2.msra.mxu0 0.0
    %3804 = vmatprep.subr.mxu0 0.0
    %3805 = vmatpush2.msra.mxu0 0.0
    %3806 = vmatprep.subr.mxu0 0.0
    %3807 = vmatpush2.msra.mxu0 0.0
    %3808 = vmatprep.mubr.f32.mxu0 0.0
    %3809 = vmatmul.mubr.f32.gmra.mxu0 %v3674
    %v3810 = vpop.f32.mrf.mxu0
    %v3811 = vadd.f32 0.0, %v3810
    %v3812 = vpop.f32.mrf.mxu0
    %v3813 = vadd.f32 0.0, %v3812
    %3814 = vdwg.mxu0
    %3815 = vmatprep.subr.mxu0 %v3743
    %3816 = vmatpush1.msra.mxu0 %v3742
    %3817 = vmatprep.subr.mxu0 %v3739
    %3818 = vmatpush1.msra.mxu0 %v3738
    %3819 = vmatprep.subr.mxu0 %v3735
    %3820 = vmatpush1.msra.mxu0 %v3734
    %3821 = vmatprep.subr.mxu0 %v3731
    %3822 = vmatpush1.msra.mxu0 %v3730
    %3823 = vmatprep.subr.mxu0 %v3727
    %3824 = vmatpush1.msra.mxu0 %v3726
    %3825 = vmatprep.subr.mxu0 %v3723
    %3826 = vmatpush1.msra.mxu0 %v3722
    %3827 = vmatprep.subr.mxu0 %v3719
    %3828 = vmatpush1.msra.mxu0 %v3718
    %3829 = vmatprep.subr.mxu0 %v3715
    %3830 = vmatpush1.msra.mxu0 %v3714
    %3831 = vmatprep.subr.mxu0 %v3711
    %3832 = vmatpush1.msra.mxu0 %v3710
    %3833 = vmatprep.subr.mxu0 %v3707
    %3834 = vmatpush1.msra.mxu0 %v3706
    %3835 = vmatprep.subr.mxu0 %v3703
    %3836 = vmatpush1.msra.mxu0 %v3702
    %3837 = vmatprep.subr.mxu0 %v3699
    %3838 = vmatpush1.msra.mxu0 %v3698
    %3839 = vmatprep.subr.mxu0 %v3695
    %3840 = vmatpush1.msra.mxu0 %v3694
    %3841 = vmatprep.subr.mxu0 %v3691
    %3842 = vmatpush1.msra.mxu0 %v3690
    %3843 = vmatprep.subr.mxu0 %v3687
    %3844 = vmatpush1.msra.mxu0 %v3686
    %3845 = vmatprep.subr.mxu0 %v3683
    %3846 = vmatpush1.msra.mxu0 %v3682
    %3847 = vmatprep.subr.mxu0 0.0
    %3848 = vmatpush2.msra.mxu0 0.0
    %3849 = vmatprep.subr.mxu0 0.0
    %3850 = vmatpush2.msra.mxu0 0.0
    %3851 = vmatprep.subr.mxu0 0.0
    %3852 = vmatpush2.msra.mxu0 0.0
    %3853 = vmatprep.subr.mxu0 0.0
    %3854 = vmatpush2.msra.mxu0 0.0
    %3855 = vmatprep.subr.mxu0 0.0
    %3856 = vmatpush2.msra.mxu0 0.0
    %3857 = vmatprep.subr.mxu0 0.0
    %3858 = vmatpush2.msra.mxu0 0.0
    %3859 = vmatprep.subr.mxu0 0.0
    %3860 = vmatpush2.msra.mxu0 0.0
    %3861 = vmatprep.subr.mxu0 0.0
    %3862 = vmatpush2.msra.mxu0 0.0
    %3863 = vmatprep.subr.mxu0 0.0
    %3864 = vmatpush2.msra.mxu0 0.0
    %3865 = vmatprep.subr.mxu0 0.0
    %3866 = vmatpush2.msra.mxu0 0.0
    %3867 = vmatprep.subr.mxu0 0.0
    %3868 = vmatpush2.msra.mxu0 0.0
    %3869 = vmatprep.subr.mxu0 0.0
    %3870 = vmatpush2.msra.mxu0 0.0
    %3871 = vmatprep.subr.mxu0 0.0
    %3872 = vmatpush2.msra.mxu0 0.0
    %3873 = vmatprep.subr.mxu0 0.0
    %3874 = vmatpush2.msra.mxu0 0.0
    %3875 = vmatprep.subr.mxu0 0.0
    %3876 = vmatpush2.msra.mxu0 0.0
    %3877 = vmatprep.subr.mxu0 0.0
    %3878 = vmatpush2.msra.mxu0 0.0
    %3879 = vmatprep.mubr.f32.mxu0 0.0
    %3880 = vmatmul.mubr.f32.gmra.mxu0 %v3674
    %v3881 = vpop.f32.mrf.mxu0
    %v3882 = vadd.f32 0.0, %v3881
    %v3883 = vpop.f32.mrf.mxu0
    %v3884 = vadd.f32 0.0, %v3883
    %3885 = vdwg.mxu0
    %v3886 = vadd.f32 %v3676, %v3811
    %v3887 = vadd.f32 %v3677, %v3813
    %v3888 = vadd.f32 %v3678, %v3882
    %v3889 = vadd.f32 %v3679, %v3884
    %v3890 = vxor.u32 %v3886, 2147483648
    %v3891 = vxor.u32 %v3887, 2147483648
    %v3892 = vxor.u32 %v3888, 2147483648
    %v3893 = vmul.f32 %v3890, 1.442695
    %v3894 = vpow.pop %v3893
    %v3895 = vmul.f32 %v3891, 1.442695
    %v3896 = vpow.pop %v3895
    %v3897 = vmul.f32 %v3892, 1.442695
    %v3898 = vpow.pop %v3897
    %v3899 = vadd.f32 %v3894, 1.0
    %v3900 = vadd.f32 %v3896, 1.0
    %v3901 = vadd.f32 %v3898, 1.0
    %v3902 = vrcp.pop %v3899
    %v3903 = vmul.f32 1.0, %v3902
    %v3904 = vrcp.pop %v3900
    %v3905 = vmul.f32 1.0, %v3904
    %v3906 = vrcp.pop %v3901
    %v3907 = vmul.f32 1.0, %v3906
    %v3908 = vtanh.pop %v3889
    %v3909 = vmul.f32 %v3905, %v3672
    %v3910 = vmul.f32 %v3903, %v3908
    %v3911 = vadd.f32 %v3909, %v3910
    %v3912 = vtanh.pop %v3911
    %v3913 = vmul.f32 %v3907, %v3912
    %3914 = vst [vmem:[#allocation3 + $0x68] sm:$0xff] %v3913
    %v3915 = vld [vmem:[#allocation2 + $0x1c0] sm:$0xff]
    %v3916 = vld [vmem:[#allocation2 + $0x1c8] sm:$0xff]
    %v3917 = vld [vmem:[#allocation2 + $0x1d0] sm:$0xff]
    %v3918 = vld [vmem:[#allocation2 + $0x1d8] sm:$0xff]
    %v3919 = vld [vmem:[#allocation7] sm:$0xff]
    %v3920 = vld [vmem:[#allocation7 + $0x8] sm:$0xff]
    %v3921 = vld [vmem:[#allocation7 + $0x10] sm:$0xff]
    %v3922 = vld [vmem:[#allocation7 + $0x18] sm:$0xff]
    %v3923 = vld [vmem:[#allocation7 + $0x20] sm:$0xff]
    %v3924 = vld [vmem:[#allocation7 + $0x28] sm:$0xff]
    %v3925 = vld [vmem:[#allocation7 + $0x30] sm:$0xff]
    %v3926 = vld [vmem:[#allocation7 + $0x38] sm:$0xff]
    %v3927 = vld [vmem:[#allocation7 + $0x40] sm:$0xff]
    %v3928 = vld [vmem:[#allocation7 + $0x48] sm:$0xff]
    %v3929 = vld [vmem:[#allocation7 + $0x50] sm:$0xff]
    %v3930 = vld [vmem:[#allocation7 + $0x58] sm:$0xff]
    %v3931 = vld [vmem:[#allocation7 + $0x60] sm:$0xff]
    %v3932 = vld [vmem:[#allocation7 + $0x68] sm:$0xff]
    %v3933 = vld [vmem:[#allocation7 + $0x70] sm:$0xff]
    %v3934 = vld [vmem:[#allocation7 + $0x78] sm:$0xff]
    %v3935 = vld [vmem:[#allocation7 + $0x80] sm:$0xff]
    %v3936 = vld [vmem:[#allocation7 + $0x88] sm:$0xff]
    %v3937 = vld [vmem:[#allocation7 + $0x90] sm:$0xff]
    %v3938 = vld [vmem:[#allocation7 + $0x98] sm:$0xff]
    %v3939 = vld [vmem:[#allocation7 + $0xa0] sm:$0xff]
    %v3940 = vld [vmem:[#allocation7 + $0xa8] sm:$0xff]
    %v3941 = vld [vmem:[#allocation7 + $0xb0] sm:$0xff]
    %v3942 = vld [vmem:[#allocation7 + $0xb8] sm:$0xff]
    %v3943 = vld [vmem:[#allocation7 + $0xc0] sm:$0xff]
    %v3944 = vld [vmem:[#allocation7 + $0xc8] sm:$0xff]
    %v3945 = vld [vmem:[#allocation7 + $0xd0] sm:$0xff]
    %v3946 = vld [vmem:[#allocation7 + $0xd8] sm:$0xff]
    %v3947 = vld [vmem:[#allocation7 + $0xe0] sm:$0xff]
    %v3948 = vld [vmem:[#allocation7 + $0xe8] sm:$0xff]
    %v3949 = vld [vmem:[#allocation7 + $0xf0] sm:$0xff]
    %v3950 = vld [vmem:[#allocation7 + $0xf8] sm:$0xff]
    %v3951 = vld [vmem:[#allocation7 + $0x100] sm:$0xff]
    %v3952 = vld [vmem:[#allocation7 + $0x108] sm:$0xff]
    %v3953 = vld [vmem:[#allocation7 + $0x110] sm:$0xff]
    %v3954 = vld [vmem:[#allocation7 + $0x118] sm:$0xff]
    %v3955 = vld [vmem:[#allocation7 + $0x120] sm:$0xff]
    %v3956 = vld [vmem:[#allocation7 + $0x128] sm:$0xff]
    %v3957 = vld [vmem:[#allocation7 + $0x130] sm:$0xff]
    %v3958 = vld [vmem:[#allocation7 + $0x138] sm:$0xff]
    %v3959 = vld [vmem:[#allocation7 + $0x140] sm:$0xff]
    %v3960 = vld [vmem:[#allocation7 + $0x148] sm:$0xff]
    %v3961 = vld [vmem:[#allocation7 + $0x150] sm:$0xff]
    %v3962 = vld [vmem:[#allocation7 + $0x158] sm:$0xff]
    %v3963 = vld [vmem:[#allocation7 + $0x160] sm:$0xff]
    %v3964 = vld [vmem:[#allocation7 + $0x168] sm:$0xff]
    %v3965 = vld [vmem:[#allocation7 + $0x170] sm:$0xff]
    %v3966 = vld [vmem:[#allocation7 + $0x178] sm:$0xff]
    %v3967 = vld [vmem:[#allocation7 + $0x180] sm:$0xff]
    %v3968 = vld [vmem:[#allocation7 + $0x188] sm:$0xff]
    %v3969 = vld [vmem:[#allocation7 + $0x190] sm:$0xff]
    %v3970 = vld [vmem:[#allocation7 + $0x198] sm:$0xff]
    %v3971 = vld [vmem:[#allocation7 + $0x1a0] sm:$0xff]
    %v3972 = vld [vmem:[#allocation7 + $0x1a8] sm:$0xff]
    %v3973 = vld [vmem:[#allocation7 + $0x1b0] sm:$0xff]
    %v3974 = vld [vmem:[#allocation7 + $0x1b8] sm:$0xff]
    %v3975 = vld [vmem:[#allocation7 + $0x1c0] sm:$0xff]
    %v3976 = vld [vmem:[#allocation7 + $0x1c8] sm:$0xff]
    %v3977 = vld [vmem:[#allocation7 + $0x1d0] sm:$0xff]
    %v3978 = vld [vmem:[#allocation7 + $0x1d8] sm:$0xff]
    %v3979 = vld [vmem:[#allocation7 + $0x1e0] sm:$0xff]
    %v3980 = vld [vmem:[#allocation7 + $0x1e8] sm:$0xff]
    %v3981 = vld [vmem:[#allocation7 + $0x1f0] sm:$0xff]
    %v3982 = vld [vmem:[#allocation7 + $0x1f8] sm:$0xff]
    %3983 = vmatprep.subr.mxu0 %v3980
    %3984 = vmatpush1.msra.mxu0 %v3979
    %3985 = vmatprep.subr.mxu0 %v3976
    %3986 = vmatpush1.msra.mxu0 %v3975
    %3987 = vmatprep.subr.mxu0 %v3972
    %3988 = vmatpush1.msra.mxu0 %v3971
    %3989 = vmatprep.subr.mxu0 %v3968
    %3990 = vmatpush1.msra.mxu0 %v3967
    %3991 = vmatprep.subr.mxu0 %v3964
    %3992 = vmatpush1.msra.mxu0 %v3963
    %3993 = vmatprep.subr.mxu0 %v3960
    %3994 = vmatpush1.msra.mxu0 %v3959
    %3995 = vmatprep.subr.mxu0 %v3956
    %3996 = vmatpush1.msra.mxu0 %v3955
    %3997 = vmatprep.subr.mxu0 %v3952
    %3998 = vmatpush1.msra.mxu0 %v3951
    %3999 = vmatprep.subr.mxu0 %v3948
    %4000 = vmatpush1.msra.mxu0 %v3947
    %4001 = vmatprep.subr.mxu0 %v3944
    %4002 = vmatpush1.msra.mxu0 %v3943
    %4003 = vmatprep.subr.mxu0 %v3940
    %4004 = vmatpush1.msra.mxu0 %v3939
    %4005 = vmatprep.subr.mxu0 %v3936
    %4006 = vmatpush1.msra.mxu0 %v3935
    %4007 = vmatprep.subr.mxu0 %v3932
    %4008 = vmatpush1.msra.mxu0 %v3931
    %4009 = vmatprep.subr.mxu0 %v3928
    %4010 = vmatpush1.msra.mxu0 %v3927
    %4011 = vmatprep.subr.mxu0 %v3924
    %4012 = vmatpush1.msra.mxu0 %v3923
    %4013 = vmatprep.subr.mxu0 %v3920
    %4014 = vmatpush1.msra.mxu0 %v3919
    %4015 = vmatprep.subr.mxu0 0.0
    %4016 = vmatpush2.msra.mxu0 0.0
    %4017 = vmatprep.subr.mxu0 0.0
    %4018 = vmatpush2.msra.mxu0 0.0
    %4019 = vmatprep.subr.mxu0 0.0
    %4020 = vmatpush2.msra.mxu0 0.0
    %4021 = vmatprep.subr.mxu0 0.0
    %4022 = vmatpush2.msra.mxu0 0.0
    %4023 = vmatprep.subr.mxu0 0.0
    %4024 = vmatpush2.msra.mxu0 0.0
    %4025 = vmatprep.subr.mxu0 0.0
    %4026 = vmatpush2.msra.mxu0 0.0
    %4027 = vmatprep.subr.mxu0 0.0
    %4028 = vmatpush2.msra.mxu0 0.0
    %4029 = vmatprep.subr.mxu0 0.0
    %4030 = vmatpush2.msra.mxu0 0.0
    %4031 = vmatprep.subr.mxu0 0.0
    %4032 = vmatpush2.msra.mxu0 0.0
    %4033 = vmatprep.subr.mxu0 0.0
    %4034 = vmatpush2.msra.mxu0 0.0
    %4035 = vmatprep.subr.mxu0 0.0
    %4036 = vmatpush2.msra.mxu0 0.0
    %4037 = vmatprep.subr.mxu0 0.0
    %4038 = vmatpush2.msra.mxu0 0.0
    %4039 = vmatprep.subr.mxu0 0.0
    %4040 = vmatpush2.msra.mxu0 0.0
    %4041 = vmatprep.subr.mxu0 0.0
    %4042 = vmatpush2.msra.mxu0 0.0
    %4043 = vmatprep.subr.mxu0 0.0
    %4044 = vmatpush2.msra.mxu0 0.0
    %4045 = vmatprep.subr.mxu0 0.0
    %4046 = vmatpush2.msra.mxu0 0.0
    %4047 = vmatprep.mubr.f32.mxu0 0.0
    %4048 = vmatmul.mubr.f32.gmra.mxu0 %v3913
    %v4049 = vpop.f32.mrf.mxu0
    %v4050 = vadd.f32 0.0, %v4049
    %v4051 = vpop.f32.mrf.mxu0
    %v4052 = vadd.f32 0.0, %v4051
    %4053 = vdwg.mxu0
    %4054 = vmatprep.subr.mxu0 %v3982
    %4055 = vmatpush1.msra.mxu0 %v3981
    %4056 = vmatprep.subr.mxu0 %v3978
    %4057 = vmatpush1.msra.mxu0 %v3977
    %4058 = vmatprep.subr.mxu0 %v3974
    %4059 = vmatpush1.msra.mxu0 %v3973
    %4060 = vmatprep.subr.mxu0 %v3970
    %4061 = vmatpush1.msra.mxu0 %v3969
    %4062 = vmatprep.subr.mxu0 %v3966
    %4063 = vmatpush1.msra.mxu0 %v3965
    %4064 = vmatprep.subr.mxu0 %v3962
    %4065 = vmatpush1.msra.mxu0 %v3961
    %4066 = vmatprep.subr.mxu0 %v3958
    %4067 = vmatpush1.msra.mxu0 %v3957
    %4068 = vmatprep.subr.mxu0 %v3954
    %4069 = vmatpush1.msra.mxu0 %v3953
    %4070 = vmatprep.subr.mxu0 %v3950
    %4071 = vmatpush1.msra.mxu0 %v3949
    %4072 = vmatprep.subr.mxu0 %v3946
    %4073 = vmatpush1.msra.mxu0 %v3945
    %4074 = vmatprep.subr.mxu0 %v3942
    %4075 = vmatpush1.msra.mxu0 %v3941
    %4076 = vmatprep.subr.mxu0 %v3938
    %4077 = vmatpush1.msra.mxu0 %v3937
    %4078 = vmatprep.subr.mxu0 %v3934
    %4079 = vmatpush1.msra.mxu0 %v3933
    %4080 = vmatprep.subr.mxu0 %v3930
    %4081 = vmatpush1.msra.mxu0 %v3929
    %4082 = vmatprep.subr.mxu0 %v3926
    %4083 = vmatpush1.msra.mxu0 %v3925
    %4084 = vmatprep.subr.mxu0 %v3922
    %4085 = vmatpush1.msra.mxu0 %v3921
    %4086 = vmatprep.subr.mxu0 0.0
    %4087 = vmatpush2.msra.mxu0 0.0
    %4088 = vmatprep.subr.mxu0 0.0
    %4089 = vmatpush2.msra.mxu0 0.0
    %4090 = vmatprep.subr.mxu0 0.0
    %4091 = vmatpush2.msra.mxu0 0.0
    %4092 = vmatprep.subr.mxu0 0.0
    %4093 = vmatpush2.msra.mxu0 0.0
    %4094 = vmatprep.subr.mxu0 0.0
    %4095 = vmatpush2.msra.mxu0 0.0
    %4096 = vmatprep.subr.mxu0 0.0
    %4097 = vmatpush2.msra.mxu0 0.0
    %4098 = vmatprep.subr.mxu0 0.0
    %4099 = vmatpush2.msra.mxu0 0.0
    %4100 = vmatprep.subr.mxu0 0.0
    %4101 = vmatpush2.msra.mxu0 0.0
    %4102 = vmatprep.subr.mxu0 0.0
    %4103 = vmatpush2.msra.mxu0 0.0
    %4104 = vmatprep.subr.mxu0 0.0
    %4105 = vmatpush2.msra.mxu0 0.0
    %4106 = vmatprep.subr.mxu0 0.0
    %4107 = vmatpush2.msra.mxu0 0.0
    %4108 = vmatprep.subr.mxu0 0.0
    %4109 = vmatpush2.msra.mxu0 0.0
    %4110 = vmatprep.subr.mxu0 0.0
    %4111 = vmatpush2.msra.mxu0 0.0
    %4112 = vmatprep.subr.mxu0 0.0
    %4113 = vmatpush2.msra.mxu0 0.0
    %4114 = vmatprep.subr.mxu0 0.0
    %4115 = vmatpush2.msra.mxu0 0.0
    %4116 = vmatprep.subr.mxu0 0.0
    %4117 = vmatpush2.msra.mxu0 0.0
    %4118 = vmatprep.mubr.f32.mxu0 0.0
    %4119 = vmatmul.mubr.f32.gmra.mxu0 %v3913
    %v4120 = vpop.f32.mrf.mxu0
    %v4121 = vadd.f32 0.0, %v4120
    %v4122 = vpop.f32.mrf.mxu0
    %v4123 = vadd.f32 0.0, %v4122
    %4124 = vdwg.mxu0
    %v4125 = vadd.f32 %v3915, %v4050
    %v4126 = vadd.f32 %v3916, %v4052
    %v4127 = vadd.f32 %v3917, %v4121
    %v4128 = vadd.f32 %v3918, %v4123
    %v4129 = vxor.u32 %v4125, 2147483648
    %v4130 = vxor.u32 %v4126, 2147483648
    %v4131 = vxor.u32 %v4127, 2147483648
    %v4132 = vmul.f32 %v4129, 1.442695
    %v4133 = vpow.pop %v4132
    %v4134 = vmul.f32 %v4130, 1.442695
    %v4135 = vpow.pop %v4134
    %v4136 = vmul.f32 %v4131, 1.442695
    %v4137 = vpow.pop %v4136
    %v4138 = vadd.f32 %v4133, 1.0
    %v4139 = vadd.f32 %v4135, 1.0
    %v4140 = vadd.f32 %v4137, 1.0
    %v4141 = vrcp.pop %v4138
    %v4142 = vmul.f32 1.0, %v4141
    %v4143 = vrcp.pop %v4139
    %v4144 = vmul.f32 1.0, %v4143
    %v4145 = vrcp.pop %v4140
    %v4146 = vmul.f32 1.0, %v4145
    %v4147 = vtanh.pop %v4128
    %v4148 = vmul.f32 %v4144, %v3911
    %v4149 = vmul.f32 %v4142, %v4147
    %v4150 = vadd.f32 %v4148, %v4149
    %v4151 = vtanh.pop %v4150
    %v4152 = vmul.f32 %v4146, %v4151
    %4153 = vst [vmem:[#allocation3 + $0x70] sm:$0xff] %v4152
    %v4154 = vld [vmem:[#allocation2 + $0x1e0] sm:$0xff]
    %v4155 = vld [vmem:[#allocation2 + $0x1e8] sm:$0xff]
    %v4156 = vld [vmem:[#allocation2 + $0x1f0] sm:$0xff]
    %v4157 = vld [vmem:[#allocation2 + $0x1f8] sm:$0xff]
    %v4158 = vld [vmem:[#allocation7] sm:$0xff]
    %v4159 = vld [vmem:[#allocation7 + $0x8] sm:$0xff]
    %v4160 = vld [vmem:[#allocation7 + $0x10] sm:$0xff]
    %v4161 = vld [vmem:[#allocation7 + $0x18] sm:$0xff]
    %v4162 = vld [vmem:[#allocation7 + $0x20] sm:$0xff]
    %v4163 = vld [vmem:[#allocation7 + $0x28] sm:$0xff]
    %v4164 = vld [vmem:[#allocation7 + $0x30] sm:$0xff]
    %v4165 = vld [vmem:[#allocation7 + $0x38] sm:$0xff]
    %v4166 = vld [vmem:[#allocation7 + $0x40] sm:$0xff]
    %v4167 = vld [vmem:[#allocation7 + $0x48] sm:$0xff]
    %v4168 = vld [vmem:[#allocation7 + $0x50] sm:$0xff]
    %v4169 = vld [vmem:[#allocation7 + $0x58] sm:$0xff]
    %v4170 = vld [vmem:[#allocation7 + $0x60] sm:$0xff]
    %v4171 = vld [vmem:[#allocation7 + $0x68] sm:$0xff]
    %v4172 = vld [vmem:[#allocation7 + $0x70] sm:$0xff]
    %v4173 = vld [vmem:[#allocation7 + $0x78] sm:$0xff]
    %v4174 = vld [vmem:[#allocation7 + $0x80] sm:$0xff]
    %v4175 = vld [vmem:[#allocation7 + $0x88] sm:$0xff]
    %v4176 = vld [vmem:[#allocation7 + $0x90] sm:$0xff]
    %v4177 = vld [vmem:[#allocation7 + $0x98] sm:$0xff]
    %v4178 = vld [vmem:[#allocation7 + $0xa0] sm:$0xff]
    %v4179 = vld [vmem:[#allocation7 + $0xa8] sm:$0xff]
    %v4180 = vld [vmem:[#allocation7 + $0xb0] sm:$0xff]
    %v4181 = vld [vmem:[#allocation7 + $0xb8] sm:$0xff]
    %v4182 = vld [vmem:[#allocation7 + $0xc0] sm:$0xff]
    %v4183 = vld [vmem:[#allocation7 + $0xc8] sm:$0xff]
    %v4184 = vld [vmem:[#allocation7 + $0xd0] sm:$0xff]
    %v4185 = vld [vmem:[#allocation7 + $0xd8] sm:$0xff]
    %v4186 = vld [vmem:[#allocation7 + $0xe0] sm:$0xff]
    %v4187 = vld [vmem:[#allocation7 + $0xe8] sm:$0xff]
    %v4188 = vld [vmem:[#allocation7 + $0xf0] sm:$0xff]
    %v4189 = vld [vmem:[#allocation7 + $0xf8] sm:$0xff]
    %v4190 = vld [vmem:[#allocation7 + $0x100] sm:$0xff]
    %v4191 = vld [vmem:[#allocation7 + $0x108] sm:$0xff]
    %v4192 = vld [vmem:[#allocation7 + $0x110] sm:$0xff]
    %v4193 = vld [vmem:[#allocation7 + $0x118] sm:$0xff]
    %v4194 = vld [vmem:[#allocation7 + $0x120] sm:$0xff]
    %v4195 = vld [vmem:[#allocation7 + $0x128] sm:$0xff]
    %v4196 = vld [vmem:[#allocation7 + $0x130] sm:$0xff]
    %v4197 = vld [vmem:[#allocation7 + $0x138] sm:$0xff]
    %v4198 = vld [vmem:[#allocation7 + $0x140] sm:$0xff]
    %v4199 = vld [vmem:[#allocation7 + $0x148] sm:$0xff]
    %v4200 = vld [vmem:[#allocation7 + $0x150] sm:$0xff]
    %v4201 = vld [vmem:[#allocation7 + $0x158] sm:$0xff]
    %v4202 = vld [vmem:[#allocation7 + $0x160] sm:$0xff]
    %v4203 = vld [vmem:[#allocation7 + $0x168] sm:$0xff]
    %v4204 = vld [vmem:[#allocation7 + $0x170] sm:$0xff]
    %v4205 = vld [vmem:[#allocation7 + $0x178] sm:$0xff]
    %v4206 = vld [vmem:[#allocation7 + $0x180] sm:$0xff]
    %v4207 = vld [vmem:[#allocation7 + $0x188] sm:$0xff]
    %v4208 = vld [vmem:[#allocation7 + $0x190] sm:$0xff]
    %v4209 = vld [vmem:[#allocation7 + $0x198] sm:$0xff]
    %v4210 = vld [vmem:[#allocation7 + $0x1a0] sm:$0xff]
    %v4211 = vld [vmem:[#allocation7 + $0x1a8] sm:$0xff]
    %v4212 = vld [vmem:[#allocation7 + $0x1b0] sm:$0xff]
    %v4213 = vld [vmem:[#allocation7 + $0x1b8] sm:$0xff]
    %v4214 = vld [vmem:[#allocation7 + $0x1c0] sm:$0xff]
    %v4215 = vld [vmem:[#allocation7 + $0x1c8] sm:$0xff]
    %v4216 = vld [vmem:[#allocation7 + $0x1d0] sm:$0xff]
    %v4217 = vld [vmem:[#allocation7 + $0x1d8] sm:$0xff]
    %v4218 = vld [vmem:[#allocation7 + $0x1e0] sm:$0xff]
    %v4219 = vld [vmem:[#allocation7 + $0x1e8] sm:$0xff]
    %v4220 = vld [vmem:[#allocation7 + $0x1f0] sm:$0xff]
    %v4221 = vld [vmem:[#allocation7 + $0x1f8] sm:$0xff]
    %4222 = vmatprep.subr.mxu0 %v4219
    %4223 = vmatpush1.msra.mxu0 %v4218
    %4224 = vmatprep.subr.mxu0 %v4215
    %4225 = vmatpush1.msra.mxu0 %v4214
    %4226 = vmatprep.subr.mxu0 %v4211
    %4227 = vmatpush1.msra.mxu0 %v4210
    %4228 = vmatprep.subr.mxu0 %v4207
    %4229 = vmatpush1.msra.mxu0 %v4206
    %4230 = vmatprep.subr.mxu0 %v4203
    %4231 = vmatpush1.msra.mxu0 %v4202
    %4232 = vmatprep.subr.mxu0 %v4199
    %4233 = vmatpush1.msra.mxu0 %v4198
    %4234 = vmatprep.subr.mxu0 %v4195
    %4235 = vmatpush1.msra.mxu0 %v4194
    %4236 = vmatprep.subr.mxu0 %v4191
    %4237 = vmatpush1.msra.mxu0 %v4190
    %4238 = vmatprep.subr.mxu0 %v4187
    %4239 = vmatpush1.msra.mxu0 %v4186
    %4240 = vmatprep.subr.mxu0 %v4183
    %4241 = vmatpush1.msra.mxu0 %v4182
    %4242 = vmatprep.subr.mxu0 %v4179
    %4243 = vmatpush1.msra.mxu0 %v4178
    %4244 = vmatprep.subr.mxu0 %v4175
    %4245 = vmatpush1.msra.mxu0 %v4174
    %4246 = vmatprep.subr.mxu0 %v4171
    %4247 = vmatpush1.msra.mxu0 %v4170
    %4248 = vmatprep.subr.mxu0 %v4167
    %4249 = vmatpush1.msra.mxu0 %v4166
    %4250 = vmatprep.subr.mxu0 %v4163
    %4251 = vmatpush1.msra.mxu0 %v4162
    %4252 = vmatprep.subr.mxu0 %v4159
    %4253 = vmatpush1.msra.mxu0 %v4158
    %4254 = vmatprep.subr.mxu0 0.0
    %4255 = vmatpush2.msra.mxu0 0.0
    %4256 = vmatprep.subr.mxu0 0.0
    %4257 = vmatpush2.msra.mxu0 0.0
    %4258 = vmatprep.subr.mxu0 0.0
    %4259 = vmatpush2.msra.mxu0 0.0
    %4260 = vmatprep.subr.mxu0 0.0
    %4261 = vmatpush2.msra.mxu0 0.0
    %4262 = vmatprep.subr.mxu0 0.0
    %4263 = vmatpush2.msra.mxu0 0.0
    %4264 = vmatprep.subr.mxu0 0.0
    %4265 = vmatpush2.msra.mxu0 0.0
    %4266 = vmatprep.subr.mxu0 0.0
    %4267 = vmatpush2.msra.mxu0 0.0
    %4268 = vmatprep.subr.mxu0 0.0
    %4269 = vmatpush2.msra.mxu0 0.0
    %4270 = vmatprep.subr.mxu0 0.0
    %4271 = vmatpush2.msra.mxu0 0.0
    %4272 = vmatprep.subr.mxu0 0.0
    %4273 = vmatpush2.msra.mxu0 0.0
    %4274 = vmatprep.subr.mxu0 0.0
    %4275 = vmatpush2.msra.mxu0 0.0
    %4276 = vmatprep.subr.mxu0 0.0
    %4277 = vmatpush2.msra.mxu0 0.0
    %4278 = vmatprep.subr.mxu0 0.0
    %4279 = vmatpush2.msra.mxu0 0.0
    %4280 = vmatprep.subr.mxu0 0.0
    %4281 = vmatpush2.msra.mxu0 0.0
    %4282 = vmatprep.subr.mxu0 0.0
    %4283 = vmatpush2.msra.mxu0 0.0
    %4284 = vmatprep.subr.mxu0 0.0
    %4285 = vmatpush2.msra.mxu0 0.0
    %4286 = vmatprep.mubr.f32.mxu0 0.0
    %4287 = vmatmul.mubr.f32.gmra.mxu0 %v4152
    %v4288 = vpop.f32.mrf.mxu0
    %v4289 = vadd.f32 0.0, %v4288
    %v4290 = vpop.f32.mrf.mxu0
    %v4291 = vadd.f32 0.0, %v4290
    %4292 = vdwg.mxu0
    %4293 = vmatprep.subr.mxu0 %v4221
    %4294 = vmatpush1.msra.mxu0 %v4220
    %4295 = vmatprep.subr.mxu0 %v4217
    %4296 = vmatpush1.msra.mxu0 %v4216
    %4297 = vmatprep.subr.mxu0 %v4213
    %4298 = vmatpush1.msra.mxu0 %v4212
    %4299 = vmatprep.subr.mxu0 %v4209
    %4300 = vmatpush1.msra.mxu0 %v4208
    %4301 = vmatprep.subr.mxu0 %v4205
    %4302 = vmatpush1.msra.mxu0 %v4204
    %4303 = vmatprep.subr.mxu0 %v4201
    %4304 = vmatpush1.msra.mxu0 %v4200
    %4305 = vmatprep.subr.mxu0 %v4197
    %4306 = vmatpush1.msra.mxu0 %v4196
    %4307 = vmatprep.subr.mxu0 %v4193
    %4308 = vmatpush1.msra.mxu0 %v4192
    %4309 = vmatprep.subr.mxu0 %v4189
    %4310 = vmatpush1.msra.mxu0 %v4188
    %4311 = vmatprep.subr.mxu0 %v4185
    %4312 = vmatpush1.msra.mxu0 %v4184
    %4313 = vmatprep.subr.mxu0 %v4181
    %4314 = vmatpush1.msra.mxu0 %v4180
    %4315 = vmatprep.subr.mxu0 %v4177
    %4316 = vmatpush1.msra.mxu0 %v4176
    %4317 = vmatprep.subr.mxu0 %v4173
    %4318 = vmatpush1.msra.mxu0 %v4172
    %4319 = vmatprep.subr.mxu0 %v4169
    %4320 = vmatpush1.msra.mxu0 %v4168
    %4321 = vmatprep.subr.mxu0 %v4165
    %4322 = vmatpush1.msra.mxu0 %v4164
    %4323 = vmatprep.subr.mxu0 %v4161
    %4324 = vmatpush1.msra.mxu0 %v4160
    %4325 = vmatprep.subr.mxu0 0.0
    %4326 = vmatpush2.msra.mxu0 0.0
    %4327 = vmatprep.subr.mxu0 0.0
    %4328 = vmatpush2.msra.mxu0 0.0
    %4329 = vmatprep.subr.mxu0 0.0
    %4330 = vmatpush2.msra.mxu0 0.0
    %4331 = vmatprep.subr.mxu0 0.0
    %4332 = vmatpush2.msra.mxu0 0.0
    %4333 = vmatprep.subr.mxu0 0.0
    %4334 = vmatpush2.msra.mxu0 0.0
    %4335 = vmatprep.subr.mxu0 0.0
    %4336 = vmatpush2.msra.mxu0 0.0
    %4337 = vmatprep.subr.mxu0 0.0
    %4338 = vmatpush2.msra.mxu0 0.0
    %4339 = vmatprep.subr.mxu0 0.0
    %4340 = vmatpush2.msra.mxu0 0.0
    %4341 = vmatprep.subr.mxu0 0.0
    %4342 = vmatpush2.msra.mxu0 0.0
    %4343 = vmatprep.subr.mxu0 0.0
    %4344 = vmatpush2.msra.mxu0 0.0
    %4345 = vmatprep.subr.mxu0 0.0
    %4346 = vmatpush2.msra.mxu0 0.0
    %4347 = vmatprep.subr.mxu0 0.0
    %4348 = vmatpush2.msra.mxu0 0.0
    %4349 = vmatprep.subr.mxu0 0.0
    %4350 = vmatpush2.msra.mxu0 0.0
    %4351 = vmatprep.subr.mxu0 0.0
    %4352 = vmatpush2.msra.mxu0 0.0
    %4353 = vmatprep.subr.mxu0 0.0
    %4354 = vmatpush2.msra.mxu0 0.0
    %4355 = vmatprep.subr.mxu0 0.0
    %4356 = vmatpush2.msra.mxu0 0.0
    %4357 = vmatprep.mubr.f32.mxu0 0.0
    %4358 = vmatmul.mubr.f32.gmra.mxu0 %v4152
    %v4359 = vpop.f32.mrf.mxu0
    %v4360 = vadd.f32 0.0, %v4359
    %v4361 = vpop.f32.mrf.mxu0
    %v4362 = vadd.f32 0.0, %v4361
    %4363 = vdwg.mxu0
    %v4364 = vadd.f32 %v4154, %v4289
    %v4365 = vadd.f32 %v4155, %v4291
    %v4366 = vadd.f32 %v4156, %v4360
    %v4367 = vadd.f32 %v4157, %v4362
    %v4368 = vxor.u32 %v4364, 2147483648
    %v4369 = vxor.u32 %v4365, 2147483648
    %v4370 = vxor.u32 %v4366, 2147483648
    %v4371 = vmul.f32 %v4368, 1.442695
    %v4372 = vpow.pop %v4371
    %v4373 = vmul.f32 %v4369, 1.442695
    %v4374 = vpow.pop %v4373
    %v4375 = vmul.f32 %v4370, 1.442695
    %v4376 = vpow.pop %v4375
    %v4377 = vadd.f32 %v4372, 1.0
    %v4378 = vadd.f32 %v4374, 1.0
    %v4379 = vadd.f32 %v4376, 1.0
    %v4380 = vrcp.pop %v4377
    %v4381 = vmul.f32 1.0, %v4380
    %v4382 = vrcp.pop %v4378
    %v4383 = vmul.f32 1.0, %v4382
    %v4384 = vrcp.pop %v4379
    %v4385 = vmul.f32 1.0, %v4384
    %v4386 = vtanh.pop %v4367
    %v4387 = vmul.f32 %v4383, %v4150
    %v4388 = vmul.f32 %v4381, %v4386
    %v4389 = vadd.f32 %v4387, %v4388
    %v4390 = vtanh.pop %v4389
    %v4391 = vmul.f32 %v4385, %v4390
    %4392 = vst [vmem:[#allocation3 + $0x78] sm:$0xff] %v4391
    %v4393 = vld [vmem:[#allocation3] sm:$0xff]
    %v4394 = vld [vmem:[#allocation3 + $0x8] sm:$0xff]
    %v4395 = vld [vmem:[#allocation3 + $0x10] sm:$0xff]
    %v4396 = vld [vmem:[#allocation3 + $0x18] sm:$0xff]
    %v4397 = vld [vmem:[#allocation3 + $0x20] sm:$0xff]
    %v4398 = vld [vmem:[#allocation3 + $0x28] sm:$0xff]
    %v4399 = vld [vmem:[#allocation3 + $0x30] sm:$0xff]
    %v4400 = vld [vmem:[#allocation3 + $0x38] sm:$0xff]
    %v4401 = vld [vmem:[#allocation3 + $0x40] sm:$0xff]
    %v4402 = vld [vmem:[#allocation3 + $0x48] sm:$0xff]
    %v4403 = vld [vmem:[#allocation3 + $0x50] sm:$0xff]
    %v4404 = vld [vmem:[#allocation3 + $0x58] sm:$0xff]
    %v4405 = vld [vmem:[#allocation3 + $0x60] sm:$0xff]
    %v4406 = vld [vmem:[#allocation3 + $0x68] sm:$0xff]
    %v4407 = vld [vmem:[#allocation3 + $0x70] sm:$0xff]
    %v4408 = vld [vmem:[#allocation3 + $0x78] sm:$0xff]
    %v4409 = vld [vmem:[%s6] sm:$0xff]
    %v4410 = vld [vmem:[%s6 + $0x8] sm:$0xff]
    %v4411 = vld [vmem:[%s6 + $0x10] sm:$0xff]
    %v4412 = vld [vmem:[%s6 + $0x18] sm:$0xff]
    %v4413 = vld [vmem:[%s6 + $0x20] sm:$0xff]
    %v4414 = vld [vmem:[%s6 + $0x28] sm:$0xff]
    %v4415 = vld [vmem:[%s6 + $0x30] sm:$0xff]
    %v4416 = vld [vmem:[%s6 + $0x38] sm:$0xff]
    %v4417 = vld [vmem:[%s6 + $0x40] sm:$0xff]
    %v4418 = vld [vmem:[%s6 + $0x48] sm:$0xff]
    %v4419 = vld [vmem:[%s6 + $0x50] sm:$0xff]
    %v4420 = vld [vmem:[%s6 + $0x58] sm:$0xff]
    %v4421 = vld [vmem:[%s6 + $0x60] sm:$0xff]
    %v4422 = vld [vmem:[%s6 + $0x68] sm:$0xff]
    %v4423 = vld [vmem:[%s6 + $0x70] sm:$0xff]
    %v4424 = vld [vmem:[%s6 + $0x78] sm:$0xff]
    %v4425 = vld [vmem:[%s7] sm:$0x1]
    %v4427 = vlaneseq
    %v4428 = vshrl.u32 %v4427, 7
    %v4429 = vsub.s32 0, %v4428
    %v4430 = vrot.slane %v4425, %v4429
    %4432 = vmatprep.subr.mxu0 0.0
    %4433 = vmatpush1.msra.mxu0 %v4424
    %4434 = vmatprep.subr.mxu0 0.0
    %4435 = vmatpush1.msra.mxu0 %v4423
    %4436 = vmatprep.subr.mxu0 0.0
    %4437 = vmatpush1.msra.mxu0 %v4422
    %4438 = vmatprep.subr.mxu0 0.0
    %4439 = vmatpush1.msra.mxu0 %v4421
    %4440 = vmatprep.subr.mxu0 0.0
    %4441 = vmatpush1.msra.mxu0 %v4420
    %4442 = vmatprep.subr.mxu0 0.0
    %4443 = vmatpush1.msra.mxu0 %v4419
    %4444 = vmatprep.subr.mxu0 0.0
    %4445 = vmatpush1.msra.mxu0 %v4418
    %4446 = vmatprep.subr.mxu0 0.0
    %4447 = vmatpush1.msra.mxu0 %v4417
    %4448 = vmatprep.subr.mxu0 0.0
    %4449 = vmatpush1.msra.mxu0 %v4416
    %4450 = vmatprep.subr.mxu0 0.0
    %4451 = vmatpush1.msra.mxu0 %v4415
    %4452 = vmatprep.subr.mxu0 0.0
    %4453 = vmatpush1.msra.mxu0 %v4414
    %4454 = vmatprep.subr.mxu0 0.0
    %4455 = vmatpush1.msra.mxu0 %v4413
    %4456 = vmatprep.subr.mxu0 0.0
    %4457 = vmatpush1.msra.mxu0 %v4412
    %4458 = vmatprep.subr.mxu0 0.0
    %4459 = vmatpush1.msra.mxu0 %v4411
    %4460 = vmatprep.subr.mxu0 0.0
    %4461 = vmatpush1.msra.mxu0 %v4410
    %4462 = vmatprep.subr.mxu0 0.0
    %4463 = vmatpush1.msra.mxu0 %v4409
    %4464 = vmatprep.subr.mxu0 0.0
    %4465 = vmatpush2.msra.mxu0 0.0
    %4466 = vmatprep.subr.mxu0 0.0
    %4467 = vmatpush2.msra.mxu0 0.0
    %4468 = vmatprep.subr.mxu0 0.0
    %4469 = vmatpush2.msra.mxu0 0.0
    %4470 = vmatprep.subr.mxu0 0.0
    %4471 = vmatpush2.msra.mxu0 0.0
    %4472 = vmatprep.subr.mxu0 0.0
    %4473 = vmatpush2.msra.mxu0 0.0
    %4474 = vmatprep.subr.mxu0 0.0
    %4475 = vmatpush2.msra.mxu0 0.0
    %4476 = vmatprep.subr.mxu0 0.0
    %4477 = vmatpush2.msra.mxu0 0.0
    %4478 = vmatprep.subr.mxu0 0.0
    %4479 = vmatpush2.msra.mxu0 0.0
    %4480 = vmatprep.subr.mxu0 0.0
    %4481 = vmatpush2.msra.mxu0 0.0
    %4482 = vmatprep.subr.mxu0 0.0
    %4483 = vmatpush2.msra.mxu0 0.0
    %4484 = vmatprep.subr.mxu0 0.0
    %4485 = vmatpush2.msra.mxu0 0.0
    %4486 = vmatprep.subr.mxu0 0.0
    %4487 = vmatpush2.msra.mxu0 0.0
    %4488 = vmatprep.subr.mxu0 0.0
    %4489 = vmatpush2.msra.mxu0 0.0
    %4490 = vmatprep.subr.mxu0 0.0
    %4491 = vmatpush2.msra.mxu0 0.0
    %4492 = vmatprep.subr.mxu0 0.0
    %4493 = vmatpush2.msra.mxu0 0.0
    %4494 = vmatprep.subr.mxu0 0.0
    %4495 = vmatpush2.msra.mxu0 0.0
    %4496 = vmatprep.mubr.f32.mxu0 0.0
    %4497 = vmatmul.mubr.f32.gmra.mxu0 %v4393
    %v4498 = vpop.f32.mrf.mxu0
    %v4499 = vadd.f32 %v4430, %v4498
    %v4500 = vpop.f32.mrf.mxu0
    %4501 = vmatprep.mubr.f32.mxu0 0.0
    %4502 = vmatmul.mubr.f32.gmra.mxu0 %v4394
    %v4503 = vpop.f32.mrf.mxu0
    %v4504 = vadd.f32 %v4430, %v4503
    %v4505 = vpop.f32.mrf.mxu0
    %4506 = vmatprep.mubr.f32.mxu0 0.0
    %4507 = vmatmul.mubr.f32.gmra.mxu0 %v4395
    %v4508 = vpop.f32.mrf.mxu0
    %v4509 = vadd.f32 %v4430, %v4508
    %v4510 = vpop.f32.mrf.mxu0
    %4511 = vmatprep.mubr.f32.mxu0 0.0
    %4512 = vmatmul.mubr.f32.gmra.mxu0 %v4396
    %v4513 = vpop.f32.mrf.mxu0
    %v4514 = vadd.f32 %v4430, %v4513
    %v4515 = vpop.f32.mrf.mxu0
    %4516 = vmatprep.mubr.f32.mxu0 0.0
    %4517 = vmatmul.mubr.f32.gmra.mxu0 %v4397
    %v4518 = vpop.f32.mrf.mxu0
    %v4519 = vadd.f32 %v4430, %v4518
    %v4520 = vpop.f32.mrf.mxu0
    %4521 = vmatprep.mubr.f32.mxu0 0.0
    %4522 = vmatmul.mubr.f32.gmra.mxu0 %v4398
    %v4523 = vpop.f32.mrf.mxu0
    %v4524 = vadd.f32 %v4430, %v4523
    %v4525 = vpop.f32.mrf.mxu0
    %4526 = vmatprep.mubr.f32.mxu0 0.0
    %4527 = vmatmul.mubr.f32.gmra.mxu0 %v4399
    %v4528 = vpop.f32.mrf.mxu0
    %v4529 = vadd.f32 %v4430, %v4528
    %v4530 = vpop.f32.mrf.mxu0
    %4531 = vmatprep.mubr.f32.mxu0 0.0
    %4532 = vmatmul.mubr.f32.gmra.mxu0 %v4400
    %v4533 = vpop.f32.mrf.mxu0
    %v4534 = vadd.f32 %v4430, %v4533
    %v4535 = vpop.f32.mrf.mxu0
    %4536 = vmatprep.mubr.f32.mxu0 0.0
    %4537 = vmatmul.mubr.f32.gmra.mxu0 %v4401
    %v4538 = vpop.f32.mrf.mxu0
    %v4539 = vadd.f32 %v4430, %v4538
    %v4540 = vpop.f32.mrf.mxu0
    %4541 = vmatprep.mubr.f32.mxu0 0.0
    %4542 = vmatmul.mubr.f32.gmra.mxu0 %v4402
    %v4543 = vpop.f32.mrf.mxu0
    %v4544 = vadd.f32 %v4430, %v4543
    %v4545 = vpop.f32.mrf.mxu0
    %4546 = vmatprep.mubr.f32.mxu0 0.0
    %4547 = vmatmul.mubr.f32.gmra.mxu0 %v4403
    %v4548 = vpop.f32.mrf.mxu0
    %v4549 = vadd.f32 %v4430, %v4548
    %v4550 = vpop.f32.mrf.mxu0
    %4551 = vmatprep.mubr.f32.mxu0 0.0
    %4552 = vmatmul.mubr.f32.gmra.mxu0 %v4404
    %v4553 = vpop.f32.mrf.mxu0
    %v4554 = vadd.f32 %v4430, %v4553
    %v4555 = vpop.f32.mrf.mxu0
    %4556 = vmatprep.mubr.f32.mxu0 0.0
    %4557 = vmatmul.mubr.f32.gmra.mxu0 %v4405
    %v4558 = vpop.f32.mrf.mxu0
    %v4559 = vadd.f32 %v4430, %v4558
    %v4560 = vpop.f32.mrf.mxu0
    %4561 = vmatprep.mubr.f32.mxu0 0.0
    %4562 = vmatmul.mubr.f32.gmra.mxu0 %v4406
    %v4563 = vpop.f32.mrf.mxu0
    %v4564 = vadd.f32 %v4430, %v4563
    %v4565 = vpop.f32.mrf.mxu0
    %4566 = vmatprep.mubr.f32.mxu0 0.0
    %4567 = vmatmul.mubr.f32.gmra.mxu0 %v4407
    %v4568 = vpop.f32.mrf.mxu0
    %v4569 = vadd.f32 %v4430, %v4568
    %v4570 = vpop.f32.mrf.mxu0
    %4571 = vmatprep.mubr.f32.mxu0 0.0
    %4572 = vmatmul.mubr.f32.gmra.mxu0 %v4408
    %v4573 = vpop.f32.mrf.mxu0
    %v4574 = vadd.f32 %v4430, %v4573
    %v4575 = vpop.f32.mrf.mxu0
    %4576 = vdwg.mxu0
    %4577 = vmax.xlane.f32.xlu0 %v4499
    %v4578 = vpop.xlane.xlu0 %4577
    %4579 = vmax.xlane.f32.xlu0 %v4504
    %v4580 = vpop.xlane.xlu0 %4579
    %4581 = vmax.xlane.f32.xlu0 %v4509
    %v4582 = vpop.xlane.xlu0 %4581
    %4583 = vmax.xlane.f32.xlu0 %v4514
    %v4584 = vpop.xlane.xlu0 %4583
    %4585 = vmax.xlane.f32.xlu0 %v4519
    %v4586 = vpop.xlane.xlu0 %4585
    %4587 = vmax.xlane.f32.xlu0 %v4524
    %v4588 = vpop.xlane.xlu0 %4587
    %4589 = vmax.xlane.f32.xlu0 %v4529
    %v4590 = vpop.xlane.xlu0 %4589
    %4591 = vmax.xlane.f32.xlu0 %v4534
    %v4592 = vpop.xlane.xlu0 %4591
    %4593 = vmax.xlane.f32.xlu0 %v4539
    %v4594 = vpop.xlane.xlu0 %4593
    %4595 = vmax.xlane.f32.xlu0 %v4544
    %v4596 = vpop.xlane.xlu0 %4595
    %4597 = vmax.xlane.f32.xlu0 %v4549
    %v4598 = vpop.xlane.xlu0 %4597
    %4599 = vmax.xlane.f32.xlu0 %v4554
    %v4600 = vpop.xlane.xlu0 %4599
    %4601 = vmax.xlane.f32.xlu0 %v4559
    %v4602 = vpop.xlane.xlu0 %4601
    %4603 = vmax.xlane.f32.xlu0 %v4564
    %v4604 = vpop.xlane.xlu0 %4603
    %4605 = vmax.xlane.f32.xlu0 %v4569
    %v4606 = vpop.xlane.xlu0 %4605
    %4607 = vmax.xlane.f32.xlu0 %v4574
    %v4608 = vpop.xlane.xlu0 %4607
    %v4609 = vsub.f32 %v4499, %v4578
    %v4610 = vsub.f32 %v4504, %v4580
    %v4611 = vsub.f32 %v4509, %v4582
    %v4612 = vsub.f32 %v4514, %v4584
    %v4613 = vsub.f32 %v4519, %v4586
    %v4614 = vsub.f32 %v4524, %v4588
    %v4615 = vsub.f32 %v4529, %v4590
    %v4616 = vsub.f32 %v4534, %v4592
    %v4617 = vsub.f32 %v4539, %v4594
    %v4618 = vsub.f32 %v4544, %v4596
    %v4619 = vsub.f32 %v4549, %v4598
    %v4620 = vsub.f32 %v4554, %v4600
    %v4621 = vsub.f32 %v4559, %v4602
    %v4622 = vsub.f32 %v4564, %v4604
    %v4623 = vsub.f32 %v4569, %v4606
    %v4624 = vsub.f32 %v4574, %v4608
    %v4625 = vmul.f32 %v4609, 1.442695
    %v4626 = vpow.pop %v4625
    %v4627 = vmul.f32 %v4610, 1.442695
    %v4628 = vpow.pop %v4627
    %v4629 = vmul.f32 %v4611, 1.442695
    %v4630 = vpow.pop %v4629
    %v4631 = vmul.f32 %v4612, 1.442695
    %v4632 = vpow.pop %v4631
    %v4633 = vmul.f32 %v4613, 1.442695
    %v4634 = vpow.pop %v4633
    %v4635 = vmul.f32 %v4614, 1.442695
    %v4636 = vpow.pop %v4635
    %v4637 = vmul.f32 %v4615, 1.442695
    %v4638 = vpow.pop %v4637
    %v4639 = vmul.f32 %v4616, 1.442695
    %v4640 = vpow.pop %v4639
    %v4641 = vmul.f32 %v4617, 1.442695
    %v4642 = vpow.pop %v4641
    %v4643 = vmul.f32 %v4618, 1.442695
    %v4644 = vpow.pop %v4643
    %v4645 = vmul.f32 %v4619, 1.442695
    %v4646 = vpow.pop %v4645
    %v4647 = vmul.f32 %v4620, 1.442695
    %v4648 = vpow.pop %v4647
    %v4649 = vmul.f32 %v4621, 1.442695
    %v4650 = vpow.pop %v4649
    %v4651 = vmul.f32 %v4622, 1.442695
    %v4652 = vpow.pop %v4651
    %v4653 = vmul.f32 %v4623, 1.442695
    %v4654 = vpow.pop %v4653
    %v4655 = vmul.f32 %v4624, 1.442695
    %v4656 = vpow.pop %v4655
    %4657 = vadd.xlane.f32.xlu0 %v4626
    %v4658 = vpop.xlane.xlu0 %4657
    %4659 = vadd.xlane.f32.xlu0 %v4628
    %v4660 = vpop.xlane.xlu0 %4659
    %4661 = vadd.xlane.f32.xlu0 %v4630
    %v4662 = vpop.xlane.xlu0 %4661
    %4663 = vadd.xlane.f32.xlu0 %v4632
    %v4664 = vpop.xlane.xlu0 %4663
    %4665 = vadd.xlane.f32.xlu0 %v4634
    %v4666 = vpop.xlane.xlu0 %4665
    %4667 = vadd.xlane.f32.xlu0 %v4636
    %v4668 = vpop.xlane.xlu0 %4667
    %4669 = vadd.xlane.f32.xlu0 %v4638
    %v4670 = vpop.xlane.xlu0 %4669
    %4671 = vadd.xlane.f32.xlu0 %v4640
    %v4672 = vpop.xlane.xlu0 %4671
    %4673 = vadd.xlane.f32.xlu0 %v4642
    %v4674 = vpop.xlane.xlu0 %4673
    %4675 = vadd.xlane.f32.xlu0 %v4644
    %v4676 = vpop.xlane.xlu0 %4675
    %4677 = vadd.xlane.f32.xlu0 %v4646
    %v4678 = vpop.xlane.xlu0 %4677
    %4679 = vadd.xlane.f32.xlu0 %v4648
    %v4680 = vpop.xlane.xlu0 %4679
    %4681 = vadd.xlane.f32.xlu0 %v4650
    %v4682 = vpop.xlane.xlu0 %4681
    %4683 = vadd.xlane.f32.xlu0 %v4652
    %v4684 = vpop.xlane.xlu0 %4683
    %4685 = vadd.xlane.f32.xlu0 %v4654
    %v4686 = vpop.xlane.xlu0 %4685
    %4687 = vadd.xlane.f32.xlu0 %v4656
    %v4688 = vpop.xlane.xlu0 %4687
    %v4689 = vlog2.pop %v4658
    %v4690 = vmul.f32 %v4689, 0.6931472
    %v4691 = vlog2.pop %v4660
    %v4692 = vmul.f32 %v4691, 0.6931472
    %v4693 = vlog2.pop %v4662
    %v4694 = vmul.f32 %v4693, 0.6931472
    %v4695 = vlog2.pop %v4664
    %v4696 = vmul.f32 %v4695, 0.6931472
    %v4697 = vlog2.pop %v4666
    %v4698 = vmul.f32 %v4697, 0.6931472
    %v4699 = vlog2.pop %v4668
    %v4700 = vmul.f32 %v4699, 0.6931472
    %v4701 = vlog2.pop %v4670
    %v4702 = vmul.f32 %v4701, 0.6931472
    %v4703 = vlog2.pop %v4672
    %v4704 = vmul.f32 %v4703, 0.6931472
    %v4705 = vlog2.pop %v4674
    %v4706 = vmul.f32 %v4705, 0.6931472
    %v4707 = vlog2.pop %v4676
    %v4708 = vmul.f32 %v4707, 0.6931472
    %v4709 = vlog2.pop %v4678
    %v4710 = vmul.f32 %v4709, 0.6931472
    %v4711 = vlog2.pop %v4680
    %v4712 = vmul.f32 %v4711, 0.6931472
    %v4713 = vlog2.pop %v4682
    %v4714 = vmul.f32 %v4713, 0.6931472
    %v4715 = vlog2.pop %v4684
    %v4716 = vmul.f32 %v4715, 0.6931472
    %v4717 = vlog2.pop %v4686
    %v4718 = vmul.f32 %v4717, 0.6931472
    %v4719 = vlog2.pop %v4688
    %v4720 = vmul.f32 %v4719, 0.6931472
    %v4721 = vsub.f32 %v4609, %v4690
    %v4722 = vsub.f32 %v4610, %v4692
    %v4723 = vsub.f32 %v4611, %v4694
    %v4724 = vsub.f32 %v4612, %v4696
    %v4725 = vsub.f32 %v4613, %v4698
    %v4726 = vsub.f32 %v4614, %v4700
    %v4727 = vsub.f32 %v4615, %v4702
    %v4728 = vsub.f32 %v4616, %v4704
    %v4729 = vsub.f32 %v4617, %v4706
    %v4730 = vsub.f32 %v4618, %v4708
    %v4731 = vsub.f32 %v4619, %v4710
    %v4732 = vsub.f32 %v4620, %v4712
    %v4733 = vsub.f32 %v4621, %v4714
    %v4734 = vsub.f32 %v4622, %v4716
    %v4735 = vsub.f32 %v4623, %v4718
    %v4736 = vsub.f32 %v4624, %v4720
    %4737 = vst [vmem:[#allocation9] sm:$0xff] %v4721
    %4738 = vst [vmem:[#allocation9 + $0x8] sm:$0xff] %v4722
    %4739 = vst [vmem:[#allocation9 + $0x10] sm:$0xff] %v4723
    %4740 = vst [vmem:[#allocation9 + $0x18] sm:$0xff] %v4724
    %4741 = vst [vmem:[#allocation9 + $0x20] sm:$0xff] %v4725
    %4742 = vst [vmem:[#allocation9 + $0x28] sm:$0xff] %v4726
    %4743 = vst [vmem:[#allocation9 + $0x30] sm:$0xff] %v4727
    %4744 = vst [vmem:[#allocation9 + $0x38] sm:$0xff] %v4728
    %4745 = vst [vmem:[#allocation9 + $0x40] sm:$0xff] %v4729
    %4746 = vst [vmem:[#allocation9 + $0x48] sm:$0xff] %v4730
    %4747 = vst [vmem:[#allocation9 + $0x50] sm:$0xff] %v4731
    %4748 = vst [vmem:[#allocation9 + $0x58] sm:$0xff] %v4732
    %4749 = vst [vmem:[#allocation9 + $0x60] sm:$0xff] %v4733
    %4750 = vst [vmem:[#allocation9 + $0x68] sm:$0xff] %v4734
    %4751 = vst [vmem:[#allocation9 + $0x70] sm:$0xff] %v4735
    %4752 = vst [vmem:[#allocation9 + $0x78] sm:$0xff] %v4736
    %4753 = vst [vmem:[#allocation10] sm:$0xff] %v4391
    %4754 = vst [vmem:[#allocation12] sm:$0xff] %v4389
    // Predicated region
    $region42: #{tpu_custom_call.1} parent=1 // pred_check
      _
    $region43: #{tpu_custom_call.1} parent=1 // pred_check_branch
      %4756 = sbr.rel (0) target = $region45
    $region44: #{tpu_custom_call.1} parent=1 // pred_region
      %s4758 = ssub.s32 2048, 2048
      %4759 = vsyncadd [#allocation6], %s4758
      %s4760 = sshll.u32 [#allocation9], 4
      %s4761 = int_to_ptr.vmem [resolvable:$true] %s4760
      %4766 = dma.vmem_to_hbm [thread:$0]  %s4761, 2048, %s8, [#allocation6], 128, 128, 8
    $region45: #{tpu_custom_call.1} parent=1 // pred_fallthru
      _
    // Predicated region
    $region46: #{tpu_custom_call.1} parent=1 // pred_check
      _
    $region47: #{tpu_custom_call.1} parent=1 // pred_check_branch
      %4768 = sbr.rel (0) target = $region49
    $region48: #{tpu_custom_call.1} parent=1 // pred_region
      %s4770 = ssub.s32 128, 128
      %4771 = vsyncadd [#allocation11], %s4770
      %s4773 = sshll.u32 [#allocation10], 4
      %s4774 = int_to_ptr.vmem [resolvable:$true] %s4773
      %4776 = dma.vmem_to_hbm [thread:$0]  %s4774, 128, %s9, [#allocation11]
    $region49: #{tpu_custom_call.1} parent=1 // pred_fallthru
      _
    // Predicated region
    $region50: #{tpu_custom_call.1} parent=1 // pred_check
      _
    $region51: #{tpu_custom_call.1} parent=1 // pred_check_branch
      %4778 = sbr.rel (0) target = $region53
    $region52: #{tpu_custom_call.1} parent=1 // pred_region
      %s4780 = ssub.s32 128, 128
      %4781 = vsyncadd [#allocation11], %s4780
      %s4783 = sshll.u32 [#allocation12], 4
      %s4784 = int_to_ptr.vmem [resolvable:$true] %s4783
      %4786 = dma.vmem_to_hbm [thread:$0]  %s4784, 128, %s10, [#allocation11]
    $region53: #{tpu_custom_call.1} parent=1 // pred_fallthru
      _
    // Predicated region
    $region54: #{tpu_custom_call.1} parent=1 // pred_check
      _
    $region55: #{tpu_custom_call.1} parent=1 // pred_check_branch
      %4788 = sbr.rel (0) target = $region57
    $region56: #{tpu_custom_call.1} parent=1 // pred_region
      %4789 = dma.done [#allocation6], 2048
    $region57: #{tpu_custom_call.1} parent=1 // pred_fallthru
      _
    // Predicated region
    $region58: #{tpu_custom_call.1} parent=1 // pred_check
      _
    $region59: #{tpu_custom_call.1} parent=1 // pred_check_branch
      %4791 = sbr.rel (0) target = $region61
    $region60: #{tpu_custom_call.1} parent=1 // pred_region
      %4792 = dma.done [#allocation11], 128
    $region61: #{tpu_custom_call.1} parent=1 // pred_fallthru
      _
    // Predicated region
    $region62: #{tpu_custom_call.1} parent=1 // pred_check
      _
    $region63: #{tpu_custom_call.1} parent=1 // pred_check_branch
      %4794 = sbr.rel (0) target = $region65
    $region64: #{tpu_custom_call.1} parent=1 // pred_region
      %4795 = dma.done [#allocation11], 128
    $region65: #{tpu_custom_call.1} parent=1 // pred_fallthru
      _
    %4796 = vsyncpa [#allocation5], 1
    %4797 = vsyncpa [#allocation8], 1
    %4798 = vsyncpa [#allocation6], 1
    %4799 = vsyncpa [#allocation11], 1

</llo_original>
